<compile_context>
chip_gen: v5e
topology: v5e:2x2
jax: 0.10.0
libtpu: 0.0.40
codegen_flags: <defaults>
</compile_context>

<pallas_src>
import functools

import jax
import jax.numpy as jnp
from jax.experimental import pallas as pl
from jax.experimental.pallas import tpu as pltpu

GROUPS = 24   # hard-coded `groups` in the PyTorch module
EPS = 1e-5    # nn.GroupNorm default eps


# ---------------------------------------------------------------------------
# Stage 1: Conv3x3(in->out) + bias + GroupNorm(GROUPS) + ReLU on upsampled x1.
# ---------------------------------------------------------------------------
def _upconv_gn_relu_kernel(x_ref, w_ref, bias_ref, gamma_ref, beta_ref,
                           grp_ref, mask_ref, o_ref, *, Wp, L, count):
    """Per-sample fused conv + GroupNorm + ReLU.

    x_ref    : (1, L + 2P, Cin)   flat-padded NHWC input (P = Wp + 1)
    w_ref    : (9, Cin, Cout)     conv taps, tap t = (dy+1)*3 + (dx+1)
    bias_ref : (1, Cout)          conv bias
    gamma_ref, beta_ref : (1, Cout)  GroupNorm affine
    grp_ref  : (Cout, Cout)       same-group indicator matrix
    mask_ref : (L, 1)             1.0 at real columns, 0.0 at W-pad columns
    o_ref    : (1, L + 2P, Cout)  flat-padded output (zero pads for stage 2)
    """
    P = Wp + 1
    Cout = w_ref.shape[2]

    # 3x3 conv as 9 shifted-window GEMMs on the MXU (f32 accumulation).
    acc = jnp.zeros((L, Cout), jnp.float32)
    for t in range(9):
        dy = t // 3 - 1
        dx = t % 3 - 1
        off = P + dy * Wp + dx                       # static python int
        win = x_ref[0, off:off + L, :]               # (L, Cin)
        acc = acc + jnp.dot(win, w_ref[t], preferred_element_type=jnp.float32)

    v = acc + bias_ref[...]                          # (L, Cout)

    # GroupNorm statistics over real spatial positions only (mask pads to 0).
    m = mask_ref[...]                                # (L, 1)
    vm = v * m
    s1 = jnp.sum(vm, axis=0, keepdims=True)          # (1, Cout)  sum
    s2 = jnp.sum(vm * vm, axis=0, keepdims=True)     # (1, Cout)  sum of squares
    mean_c = jnp.dot(s1, grp_ref[...], preferred_element_type=jnp.float32) / count
    ex2_c = jnp.dot(s2, grp_ref[...], preferred_element_type=jnp.float32) / count
    var_c = jnp.maximum(ex2_c - mean_c * mean_c, 0.0)
    inv_c = jax.lax.rsqrt(var_c + EPS)               # (1, Cout)

    y = (v - mean_c) * inv_c * gamma_ref[...] + beta_ref[...]
    y = jnp.maximum(y, 0.0) * m          # ReLU; zero W-pad columns for stage 2

    # Flat-padded output: zero strips + payload (all static slices).
    o_ref[0, 0:P, :] = jnp.zeros((P, Cout), o_ref.dtype)
    o_ref[0, P + L:P + L + P, :] = jnp.zeros((P, Cout), o_ref.dtype)
    o_ref[0, P:P + L, :] = y.astype(o_ref.dtype)


# ---------------------------------------------------------------------------
# Stage 2: Conv3x3(middle->out) + bias + ReLU with the channel concat fused
# via weight splitting:  conv(cat(x2, h)) == conv_Wa(x2) + conv_Wb(h).
# ---------------------------------------------------------------------------
def _concat_conv_relu_kernel(xa_ref, xb_ref, wa_ref, wb_ref, bias_ref, o_ref,
                             *, Wp, L):
    P = Wp + 1
    Cout = wa_ref.shape[2]
    acc = jnp.zeros((L, Cout), jnp.float32)
    for t in range(9):
        dy = t // 3 - 1
        dx = t % 3 - 1
        off = P + dy * Wp + dx
        acc = acc + jnp.dot(xa_ref[0, off:off + L, :], wa_ref[t],
                            preferred_element_type=jnp.float32)
        acc = acc + jnp.dot(xb_ref[0, off:off + L, :], wb_ref[t],
                            preferred_element_type=jnp.float32)
    y = jnp.maximum(acc + bias_ref[...], 0.0)
    o_ref[0] = y.astype(o_ref.dtype)


# ---------------------------------------------------------------------------
# Wrapper-side layout plumbing (pure data movement, no compute).
# ---------------------------------------------------------------------------
def _taps(w):
    """(Cout, Cin, 3, 3) PyTorch conv weight -> (9, Cin, Cout) tap matrices."""
    co, ci, kh, kw = w.shape
    return jnp.transpose(w, (2, 3, 1, 0)).reshape(kh * kw, ci, co).astype(jnp.float32)


def _to_flat_padded(x_nchw):
    """NCHW -> flat-padded NHWC (N, H*(W+2) + 2*(W+3), C): zero columns in W
    plus zero flat strips so every 3x3 tap is one contiguous window."""
    n, c, h, w = x_nchw.shape
    wp = w + 2
    p = wp + 1
    x = jnp.transpose(x_nchw, (0, 2, 3, 1))                # NHWC
    x = jnp.pad(x, ((0, 0), (0, 0), (1, 1), (0, 0)))       # zero W columns
    x = x.reshape(n, h * wp, c)
    x = jnp.pad(x, ((0, 0), (p, p), (0, 0)))               # zero flat strips
    return x


def decoder_forward(x1, x2, params):
    """Pallas implementation of Decoder.forward (NCHW in / NCHW out)."""
    w_up, b_up = params["w_up"], params["b_up"]
    gamma, beta = params["gamma"], params["beta"]
    w2, b2 = params["w2"], params["b2"]

    n, cin, h, w = x1.shape
    c1 = w_up.shape[0]                    # out_channels of up_conv
    c2 = x2.shape[1]                      # skip-connection channels
    cmid, cout = w2.shape[1], w2.shape[0]
    assert cmid == c1 + c2, "middle_channels must equal C(x2) + out_channels"
    assert c1 % GROUPS == 0, "GroupNorm requires out_channels % 24 == 0"
    hu, wu = 2 * h, 2 * w
    assert x2.shape[2] == hu and x2.shape[3] == wu
    wp = wu + 2
    p = wp + 1
    L = hu * wp
    ltot = L + 2 * p
    cpg = c1 // GROUPS
    dtype = x1.dtype

    # TODO(synk): nearest 2x upsample is wrapper-side index duplication (pure
    # data movement); it could be folded into the stage-1 kernel/index_map to
    # save one HBM pass over the upsampled activation.
    x1u = jnp.repeat(jnp.repeat(x1, 2, axis=2), 2, axis=3)   # (N, Cin, Hu, Wu)
    x1u_p = _to_flat_padded(x1u)                             # (N, Ltot, Cin)
    x2_p = _to_flat_padded(x2)                               # (N, Ltot, C2)

    w1_t = _taps(w_up)                                       # (9, Cin, C1)
    w2a_t = _taps(w2[:, :c2])                                # (9, C2, Cout)
    w2b_t = _taps(w2[:, c2:])                                # (9, C1, Cout)
    b1_r = b_up.reshape(1, c1).astype(jnp.float32)
    b2_r = b2.reshape(1, cout).astype(jnp.float32)
    gamma_r = gamma.reshape(1, c1).astype(jnp.float32)
    beta_r = beta.reshape(1, c1).astype(jnp.float32)

    gid = jnp.arange(c1, dtype=jnp.int32) // cpg
    grp_mat = (gid[:, None] == gid[None, :]).astype(jnp.float32)   # (C1, C1)

    col = jnp.arange(L, dtype=jnp.int32) % wp
    colmask = ((col != 0) & (col != wp - 1)).astype(jnp.float32).reshape(L, 1)
    count = float(hu * wu * cpg)          # true element count per (n, group)

    # VMEM budget: one sample's flat-padded slabs + double buffering; fits the
    # 48 MiB limit comfortably on v5e/v6e (128 MiB) and v7x (64 MiB) for
    # typical decoder shapes.  Batch axis is "parallel" -> megacore on v7x.
    compiler_params = pltpu.CompilerParams(
        dimension_semantics=("parallel",),
        vmem_limit_bytes=48 * 1024 * 1024,
    )

    stage1 = pl.pallas_call(
        functools.partial(_upconv_gn_relu_kernel, Wp=wp, L=L, count=count),
        out_shape=jax.ShapeDtypeStruct((n, ltot, c1), dtype),
        grid=(n,),
        in_specs=[
            pl.BlockSpec((1, ltot, cin), lambda i: (i, 0, 0)),     # x1 upsampled
            pl.BlockSpec((9, cin, c1), lambda i: (0, 0, 0)),       # conv taps
            pl.BlockSpec((1, c1), lambda i: (0, 0)),               # bias
            pl.BlockSpec((1, c1), lambda i: (0, 0)),               # gamma
            pl.BlockSpec((1, c1), lambda i: (0, 0)),               # beta
            pl.BlockSpec((c1, c1), lambda i: (0, 0)),              # group matrix
            pl.BlockSpec((L, 1), lambda i: (0, 0)),                # column mask
        ],
        out_specs=pl.BlockSpec((1, ltot, c1), lambda i: (i, 0, 0)),
        compiler_params=compiler_params,
    )
    h1_p = stage1(x1u_p, w1_t, b1_r, gamma_r, beta_r, grp_mat, colmask)

    stage2 = pl.pallas_call(
        functools.partial(_concat_conv_relu_kernel, Wp=wp, L=L),
        out_shape=jax.ShapeDtypeStruct((n, L, cout), dtype),
        grid=(n,),
        in_specs=[
            pl.BlockSpec((1, ltot, c2), lambda i: (i, 0, 0)),      # x2 (skip)
            pl.BlockSpec((1, ltot, c1), lambda i: (i, 0, 0)),      # stage-1 out
            pl.BlockSpec((9, c2, cout), lambda i: (0, 0, 0)),      # W2[:, :C2]
            pl.BlockSpec((9, c1, cout), lambda i: (0, 0, 0)),      # W2[:, C2:]
            pl.BlockSpec((1, cout), lambda i: (0, 0)),             # bias
        ],
        out_specs=pl.BlockSpec((1, L, cout), lambda i: (i, 0, 0)),
        compiler_params=compiler_params,
    )
    out_flat = stage2(x2_p, h1_p, w2a_t, w2b_t, b2_r)

    # flat-padded NHWC -> NCHW, dropping the W padding columns.
    out = out_flat.reshape(n, hu, wp, cout)[:, :, 1:wu + 1, :]
    return jnp.transpose(out, (0, 3, 1, 2))


# ---------------------------------------------------------------------------
# Pure-JAX reference mirroring the PyTorch forward pass.
# ---------------------------------------------------------------------------
def decoder_reference(x1, x2, params):
    def conv3x3(x, w, b):
        y = jax.lax.conv_general_dilated(
            x, w, window_strides=(1, 1), padding="SAME",
            dimension_numbers=("NCHW", "OIHW", "NCHW"))
        return y + b[None, :, None, None]

    x1u = jnp.repeat(jnp.repeat(x1, 2, axis=2), 2, axis=3)       # nearest 2x
    hcv = conv3x3(x1u, params["w_up"], params["b_up"])
    n, c, hh, ww = hcv.shape
    hg = hcv.reshape(n, GROUPS, c // GROUPS, hh, ww)
    mu = hg.mean(axis=(2, 3, 4), keepdims=True)
    var = hg.var(axis=(2, 3, 4), keepdims=True)
    hn = ((hg - mu) / jnp.sqrt(var + EPS)).reshape(n, c, hh, ww)
    hn = hn * params["gamma"][None, :, None, None] + params["beta"][None, :, None, None]
    hrl = jnp.maximum(hn, 0.0)
    cat = jnp.concatenate([x2, hrl], axis=1)
    return jnp.maximum(conv3x3(cat, params["w2"], params["b2"]), 0.0)


if __name__ == "__main__":
    key = jax.random.PRNGKey(0)
    ks = jax.random.split(key, 8)

    # Decoder(in_channels=8, middle_channels=32, out_channels=24); groups=24
    # (out_channels must be divisible by 24 for the module's GroupNorm).
    N, CIN, H, W = 2, 8, 8, 8
    COUT = 24
    C2 = 8
    CMID = C2 + COUT

    x1 = jax.random.normal(ks[0], (N, CIN, H, W), dtype=jnp.float32)
    x2 = jax.random.normal(ks[1], (N, C2, 2 * H, 2 * W), dtype=jnp.float32)

    params = dict(
        w_up=jax.random.normal(ks[2], (COUT, CIN, 3, 3), jnp.float32) * 0.1,
        b_up=jax.random.normal(ks[3], (COUT,), jnp.float32) * 0.1,
        gamma=1.0 + 0.1 * jax.random.normal(ks[4], (COUT,), jnp.float32),
        beta=0.1 * jax.random.normal(ks[5], (COUT,), jnp.float32),
        w2=jax.random.normal(ks[6], (COUT, CMID, 3, 3), jnp.float32) * 0.1,
        b2=jax.random.normal(ks[7], (COUT,), jnp.float32) * 0.1,
    )

    out = decoder_forward(x1, x2, params)
    out = jax.block_until_ready(out)

    ref = decoder_reference(x1, x2, params)
    assert out.shape == (N, COUT, 2 * H, 2 * W), out.shape
    max_err = float(jnp.max(jnp.abs(out - ref)))
    assert jnp.allclose(out, ref, atol=1e-3, rtol=1e-3), f"mismatch, max_err={max_err}"

    print("KERNEL_OK")
</pallas_src>

<mosaic_0001>
module attributes {stable_mosaic.version = 11 : i64} {
  func.func @_upconv_gn_relu_kernel(%arg0: i32, %arg1: memref<1x326x8xf32, #tpu.memory_space<vmem>>, %arg2: memref<9x8x24xf32, #tpu.memory_space<vmem>>, %arg3: memref<1x24xf32, #tpu.memory_space<vmem>>, %arg4: memref<1x24xf32, #tpu.memory_space<vmem>>, %arg5: memref<1x24xf32, #tpu.memory_space<vmem>>, %arg6: memref<24x24xf32, #tpu.memory_space<vmem>>, %arg7: memref<288x1xf32, #tpu.memory_space<vmem>>, %arg8: memref<1x326x24xf32, #tpu.memory_space<vmem>>) attributes {dimension_semantics = [#tpu.dimension_semantics<parallel>], iteration_bounds = array<i64: 2>, scalar_prefetch = 0 : i64, scratch_operands = 0 : i64, tpu.core_type = #tpu.core_type<tc>, window_params = [{transform_indices = @transform_0, window_bounds = array<i64: 1, 326, 8>}, {pipeline_mode = #tpu.pipeline_mode<synchronous>, transform_indices = @transform_1, window_bounds = array<i64: 9, 8, 24>}, {pipeline_mode = #tpu.pipeline_mode<synchronous>, transform_indices = @transform_2, window_bounds = array<i64: 1, 24>}, {pipeline_mode = #tpu.pipeline_mode<synchronous>, transform_indices = @transform_3, window_bounds = array<i64: 1, 24>}, {pipeline_mode = #tpu.pipeline_mode<synchronous>, transform_indices = @transform_4, window_bounds = array<i64: 1, 24>}, {pipeline_mode = #tpu.pipeline_mode<synchronous>, transform_indices = @transform_5, window_bounds = array<i64: 24, 24>}, {pipeline_mode = #tpu.pipeline_mode<synchronous>, transform_indices = @transform_6, window_bounds = array<i64: 288, 1>}, {transform_indices = @transform_7, window_bounds = array<i64: 1, 326, 24>}]} {
    %cst = arith.constant 0.000000e+00 : f32
    %0 = vector.broadcast %cst : f32 to vector<288x24xf32>
    %c0 = arith.constant 0 : index
    %c0_0 = arith.constant 0 : index
    %c0_1 = arith.constant 0 : index
    %1 = vector.load %arg1[%c0, %c0_0, %c0_1] : memref<1x326x8xf32, #tpu.memory_space<vmem>>, vector<1x288x8xf32>
    %2 = vector.shape_cast %1 : vector<1x288x8xf32> to vector<288x8xf32>
    %c0_2 = arith.constant 0 : index
    %c0_3 = arith.constant 0 : index
    %c0_4 = arith.constant 0 : index
    %3 = vector.load %arg2[%c0_2, %c0_3, %c0_4] : memref<9x8x24xf32, #tpu.memory_space<vmem>>, vector<1x8x24xf32>
    %4 = vector.shape_cast %3 : vector<1x8x24xf32> to vector<8x24xf32>
    %cst_5 = arith.constant dense<0.000000e+00> : vector<288x24xf32>
    %5 = tpu.matmul %2, %4, %cst_5 {dimension_numbers = #tpu.dot_dimension_numbers<[1], [0], [0], [1], [0, 0, 1, 1], [], []>} : vector<288x8xf32>, vector<8x24xf32>, vector<288x24xf32> -> vector<288x24xf32>
    %6 = arith.addf %0, %5 : vector<288x24xf32>
    %c0_6 = arith.constant 0 : index
    %c1 = arith.constant 1 : index
    %c0_7 = arith.constant 0 : index
    %7 = vector.load %arg1[%c0_6, %c1, %c0_7] : memref<1x326x8xf32, #tpu.memory_space<vmem>>, vector<1x288x8xf32>
    %8 = vector.shape_cast %7 : vector<1x288x8xf32> to vector<288x8xf32>
    %c1_8 = arith.constant 1 : index
    %c0_9 = arith.constant 0 : index
    %c0_10 = arith.constant 0 : index
    %9 = vector.load %arg2[%c1_8, %c0_9, %c0_10] : memref<9x8x24xf32, #tpu.memory_space<vmem>>, vector<1x8x24xf32>
    %10 = vector.shape_cast %9 : vector<1x8x24xf32> to vector<8x24xf32>
    %cst_11 = arith.constant dense<0.000000e+00> : vector<288x24xf32>
    %11 = tpu.matmul %8, %10, %cst_11 {dimension_numbers = #tpu.dot_dimension_numbers<[1], [0], [0], [1], [0, 0, 1, 1], [], []>} : vector<288x8xf32>, vector<8x24xf32>, vector<288x24xf32> -> vector<288x24xf32>
    %12 = arith.addf %6, %11 : vector<288x24xf32>
    %c0_12 = arith.constant 0 : index
    %c2 = arith.constant 2 : index
    %c0_13 = arith.constant 0 : index
    %13 = vector.load %arg1[%c0_12, %c2, %c0_13] : memref<1x326x8xf32, #tpu.memory_space<vmem>>, vector<1x288x8xf32>
    %14 = vector.shape_cast %13 : vector<1x288x8xf32> to vector<288x8xf32>
    %c2_14 = arith.constant 2 : index
    %c0_15 = arith.constant 0 : index
    %c0_16 = arith.constant 0 : index
    %15 = vector.load %arg2[%c2_14, %c0_15, %c0_16] : memref<9x8x24xf32, #tpu.memory_space<vmem>>, vector<1x8x24xf32>
    %16 = vector.shape_cast %15 : vector<1x8x24xf32> to vector<8x24xf32>
    %cst_17 = arith.constant dense<0.000000e+00> : vector<288x24xf32>
    %17 = tpu.matmul %14, %16, %cst_17 {dimension_numbers = #tpu.dot_dimension_numbers<[1], [0], [0], [1], [0, 0, 1, 1], [], []>} : vector<288x8xf32>, vector<8x24xf32>, vector<288x24xf32> -> vector<288x24xf32>
    %18 = arith.addf %12, %17 : vector<288x24xf32>
    %c0_18 = arith.constant 0 : index
    %c18 = arith.constant 18 : index
    %c0_19 = arith.constant 0 : index
    %19 = vector.load %arg1[%c0_18, %c18, %c0_19] : memref<1x326x8xf32, #tpu.memory_space<vmem>>, vector<1x288x8xf32>
    %20 = vector.shape_cast %19 : vector<1x288x8xf32> to vector<288x8xf32>
    %c3 = arith.constant 3 : index
    %c0_20 = arith.constant 0 : index
    %c0_21 = arith.constant 0 : index
    %21 = vector.load %arg2[%c3, %c0_20, %c0_21] : memref<9x8x24xf32, #tpu.memory_space<vmem>>, vector<1x8x24xf32>
    %22 = vector.shape_cast %21 : vector<1x8x24xf32> to vector<8x24xf32>
    %cst_22 = arith.constant dense<0.000000e+00> : vector<288x24xf32>
    %23 = tpu.matmul %20, %22, %cst_22 {dimension_numbers = #tpu.dot_dimension_numbers<[1], [0], [0], [1], [0, 0, 1, 1], [], []>} : vector<288x8xf32>, vector<8x24xf32>, vector<288x24xf32> -> vector<288x24xf32>
    %24 = arith.addf %18, %23 : vector<288x24xf32>
    %c0_23 = arith.constant 0 : index
    %c19 = arith.constant 19 : index
    %c0_24 = arith.constant 0 : index
    %25 = vector.load %arg1[%c0_23, %c19, %c0_24] : memref<1x326x8xf32, #tpu.memory_space<vmem>>, vector<1x288x8xf32>
    %26 = vector.shape_cast %25 : vector<1x288x8xf32> to vector<288x8xf32>
    %c4 = arith.constant 4 : index
    %c0_25 = arith.constant 0 : index
    %c0_26 = arith.constant 0 : index
    %27 = vector.load %arg2[%c4, %c0_25, %c0_26] : memref<9x8x24xf32, #tpu.memory_space<vmem>>, vector<1x8x24xf32>
    %28 = vector.shape_cast %27 : vector<1x8x24xf32> to vector<8x24xf32>
    %cst_27 = arith.constant dense<0.000000e+00> : vector<288x24xf32>
    %29 = tpu.matmul %26, %28, %cst_27 {dimension_numbers = #tpu.dot_dimension_numbers<[1], [0], [0], [1], [0, 0, 1, 1], [], []>} : vector<288x8xf32>, vector<8x24xf32>, vector<288x24xf32> -> vector<288x24xf32>
    %30 = arith.addf %24, %29 : vector<288x24xf32>
    %c0_28 = arith.constant 0 : index
    %c20 = arith.constant 20 : index
    %c0_29 = arith.constant 0 : index
    %31 = vector.load %arg1[%c0_28, %c20, %c0_29] : memref<1x326x8xf32, #tpu.memory_space<vmem>>, vector<1x288x8xf32>
    %32 = vector.shape_cast %31 : vector<1x288x8xf32> to vector<288x8xf32>
    %c5 = arith.constant 5 : index
    %c0_30 = arith.constant 0 : index
    %c0_31 = arith.constant 0 : index
    %33 = vector.load %arg2[%c5, %c0_30, %c0_31] : memref<9x8x24xf32, #tpu.memory_space<vmem>>, vector<1x8x24xf32>
    %34 = vector.shape_cast %33 : vector<1x8x24xf32> to vector<8x24xf32>
    %cst_32 = arith.constant dense<0.000000e+00> : vector<288x24xf32>
    %35 = tpu.matmul %32, %34, %cst_32 {dimension_numbers = #tpu.dot_dimension_numbers<[1], [0], [0], [1], [0, 0, 1, 1], [], []>} : vector<288x8xf32>, vector<8x24xf32>, vector<288x24xf32> -> vector<288x24xf32>
    %36 = arith.addf %30, %35 : vector<288x24xf32>
    %c0_33 = arith.constant 0 : index
    %c36 = arith.constant 36 : index
    %c0_34 = arith.constant 0 : index
    %37 = vector.load %arg1[%c0_33, %c36, %c0_34] : memref<1x326x8xf32, #tpu.memory_space<vmem>>, vector<1x288x8xf32>
    %38 = vector.shape_cast %37 : vector<1x288x8xf32> to vector<288x8xf32>
    %c6 = arith.constant 6 : index
    %c0_35 = arith.constant 0 : index
    %c0_36 = arith.constant 0 : index
    %39 = vector.load %arg2[%c6, %c0_35, %c0_36] : memref<9x8x24xf32, #tpu.memory_space<vmem>>, vector<1x8x24xf32>
    %40 = vector.shape_cast %39 : vector<1x8x24xf32> to vector<8x24xf32>
    %cst_37 = arith.constant dense<0.000000e+00> : vector<288x24xf32>
    %41 = tpu.matmul %38, %40, %cst_37 {dimension_numbers = #tpu.dot_dimension_numbers<[1], [0], [0], [1], [0, 0, 1, 1], [], []>} : vector<288x8xf32>, vector<8x24xf32>, vector<288x24xf32> -> vector<288x24xf32>
    %42 = arith.addf %36, %41 : vector<288x24xf32>
    %c0_38 = arith.constant 0 : index
    %c37 = arith.constant 37 : index
    %c0_39 = arith.constant 0 : index
    %43 = vector.load %arg1[%c0_38, %c37, %c0_39] : memref<1x326x8xf32, #tpu.memory_space<vmem>>, vector<1x288x8xf32>
    %44 = vector.shape_cast %43 : vector<1x288x8xf32> to vector<288x8xf32>
    %c7 = arith.constant 7 : index
    %c0_40 = arith.constant 0 : index
    %c0_41 = arith.constant 0 : index
    %45 = vector.load %arg2[%c7, %c0_40, %c0_41] : memref<9x8x24xf32, #tpu.memory_space<vmem>>, vector<1x8x24xf32>
    %46 = vector.shape_cast %45 : vector<1x8x24xf32> to vector<8x24xf32>
    %cst_42 = arith.constant dense<0.000000e+00> : vector<288x24xf32>
    %47 = tpu.matmul %44, %46, %cst_42 {dimension_numbers = #tpu.dot_dimension_numbers<[1], [0], [0], [1], [0, 0, 1, 1], [], []>} : vector<288x8xf32>, vector<8x24xf32>, vector<288x24xf32> -> vector<288x24xf32>
    %48 = arith.addf %42, %47 : vector<288x24xf32>
    %c0_43 = arith.constant 0 : index
    %c38 = arith.constant 38 : index
    %c0_44 = arith.constant 0 : index
    %49 = vector.load %arg1[%c0_43, %c38, %c0_44] : memref<1x326x8xf32, #tpu.memory_space<vmem>>, vector<1x288x8xf32>
    %50 = vector.shape_cast %49 : vector<1x288x8xf32> to vector<288x8xf32>
    %c8 = arith.constant 8 : index
    %c0_45 = arith.constant 0 : index
    %c0_46 = arith.constant 0 : index
    %51 = vector.load %arg2[%c8, %c0_45, %c0_46] : memref<9x8x24xf32, #tpu.memory_space<vmem>>, vector<1x8x24xf32>
    %52 = vector.shape_cast %51 : vector<1x8x24xf32> to vector<8x24xf32>
    %cst_47 = arith.constant dense<0.000000e+00> : vector<288x24xf32>
    %53 = tpu.matmul %50, %52, %cst_47 {dimension_numbers = #tpu.dot_dimension_numbers<[1], [0], [0], [1], [0, 0, 1, 1], [], []>} : vector<288x8xf32>, vector<8x24xf32>, vector<288x24xf32> -> vector<288x24xf32>
    %54 = arith.addf %48, %53 : vector<288x24xf32>
    %c0_48 = arith.constant 0 : index
    %c0_49 = arith.constant 0 : index
    %55 = vector.load %arg3[%c0_48, %c0_49] : memref<1x24xf32, #tpu.memory_space<vmem>>, vector<1x24xf32>
    %56 = vector.broadcast %55 : vector<1x24xf32> to vector<288x24xf32>
    %57 = arith.addf %54, %56 : vector<288x24xf32>
    %c0_50 = arith.constant 0 : index
    %c0_51 = arith.constant 0 : index
    %58 = vector.load %arg7[%c0_50, %c0_51] : memref<288x1xf32, #tpu.memory_space<vmem>>, vector<288x1xf32>
    %59 = vector.broadcast %58 : vector<288x1xf32> to vector<288x24xf32>
    %60 = arith.mulf %57, %59 : vector<288x24xf32>
    %cst_52 = arith.constant dense<0.000000e+00> : vector<24xf32>
    %61 = vector.multi_reduction <add>, %60, %cst_52 [0] : vector<288x24xf32> to vector<24xf32>
    %62 = vector.shape_cast %61 : vector<24xf32> to vector<1x24xf32>
    %63 = arith.mulf %60, %60 : vector<288x24xf32>
    %cst_53 = arith.constant dense<0.000000e+00> : vector<24xf32>
    %64 = vector.multi_reduction <add>, %63, %cst_53 [0] : vector<288x24xf32> to vector<24xf32>
    %65 = vector.shape_cast %64 : vector<24xf32> to vector<1x24xf32>
    %c0_54 = arith.constant 0 : index
    %c0_55 = arith.constant 0 : index
    %66 = vector.load %arg6[%c0_54, %c0_55] : memref<24x24xf32, #tpu.memory_space<vmem>>, vector<24x24xf32>
    %cst_56 = arith.constant dense<0.000000e+00> : vector<1x24xf32>
    %67 = tpu.matmul %62, %66, %cst_56 {dimension_numbers = #tpu.dot_dimension_numbers<[1], [0], [0], [1], [0, 0, 1, 1], [], []>} : vector<1x24xf32>, vector<24x24xf32>, vector<1x24xf32> -> vector<1x24xf32>
    %cst_57 = arith.constant 2.560000e+02 : f32
    %68 = vector.broadcast %cst_57 : f32 to vector<1x24xf32>
    %69 = arith.divf %67, %68 : vector<1x24xf32>
    %c0_58 = arith.constant 0 : index
    %c0_59 = arith.constant 0 : index
    %70 = vector.load %arg6[%c0_58, %c0_59] : memref<24x24xf32, #tpu.memory_space<vmem>>, vector<24x24xf32>
    %cst_60 = arith.constant dense<0.000000e+00> : vector<1x24xf32>
    %71 = tpu.matmul %65, %70, %cst_60 {dimension_numbers = #tpu.dot_dimension_numbers<[1], [0], [0], [1], [0, 0, 1, 1], [], []>} : vector<1x24xf32>, vector<24x24xf32>, vector<1x24xf32> -> vector<1x24xf32>
    %cst_61 = arith.constant 2.560000e+02 : f32
    %72 = vector.broadcast %cst_61 : f32 to vector<1x24xf32>
    %73 = arith.divf %71, %72 : vector<1x24xf32>
    %74 = arith.mulf %69, %69 : vector<1x24xf32>
    %75 = arith.subf %73, %74 : vector<1x24xf32>
    %cst_62 = arith.constant 0.000000e+00 : f32
    %76 = vector.broadcast %cst_62 : f32 to vector<1x24xf32>
    %77 = arith.maximumf %75, %76 : vector<1x24xf32>
    %cst_63 = arith.constant 9.99999974E-6 : f32
    %78 = vector.broadcast %cst_63 : f32 to vector<1x24xf32>
    %79 = arith.addf %77, %78 : vector<1x24xf32>
    %80 = math.rsqrt %79 : vector<1x24xf32>
    %81 = vector.broadcast %69 : vector<1x24xf32> to vector<288x24xf32>
    %82 = arith.subf %57, %81 : vector<288x24xf32>
    %83 = vector.broadcast %80 : vector<1x24xf32> to vector<288x24xf32>
    %84 = arith.mulf %82, %83 : vector<288x24xf32>
    %c0_64 = arith.constant 0 : index
    %c0_65 = arith.constant 0 : index
    %85 = vector.load %arg4[%c0_64, %c0_65] : memref<1x24xf32, #tpu.memory_space<vmem>>, vector<1x24xf32>
    %86 = vector.broadcast %85 : vector<1x24xf32> to vector<288x24xf32>
    %87 = arith.mulf %84, %86 : vector<288x24xf32>
    %c0_66 = arith.constant 0 : index
    %c0_67 = arith.constant 0 : index
    %88 = vector.load %arg5[%c0_66, %c0_67] : memref<1x24xf32, #tpu.memory_space<vmem>>, vector<1x24xf32>
    %89 = vector.broadcast %88 : vector<1x24xf32> to vector<288x24xf32>
    %90 = arith.addf %87, %89 : vector<288x24xf32>
    %cst_68 = arith.constant 0.000000e+00 : f32
    %91 = vector.broadcast %cst_68 : f32 to vector<288x24xf32>
    %92 = arith.maximumf %90, %91 : vector<288x24xf32>
    %93 = vector.broadcast %58 : vector<288x1xf32> to vector<288x24xf32>
    %94 = arith.mulf %92, %93 : vector<288x24xf32>
    %cst_69 = arith.constant 0.000000e+00 : f32
    %95 = vector.broadcast %cst_69 : f32 to vector<19x24xf32>
    %c0_70 = arith.constant 0 : index
    %c0_71 = arith.constant 0 : index
    %c0_72 = arith.constant 0 : index
    %96 = vector.load %arg8[%c0_70, %c0_71, %c0_72] : memref<1x326x24xf32, #tpu.memory_space<vmem>>, vector<1x19x24xf32>
    %97 = vector.shape_cast %96 : vector<1x19x24xf32> to vector<19x24xf32>
    %98 = vector.shape_cast %95 : vector<19x24xf32> to vector<1x19x24xf32>
    tpu.vector_store %arg8[%c0_70, %c0_71, %c0_72], %98 {strides = array<i32>} : memref<1x326x24xf32, #tpu.memory_space<vmem>>, vector<1x19x24xf32>,
    %cst_73 = arith.constant 0.000000e+00 : f32
    %99 = vector.broadcast %cst_73 : f32 to vector<19x24xf32>
    %c0_74 = arith.constant 0 : index
    %c307 = arith.constant 307 : index
    %c0_75 = arith.constant 0 : index
    %100 = vector.load %arg8[%c0_74, %c307, %c0_75] : memref<1x326x24xf32, #tpu.memory_space<vmem>>, vector<1x19x24xf32>
    %101 = vector.shape_cast %100 : vector<1x19x24xf32> to vector<19x24xf32>
    %102 = vector.shape_cast %99 : vector<19x24xf32> to vector<1x19x24xf32>
    tpu.vector_store %arg8[%c0_74, %c307, %c0_75], %102 {strides = array<i32>} : memref<1x326x24xf32, #tpu.memory_space<vmem>>, vector<1x19x24xf32>,
    %c0_76 = arith.constant 0 : index
    %c19_77 = arith.constant 19 : index
    %c0_78 = arith.constant 0 : index
    %103 = vector.load %arg8[%c0_76, %c19_77, %c0_78] : memref<1x326x24xf32, #tpu.memory_space<vmem>>, vector<1x288x24xf32>
    %104 = vector.shape_cast %103 : vector<1x288x24xf32> to vector<288x24xf32>
    %105 = vector.shape_cast %94 : vector<288x24xf32> to vector<1x288x24xf32>
    tpu.vector_store %arg8[%c0_76, %c19_77, %c0_78], %105 {strides = array<i32>} : memref<1x326x24xf32, #tpu.memory_space<vmem>>, vector<1x288x24xf32>,
    return
  }
  func.func @transform_0(%arg0: i32) -> (i32, i32, i32) {
    %c0_i32 = arith.constant 0 : i32
    %c0_i32_0 = arith.constant 0 : i32
    %c0_i32_1 = arith.constant 0 : i32
    return %arg0, %c0_i32, %c0_i32_0 : i32, i32, i32
  }
  func.func @transform_1(%arg0: i32) -> (i32, i32, i32) {
    %c0_i32 = arith.constant 0 : i32
    %c0_i32_0 = arith.constant 0 : i32
    %c0_i32_1 = arith.constant 0 : i32
    %c0_i32_2 = arith.constant 0 : i32
    return %c0_i32, %c0_i32_0, %c0_i32_1 : i32, i32, i32
  }
  func.func @transform_2(%arg0: i32) -> (i32, i32) {
    %c0_i32 = arith.constant 0 : i32
    %c0_i32_0 = arith.constant 0 : i32
    %c0_i32_1 = arith.constant 0 : i32
    return %c0_i32, %c0_i32_0 : i32, i32
  }
  func.func @transform_3(%arg0: i32) -> (i32, i32) {
    %c0_i32 = arith.constant 0 : i32
    %c0_i32_0 = arith.constant 0 : i32
    %c0_i32_1 = arith.constant 0 : i32
    return %c0_i32, %c0_i32_0 : i32, i32
  }
  func.func @transform_4(%arg0: i32) -> (i32, i32) {
    %c0_i32 = arith.constant 0 : i32
    %c0_i32_0 = arith.constant 0 : i32
    %c0_i32_1 = arith.constant 0 : i32
    return %c0_i32, %c0_i32_0 : i32, i32
  }
  func.func @transform_5(%arg0: i32) -> (i32, i32) {
    %c0_i32 = arith.constant 0 : i32
    %c0_i32_0 = arith.constant 0 : i32
    %c0_i32_1 = arith.constant 0 : i32
    return %c0_i32, %c0_i32_0 : i32, i32
  }
  func.func @transform_6(%arg0: i32) -> (i32, i32) {
    %c0_i32 = arith.constant 0 : i32
    %c0_i32_0 = arith.constant 0 : i32
    %c0_i32_1 = arith.constant 0 : i32
    return %c0_i32, %c0_i32_0 : i32, i32
  }
  func.func @transform_7(%arg0: i32) -> (i32, i32, i32) {
    %c0_i32 = arith.constant 0 : i32
    %c0_i32_0 = arith.constant 0 : i32
    %c0_i32_1 = arith.constant 0 : i32
    return %arg0, %c0_i32, %c0_i32_0 : i32, i32, i32
  }
}

</mosaic_0001>

<llo_original>
// kernel: tpu_custom_call.1
$region0: #{tpu_custom_call.1}
  #allocation0 [shape = 'u32[]', space=smem, size = 0x4, offset = 0x4, fixed_abs, tag = 'smem constant byte address 0x4 - core index']
  #allocation1 [shape = 'u32[72,128]{1,0:T(1,128)}', space=vmem, size = 0x9000, scoped, tag = 'internal scratch']
  %s0 = inlined_call_operand.vmem [shape: f32[2,326,8], index: 0, kind: input, shape index: {}]
  %s1 = inlined_call_operand.vmem [shape: f32[9,8,24], index: 1, kind: input, shape index: {}]
  %s2 = inlined_call_operand.vmem [shape: f32[1,24], index: 2, kind: input, shape index: {}]
  %s3 = inlined_call_operand.vmem [shape: f32[1,24], index: 3, kind: input, shape index: {}]
  %s4 = inlined_call_operand.vmem [shape: f32[1,24], index: 4, kind: input, shape index: {}]
  %s5 = inlined_call_operand.vmem [shape: f32[24,24], index: 5, kind: input, shape index: {}]
  %s6 = inlined_call_operand.vmem [shape: f32[288,1], index: 6, kind: input, shape index: {}]
  %s7 = inlined_call_operand.vmem [shape: f32[2,326,24], index: 7, kind: output, shape index: {}]
  %s8 = sld [smem:[#allocation0]]
  $region61: #{tpu_custom_call.1} parent=0
    _
  %s10 = ssub.s32 1, %s8
  %s11 = scalar_select 0, %s10, %s8
  loop: start=0, step=1, limit=4
  $region2: #{tpu_custom_call.1} parent=0 // loop_pre_header
    _
  $region3: #{tpu_custom_call.1} parent=0 // loop_header
    %s13 = sphi 0, %s17
    %p14 = scmp.ge.s32.totalorder %s13, 4
    %s23 = sphi 0, %s25
    %s26 = sphi 0, %s23
    %s27 = sphi 0, %s26
    %s43 = sphi 0, %s27
    %s47 = sphi 0, %s47
    %s49 = sphi 0, %s47
    %s50 = sphi 0, %s49
    %s64 = sphi 0, %s50
    %s68 = sphi 0, %s68
    %s70 = sphi 0, %s68
    %s71 = sphi 0, %s70
    %s85 = sphi 0, %s71
    %s89 = sphi 0, %s89
    %s91 = sphi 0, %s89
    %s92 = sphi 0, %s91
    %s106 = sphi 0, %s92
    %s110 = sphi 0, %s110
    %s112 = sphi 0, %s110
    %s113 = sphi 0, %s112
    %s127 = sphi 0, %s113
    %s131 = sphi 0, %s131
    %s133 = sphi 0, %s131
    %s134 = sphi 0, %s133
    %s148 = sphi 0, %s134
    %s152 = sphi 0, %s152
    %s154 = sphi 0, %s152
    %s155 = sphi 0, %s154
    %s169 = sphi 0, %s155
    %s175 = sphi 0, %s177
    %s178 = sphi 0, %s175
    %s179 = sphi 0, %s178
    %s195 = sphi 0, %s179
  $region4: #{tpu_custom_call.1} parent=0 // loop_header_branch
    %16 = sbr.rel (%p14) target = $region8
  $region5: #{tpu_custom_call.1} parent=0 // loop_body
    %s18 = ssub.s32 %s13, 1
    %s19 = ssub.s32 %s13, 2
    %s20 = sadd.s32 %s13, 1
    %s21 = ssub.s32 %s13, %s20
    %p22 = scmp.eq.s32.totalorder %s21, 0
    %s24 = sadd.s32 %s23, 1
    %s25 = scalar_select %p22, %s23, %s24
    %p28 = pneg %p22
    %p29 = scmp.eq.s32.totalorder %s13, 1
    %p30 = por %p28, %p29
    %p31 = scmp.ne.s32.totalorder %s23, %s26
    %p32 = scmp.eq.s32.totalorder %s13, 0
    %p33 = por %p31, %p32
    %p34 = scmp.ne.s32.totalorder %s23, %s26
    %p35 = scmp.eq.s32.totalorder %s18, 1
    %p36 = por %p34, %p35
    %p37 = scmp.ne.s32.totalorder %s26, %s27
    %p38 = scmp.eq.s32.totalorder %s18, 0
    %p39 = por %p37, %p38
    %p40 = scmp.ne.s32.totalorder %s26, %s27
    %p41 = scmp.eq.s32.totalorder %s19, 1
    %p42 = por %p40, %p41
    %p44 = scmp.ne.s32.totalorder %s27, %s43
    %p45 = scmp.eq.s32.totalorder %s19, 0
    %p46 = por %p44, %p45
    %s48 = sadd.s32 %s47, 1
    %p51 = scmp.eq.s32.totalorder %s13, 1
    %p52 = scmp.ne.s32.totalorder %s47, %s49
    %p53 = scmp.eq.s32.totalorder %s13, 0
    %p54 = por %p52, %p53
    %p55 = scmp.ne.s32.totalorder %s47, %s49
    %p56 = scmp.eq.s32.totalorder %s18, 1
    %p57 = por %p55, %p56
    %p58 = scmp.ne.s32.totalorder %s49, %s50
    %p59 = scmp.eq.s32.totalorder %s18, 0
    %p60 = por %p58, %p59
    %p61 = scmp.ne.s32.totalorder %s49, %s50
    %p62 = scmp.eq.s32.totalorder %s19, 1
    %p63 = por %p61, %p62
    %p65 = scmp.ne.s32.totalorder %s50, %s64
    %p66 = scmp.eq.s32.totalorder %s19, 0
    %p67 = por %p65, %p66
    %s69 = sadd.s32 %s68, 1
    %p72 = scmp.eq.s32.totalorder %s13, 1
    %p73 = scmp.ne.s32.totalorder %s68, %s70
    %p74 = scmp.eq.s32.totalorder %s13, 0
    %p75 = por %p73, %p74
    %p76 = scmp.ne.s32.totalorder %s68, %s70
    %p77 = scmp.eq.s32.totalorder %s18, 1
    %p78 = por %p76, %p77
    %p79 = scmp.ne.s32.totalorder %s70, %s71
    %p80 = scmp.eq.s32.totalorder %s18, 0
    %p81 = por %p79, %p80
    %p82 = scmp.ne.s32.totalorder %s70, %s71
    %p83 = scmp.eq.s32.totalorder %s19, 1
    %p84 = por %p82, %p83
    %p86 = scmp.ne.s32.totalorder %s71, %s85
    %p87 = scmp.eq.s32.totalorder %s19, 0
    %p88 = por %p86, %p87
    %s90 = sadd.s32 %s89, 1
    %p93 = scmp.eq.s32.totalorder %s13, 1
    %p94 = scmp.ne.s32.totalorder %s89, %s91
    %p95 = scmp.eq.s32.totalorder %s13, 0
    %p96 = por %p94, %p95
    %p97 = scmp.ne.s32.totalorder %s89, %s91
    %p98 = scmp.eq.s32.totalorder %s18, 1
    %p99 = por %p97, %p98
    %p100 = scmp.ne.s32.totalorder %s91, %s92
    %p101 = scmp.eq.s32.totalorder %s18, 0
    %p102 = por %p100, %p101
    %p103 = scmp.ne.s32.totalorder %s91, %s92
    %p104 = scmp.eq.s32.totalorder %s19, 1
    %p105 = por %p103, %p104
    %p107 = scmp.ne.s32.totalorder %s92, %s106
    %p108 = scmp.eq.s32.totalorder %s19, 0
    %p109 = por %p107, %p108
    %s111 = sadd.s32 %s110, 1
    %p114 = scmp.eq.s32.totalorder %s13, 1
    %p115 = scmp.ne.s32.totalorder %s110, %s112
    %p116 = scmp.eq.s32.totalorder %s13, 0
    %p117 = por %p115, %p116
    %p118 = scmp.ne.s32.totalorder %s110, %s112
    %p119 = scmp.eq.s32.totalorder %s18, 1
    %p120 = por %p118, %p119
    %p121 = scmp.ne.s32.totalorder %s112, %s113
    %p122 = scmp.eq.s32.totalorder %s18, 0
    %p123 = por %p121, %p122
    %p124 = scmp.ne.s32.totalorder %s112, %s113
    %p125 = scmp.eq.s32.totalorder %s19, 1
    %p126 = por %p124, %p125
    %p128 = scmp.ne.s32.totalorder %s113, %s127
    %p129 = scmp.eq.s32.totalorder %s19, 0
    %p130 = por %p128, %p129
    %s132 = sadd.s32 %s131, 1
    %p135 = scmp.eq.s32.totalorder %s13, 1
    %p136 = scmp.ne.s32.totalorder %s131, %s133
    %p137 = scmp.eq.s32.totalorder %s13, 0
    %p138 = por %p136, %p137
    %p139 = scmp.ne.s32.totalorder %s131, %s133
    %p140 = scmp.eq.s32.totalorder %s18, 1
    %p141 = por %p139, %p140
    %p142 = scmp.ne.s32.totalorder %s133, %s134
    %p143 = scmp.eq.s32.totalorder %s18, 0
    %p144 = por %p142, %p143
    %p145 = scmp.ne.s32.totalorder %s133, %s134
    %p146 = scmp.eq.s32.totalorder %s19, 1
    %p147 = por %p145, %p146
    %p149 = scmp.ne.s32.totalorder %s134, %s148
    %p150 = scmp.eq.s32.totalorder %s19, 0
    %p151 = por %p149, %p150
    %s153 = sadd.s32 %s152, 1
    %p156 = scmp.eq.s32.totalorder %s13, 1
    %p157 = scmp.ne.s32.totalorder %s152, %s154
    %p158 = scmp.eq.s32.totalorder %s13, 0
    %p159 = por %p157, %p158
    %p160 = scmp.ne.s32.totalorder %s152, %s154
    %p161 = scmp.eq.s32.totalorder %s18, 1
    %p162 = por %p160, %p161
    %p163 = scmp.ne.s32.totalorder %s154, %s155
    %p164 = scmp.eq.s32.totalorder %s18, 0
    %p165 = por %p163, %p164
    %p166 = scmp.ne.s32.totalorder %s154, %s155
    %p167 = scmp.eq.s32.totalorder %s19, 1
    %p168 = por %p166, %p167
    %p170 = scmp.ne.s32.totalorder %s155, %s169
    %p171 = scmp.eq.s32.totalorder %s19, 0
    %p172 = por %p170, %p171
    %s173 = ssub.s32 %s13, %s20
    %p174 = scmp.eq.s32.totalorder %s173, 0
    %s176 = sadd.s32 %s175, 1
    %s177 = scalar_select %p174, %s175, %s176
    %p180 = pneg %p174
    %p181 = scmp.eq.s32.totalorder %s13, 1
    %p182 = por %p180, %p181
    %p183 = scmp.ne.s32.totalorder %s175, %s178
    %p184 = scmp.eq.s32.totalorder %s13, 0
    %p185 = por %p183, %p184
    %p186 = scmp.ne.s32.totalorder %s175, %s178
    %p187 = scmp.eq.s32.totalorder %s18, 1
    %p188 = por %p186, %p187
    %p189 = scmp.ne.s32.totalorder %s178, %s179
    %p190 = scmp.eq.s32.totalorder %s18, 0
    %p191 = por %p189, %p190
    %p192 = scmp.ne.s32.totalorder %s178, %s179
    %p193 = scmp.eq.s32.totalorder %s19, 1
    %p194 = por %p192, %p193
    %p196 = scmp.ne.s32.totalorder %s179, %s195
    %p197 = scmp.eq.s32.totalorder %s19, 0
    %p198 = por %p196, %p197
    %p199 = scmp.le.s32.totalorder 1, %s13
    %p200 = scmp.lt.s32.totalorder %s13, 3
    %p201 = pnand %p199, %p200
    %p202 = pneg %p201
    // Predicated region
    $region9: #{tpu_custom_call.1} parent=5 // pred_check
      _
    $region10: #{tpu_custom_call.1} parent=5 // pred_check_branch
      %204 = sbr.rel (%p201) target = $region12
    $region11: #{tpu_custom_call.1} parent=5 // pred_region
      %s205 = ssub.s32 %s13, 1
      // Predicated region
      $region13: #{tpu_custom_call.1} parent=11 // pred_check
        %p206 = pneg %p60
      $region14: #{tpu_custom_call.1} parent=11 // pred_check_branch
        %208 = sbr.rel (%p206) target = $region16
      $region15: #{tpu_custom_call.1} parent=11 // pred_region
        _
      $region16: #{tpu_custom_call.1} parent=11 // pred_fallthru
        _
      // Predicated region
      $region17: #{tpu_custom_call.1} parent=11 // pred_check
        %p209 = pneg %p81
      $region18: #{tpu_custom_call.1} parent=11 // pred_check_branch
        %211 = sbr.rel (%p209) target = $region20
      $region19: #{tpu_custom_call.1} parent=11 // pred_region
        _
      $region20: #{tpu_custom_call.1} parent=11 // pred_fallthru
        _
      // Predicated region
      $region21: #{tpu_custom_call.1} parent=11 // pred_check
        %p212 = pneg %p102
      $region22: #{tpu_custom_call.1} parent=11 // pred_check_branch
        %214 = sbr.rel (%p212) target = $region24
      $region23: #{tpu_custom_call.1} parent=11 // pred_region
        _
      $region24: #{tpu_custom_call.1} parent=11 // pred_fallthru
        _
      // Predicated region
      $region25: #{tpu_custom_call.1} parent=11 // pred_check
        %p215 = pneg %p123
      $region26: #{tpu_custom_call.1} parent=11 // pred_check_branch
        %217 = sbr.rel (%p215) target = $region28
      $region27: #{tpu_custom_call.1} parent=11 // pred_region
        _
      $region28: #{tpu_custom_call.1} parent=11 // pred_fallthru
        _
      // Predicated region
      $region29: #{tpu_custom_call.1} parent=11 // pred_check
        %p218 = pneg %p144
      $region30: #{tpu_custom_call.1} parent=11 // pred_check_branch
        %220 = sbr.rel (%p218) target = $region32
      $region31: #{tpu_custom_call.1} parent=11 // pred_region
        _
      $region32: #{tpu_custom_call.1} parent=11 // pred_fallthru
        _
      // Predicated region
      $region33: #{tpu_custom_call.1} parent=11 // pred_check
        %p221 = pneg %p165
      $region34: #{tpu_custom_call.1} parent=11 // pred_check_branch
        %223 = sbr.rel (%p221) target = $region36
      $region35: #{tpu_custom_call.1} parent=11 // pred_region
        _
      $region36: #{tpu_custom_call.1} parent=11 // pred_fallthru
        _
    $region12: #{tpu_custom_call.1} parent=5 // pred_fallthru
      _
    %p224 = scmp.lt.s32.totalorder %s13, 2
    // Predicated region
    $region37: #{tpu_custom_call.1} parent=5 // pred_check
      %p225 = pneg %p224
    $region38: #{tpu_custom_call.1} parent=5 // pred_check_branch
      %227 = sbr.rel (%p225) target = $region40
    $region39: #{tpu_custom_call.1} parent=5 // pred_region
      // Predicated region
      $region41: #{tpu_custom_call.1} parent=39 // pred_check
        %p228 = pneg %p33
      $region42: #{tpu_custom_call.1} parent=39 // pred_check_branch
        %230 = sbr.rel (%p228) target = $region44
      $region43: #{tpu_custom_call.1} parent=39 // pred_region
        %p231 = scmp.lt.s32.totalorder %s13, 1
        %s232 = scalar_select %p231, %s13, 1
        %s233 = smul.addr %s232, 41
        %s234 = smul.addr %s233, 8
        %s235 = scalar_lea.vmem %s0, %s234
      $region44: #{tpu_custom_call.1} parent=39 // pred_fallthru
        _
    $region40: #{tpu_custom_call.1} parent=5 // pred_fallthru
      _
    %p236 = scmp.le.s32.totalorder 1, %s13
    %p237 = scmp.lt.s32.totalorder %s13, 3
    %p238 = pnand %p236, %p237
    %p239 = pneg %p238
    // Predicated region
    $region45: #{tpu_custom_call.1} parent=5 // pred_check
      _
    $region46: #{tpu_custom_call.1} parent=5 // pred_check_branch
      %241 = sbr.rel (%p238) target = $region48
    $region47: #{tpu_custom_call.1} parent=5 // pred_region
      %s242 = ssub.s32 %s13, 1
      %p243 = scmp.lt.s32.totalorder %s18, 1
      %s244 = scalar_select %p243, %s18, 1
      %s245 = smul.addr %s244, 41
      %s246 = smul.addr %s245, 8
      %s247 = scalar_lea.vmem %s0, %s246
      %p248 = pneg %p39
      %p249 = pneg %p36
      %p250 = pneg %p60
      %p251 = pneg %p57
      %p252 = pneg %p81
      %p253 = pneg %p78
      %p254 = pneg %p102
      %p255 = pneg %p99
      %p256 = pneg %p123
      %p257 = pneg %p120
      %p258 = pneg %p144
      %p259 = pneg %p141
      %p260 = pneg %p165
      %p261 = pneg %p162
      %p262 = pneg %p191
      %p263 = pneg %p188
      %p264 = scmp.lt.s32.totalorder %s18, 1
      %s265 = scalar_select %p264, %s18, 1
      %s266 = smul.addr %s265, 41
      %s267 = smul.addr %s266, 8
      %s268 = scalar_lea.vmem %s7, %s267
      %p269 = scmp.lt.s32.totalorder %s18, 1
      %s270 = scalar_select %p269, %s18, 1
      %s271 = smul.addr %s270, 41
      %s272 = smul.addr %s271, 8
      %s273 = scalar_lea.vmem %s0, %s272
      %p274 = scmp.lt.s32.totalorder %s18, 1
      %s275 = scalar_select %p274, %s18, 1
      %s276 = smul.addr %s275, 41
      %s277 = smul.addr %s276, 8
      %s278 = scalar_lea.vmem %s7, %s277
      %v279 = vld [vmem:[%s273] sm:$0xff]
      %v280 = vld [vmem:[%s273 + $0x8] sm:$0xff]
      %v281 = vld [vmem:[%s273 + $0x10] sm:$0xff]
      %v282 = vld [vmem:[%s273 + $0x18] sm:$0xff]
      %v283 = vld [vmem:[%s273 + $0x20] sm:$0xff]
      %v284 = vld [vmem:[%s273 + $0x28] sm:$0xff]
      %v285 = vld [vmem:[%s273 + $0x30] sm:$0xff]
      %v286 = vld [vmem:[%s273 + $0x38] sm:$0xff]
      %v287 = vld [vmem:[%s273 + $0x40] sm:$0xff]
      %v288 = vld [vmem:[%s273 + $0x48] sm:$0xff]
      %v289 = vld [vmem:[%s273 + $0x50] sm:$0xff]
      %v290 = vld [vmem:[%s273 + $0x58] sm:$0xff]
      %v291 = vld [vmem:[%s273 + $0x60] sm:$0xff]
      %v292 = vld [vmem:[%s273 + $0x68] sm:$0xff]
      %v293 = vld [vmem:[%s273 + $0x70] sm:$0xff]
      %v294 = vld [vmem:[%s273 + $0x78] sm:$0xff]
      %v295 = vld [vmem:[%s273 + $0x80] sm:$0xff]
      %v296 = vld [vmem:[%s273 + $0x88] sm:$0xff]
      %v297 = vld [vmem:[%s273 + $0x90] sm:$0xff]
      %v298 = vld [vmem:[%s273 + $0x98] sm:$0xff]
      %v299 = vld [vmem:[%s273 + $0xa0] sm:$0xff]
      %v300 = vld [vmem:[%s273 + $0xa8] sm:$0xff]
      %v301 = vld [vmem:[%s273 + $0xb0] sm:$0xff]
      %v302 = vld [vmem:[%s273 + $0xb8] sm:$0xff]
      %v303 = vld [vmem:[%s273 + $0xc0] sm:$0xff]
      %v304 = vld [vmem:[%s273 + $0xc8] sm:$0xff]
      %v305 = vld [vmem:[%s273 + $0xd0] sm:$0xff]
      %v306 = vld [vmem:[%s273 + $0xd8] sm:$0xff]
      %v307 = vld [vmem:[%s273 + $0xe0] sm:$0xff]
      %v308 = vld [vmem:[%s273 + $0xe8] sm:$0xff]
      %v309 = vld [vmem:[%s273 + $0xf0] sm:$0xff]
      %v310 = vld [vmem:[%s273 + $0xf8] sm:$0xff]
      %v311 = vld [vmem:[%s273 + $0x100] sm:$0xff]
      %v312 = vld [vmem:[%s273 + $0x108] sm:$0xff]
      %v313 = vld [vmem:[%s273 + $0x110] sm:$0xff]
      %v314 = vld [vmem:[%s273 + $0x118] sm:$0xff]
      %v315 = vld [vmem:[%s1] sm:$0xff]
      %v316 = vld [vmem:[%s273 + $0x1] sm:$0xff]
      %v317 = vld [vmem:[%s273 + $0x9] sm:$0xff]
      %v318 = vld [vmem:[%s273 + $0x11] sm:$0xff]
      %v319 = vld [vmem:[%s273 + $0x19] sm:$0xff]
      %v320 = vld [vmem:[%s273 + $0x21] sm:$0xff]
      %v321 = vld [vmem:[%s273 + $0x29] sm:$0xff]
      %v322 = vld [vmem:[%s273 + $0x31] sm:$0xff]
      %v323 = vld [vmem:[%s273 + $0x39] sm:$0xff]
      %v324 = vld [vmem:[%s273 + $0x41] sm:$0xff]
      %v325 = vld [vmem:[%s273 + $0x49] sm:$0xff]
      %v326 = vld [vmem:[%s273 + $0x51] sm:$0xff]
      %v327 = vld [vmem:[%s273 + $0x59] sm:$0xff]
      %v328 = vld [vmem:[%s273 + $0x61] sm:$0xff]
      %v329 = vld [vmem:[%s273 + $0x69] sm:$0xff]
      %v330 = vld [vmem:[%s273 + $0x71] sm:$0xff]
      %v331 = vld [vmem:[%s273 + $0x79] sm:$0xff]
      %v332 = vld [vmem:[%s273 + $0x81] sm:$0xff]
      %v333 = vld [vmem:[%s273 + $0x89] sm:$0xff]
      %v334 = vld [vmem:[%s273 + $0x91] sm:$0xff]
      %v335 = vld [vmem:[%s273 + $0x99] sm:$0xff]
      %v336 = vld [vmem:[%s273 + $0xa1] sm:$0xff]
      %v337 = vld [vmem:[%s273 + $0xa9] sm:$0xff]
      %v338 = vld [vmem:[%s273 + $0xb1] sm:$0xff]
      %v339 = vld [vmem:[%s273 + $0xb9] sm:$0xff]
      %v340 = vld [vmem:[%s273 + $0xc1] sm:$0xff]
      %v341 = vld [vmem:[%s273 + $0xc9] sm:$0xff]
      %v342 = vld [vmem:[%s273 + $0xd1] sm:$0xff]
      %v343 = vld [vmem:[%s273 + $0xd9] sm:$0xff]
      %v344 = vld [vmem:[%s273 + $0xe1] sm:$0xff]
      %v345 = vld [vmem:[%s273 + $0xe9] sm:$0xff]
      %v346 = vld [vmem:[%s273 + $0xf1] sm:$0xff]
      %v347 = vld [vmem:[%s273 + $0xf9] sm:$0xff]
      %v348 = vld [vmem:[%s273 + $0x101] sm:$0xff]
      %v349 = vld [vmem:[%s273 + $0x109] sm:$0xff]
      %v350 = vld [vmem:[%s273 + $0x111] sm:$0xff]
      %v351 = vld [vmem:[%s273 + $0x119] sm:$0xff]
      %s352 = scalar_lea.vmem %s1, 8
      %v353 = vld [vmem:[%s352] sm:$0xff]
      %vm354 = vcmask 64512
      %v356 = vsel %vm354, %v316, 0
      %v359 = vsel %vm354, %v317, 0
      %v362 = vsel %vm354, %v318, 0
      %v365 = vsel %vm354, %v319, 0
      %v368 = vsel %vm354, %v320, 0
      %v371 = vsel %vm354, %v321, 0
      %v374 = vsel %vm354, %v322, 0
      %v377 = vsel %vm354, %v323, 0
      %v380 = vsel %vm354, %v324, 0
      %v383 = vsel %vm354, %v325, 0
      %v386 = vsel %vm354, %v326, 0
      %v389 = vsel %vm354, %v327, 0
      %v392 = vsel %vm354, %v328, 0
      %v395 = vsel %vm354, %v329, 0
      %v398 = vsel %vm354, %v330, 0
      %v401 = vsel %vm354, %v331, 0
      %v404 = vsel %vm354, %v332, 0
      %v407 = vsel %vm354, %v333, 0
      %v410 = vsel %vm354, %v334, 0
      %v413 = vsel %vm354, %v335, 0
      %v416 = vsel %vm354, %v336, 0
      %v419 = vsel %vm354, %v337, 0
      %v422 = vsel %vm354, %v338, 0
      %v425 = vsel %vm354, %v339, 0
      %v428 = vsel %vm354, %v340, 0
      %v431 = vsel %vm354, %v341, 0
      %v434 = vsel %vm354, %v342, 0
      %v437 = vsel %vm354, %v343, 0
      %v440 = vsel %vm354, %v344, 0
      %v443 = vsel %vm354, %v345, 0
      %v446 = vsel %vm354, %v346, 0
      %v449 = vsel %vm354, %v347, 0
      %v452 = vsel %vm354, %v348, 0
      %v455 = vsel %vm354, %v349, 0
      %v458 = vsel %vm354, %v350, 0
      %v461 = vsel %vm354, %v351, 0
      %463 = vmatpush.msra.mxu0 0.0
      %464 = vmatpush.msra.mxu0 0.0
      %465 = vmatpush.msra.mxu0 0.0
      %466 = vmatpush.msra.mxu0 0.0
      %467 = vmatpush.msra.mxu0 0.0
      %468 = vmatpush.msra.mxu0 0.0
      %469 = vmatpush.msra.mxu0 0.0
      %470 = vmatpush.msra.mxu0 0.0
      %471 = vmatpush.msra.mxu0 0.0
      %472 = vmatpush.msra.mxu0 0.0
      %473 = vmatpush.msra.mxu0 0.0
      %474 = vmatpush.msra.mxu0 0.0
      %475 = vmatpush.msra.mxu0 0.0
      %476 = vmatpush.msra.mxu0 0.0
      %477 = vmatpush.msra.mxu0 0.0
      %478 = vmatpush.msra.mxu0 %v353
      %479 = vmatmul.f32.gmra.mxu0 %v356
      %v480 = vpop.f32.mrf.mxu0
      %v481 = vadd.f32 0.0, %v480
      %482 = vmatmul.f32.gmra.mxu0 %v359
      %v483 = vpop.f32.mrf.mxu0
      %v484 = vadd.f32 0.0, %v483
      %485 = vmatmul.f32.gmra.mxu0 %v362
      %v486 = vpop.f32.mrf.mxu0
      %v487 = vadd.f32 0.0, %v486
      %488 = vmatmul.f32.gmra.mxu0 %v365
      %v489 = vpop.f32.mrf.mxu0
      %v490 = vadd.f32 0.0, %v489
      %491 = vmatmul.f32.gmra.mxu0 %v368
      %v492 = vpop.f32.mrf.mxu0
      %v493 = vadd.f32 0.0, %v492
      %494 = vmatmul.f32.gmra.mxu0 %v371
      %v495 = vpop.f32.mrf.mxu0
      %v496 = vadd.f32 0.0, %v495
      %497 = vmatmul.f32.gmra.mxu0 %v374
      %v498 = vpop.f32.mrf.mxu0
      %v499 = vadd.f32 0.0, %v498
      %500 = vmatmul.f32.gmra.mxu0 %v377
      %v501 = vpop.f32.mrf.mxu0
      %v502 = vadd.f32 0.0, %v501
      %503 = vmatmul.f32.gmra.mxu0 %v380
      %v504 = vpop.f32.mrf.mxu0
      %v505 = vadd.f32 0.0, %v504
      %506 = vmatmul.f32.gmra.mxu0 %v383
      %v507 = vpop.f32.mrf.mxu0
      %v508 = vadd.f32 0.0, %v507
      %509 = vmatmul.f32.gmra.mxu0 %v386
      %v510 = vpop.f32.mrf.mxu0
      %v511 = vadd.f32 0.0, %v510
      %512 = vmatmul.f32.gmra.mxu0 %v389
      %v513 = vpop.f32.mrf.mxu0
      %v514 = vadd.f32 0.0, %v513
      %515 = vmatmul.f32.gmra.mxu0 %v392
      %v516 = vpop.f32.mrf.mxu0
      %v517 = vadd.f32 0.0, %v516
      %518 = vmatmul.f32.gmra.mxu0 %v395
      %v519 = vpop.f32.mrf.mxu0
      %v520 = vadd.f32 0.0, %v519
      %521 = vmatmul.f32.gmra.mxu0 %v398
      %v522 = vpop.f32.mrf.mxu0
      %v523 = vadd.f32 0.0, %v522
      %524 = vmatmul.f32.gmra.mxu0 %v401
      %v525 = vpop.f32.mrf.mxu0
      %v526 = vadd.f32 0.0, %v525
      %527 = vmatmul.f32.gmra.mxu0 %v404
      %v528 = vpop.f32.mrf.mxu0
      %v529 = vadd.f32 0.0, %v528
      %530 = vmatmul.f32.gmra.mxu0 %v407
      %v531 = vpop.f32.mrf.mxu0
      %v532 = vadd.f32 0.0, %v531
      %533 = vmatmul.f32.gmra.mxu0 %v410
      %v534 = vpop.f32.mrf.mxu0
      %v535 = vadd.f32 0.0, %v534
      %536 = vmatmul.f32.gmra.mxu0 %v413
      %v537 = vpop.f32.mrf.mxu0
      %v538 = vadd.f32 0.0, %v537
      %539 = vmatmul.f32.gmra.mxu0 %v416
      %v540 = vpop.f32.mrf.mxu0
      %v541 = vadd.f32 0.0, %v540
      %542 = vmatmul.f32.gmra.mxu0 %v419
      %v543 = vpop.f32.mrf.mxu0
      %v544 = vadd.f32 0.0, %v543
      %545 = vmatmul.f32.gmra.mxu0 %v422
      %v546 = vpop.f32.mrf.mxu0
      %v547 = vadd.f32 0.0, %v546
      %548 = vmatmul.f32.gmra.mxu0 %v425
      %v549 = vpop.f32.mrf.mxu0
      %v550 = vadd.f32 0.0, %v549
      %551 = vmatmul.f32.gmra.mxu0 %v428
      %v552 = vpop.f32.mrf.mxu0
      %v553 = vadd.f32 0.0, %v552
      %554 = vmatmul.f32.gmra.mxu0 %v431
      %v555 = vpop.f32.mrf.mxu0
      %v556 = vadd.f32 0.0, %v555
      %557 = vmatmul.f32.gmra.mxu0 %v434
      %v558 = vpop.f32.mrf.mxu0
      %v559 = vadd.f32 0.0, %v558
      %560 = vmatmul.f32.gmra.mxu0 %v437
      %v561 = vpop.f32.mrf.mxu0
      %v562 = vadd.f32 0.0, %v561
      %563 = vmatmul.f32.gmra.mxu0 %v440
      %v564 = vpop.f32.mrf.mxu0
      %v565 = vadd.f32 0.0, %v564
      %566 = vmatmul.f32.gmra.mxu0 %v443
      %v567 = vpop.f32.mrf.mxu0
      %v568 = vadd.f32 0.0, %v567
      %569 = vmatmul.f32.gmra.mxu0 %v446
      %v570 = vpop.f32.mrf.mxu0
      %v571 = vadd.f32 0.0, %v570
      %572 = vmatmul.f32.gmra.mxu0 %v449
      %v573 = vpop.f32.mrf.mxu0
      %v574 = vadd.f32 0.0, %v573
      %575 = vmatmul.f32.gmra.mxu0 %v452
      %v576 = vpop.f32.mrf.mxu0
      %v577 = vadd.f32 0.0, %v576
      %578 = vmatmul.f32.gmra.mxu0 %v455
      %v579 = vpop.f32.mrf.mxu0
      %v580 = vadd.f32 0.0, %v579
      %581 = vmatmul.f32.gmra.mxu0 %v458
      %v582 = vpop.f32.mrf.mxu0
      %v583 = vadd.f32 0.0, %v582
      %584 = vmatmul.f32.gmra.mxu0 %v461
      %v585 = vpop.f32.mrf.mxu0
      %v586 = vadd.f32 0.0, %v585
      %587 = vdwg.mxu0
      %v589 = vsel %vm354, %v279, 0
      %v592 = vsel %vm354, %v280, 0
      %v595 = vsel %vm354, %v281, 0
      %v598 = vsel %vm354, %v282, 0
      %v601 = vsel %vm354, %v283, 0
      %v604 = vsel %vm354, %v284, 0
      %v607 = vsel %vm354, %v285, 0
      %v610 = vsel %vm354, %v286, 0
      %v613 = vsel %vm354, %v287, 0
      %v616 = vsel %vm354, %v288, 0
      %v619 = vsel %vm354, %v289, 0
      %v622 = vsel %vm354, %v290, 0
      %v625 = vsel %vm354, %v291, 0
      %v628 = vsel %vm354, %v292, 0
      %v631 = vsel %vm354, %v293, 0
      %v634 = vsel %vm354, %v294, 0
      %v637 = vsel %vm354, %v295, 0
      %v640 = vsel %vm354, %v296, 0
      %v643 = vsel %vm354, %v297, 0
      %v646 = vsel %vm354, %v298, 0
      %v649 = vsel %vm354, %v299, 0
      %v652 = vsel %vm354, %v300, 0
      %v655 = vsel %vm354, %v301, 0
      %v658 = vsel %vm354, %v302, 0
      %v661 = vsel %vm354, %v303, 0
      %v664 = vsel %vm354, %v304, 0
      %v667 = vsel %vm354, %v305, 0
      %v670 = vsel %vm354, %v306, 0
      %v673 = vsel %vm354, %v307, 0
      %v676 = vsel %vm354, %v308, 0
      %v679 = vsel %vm354, %v309, 0
      %v682 = vsel %vm354, %v310, 0
      %v685 = vsel %vm354, %v311, 0
      %v688 = vsel %vm354, %v312, 0
      %v691 = vsel %vm354, %v313, 0
      %v694 = vsel %vm354, %v314, 0
      %696 = vmatpush.msra.mxu0 0.0
      %697 = vmatpush.msra.mxu0 0.0
      %698 = vmatpush.msra.mxu0 0.0
      %699 = vmatpush.msra.mxu0 0.0
      %700 = vmatpush.msra.mxu0 0.0
      %701 = vmatpush.msra.mxu0 0.0
      %702 = vmatpush.msra.mxu0 0.0
      %703 = vmatpush.msra.mxu0 0.0
      %704 = vmatpush.msra.mxu0 0.0
      %705 = vmatpush.msra.mxu0 0.0
      %706 = vmatpush.msra.mxu0 0.0
      %707 = vmatpush.msra.mxu0 0.0
      %708 = vmatpush.msra.mxu0 0.0
      %709 = vmatpush.msra.mxu0 0.0
      %710 = vmatpush.msra.mxu0 0.0
      %711 = vmatpush.msra.mxu0 %v315
      %712 = vmatmul.f32.gmra.mxu0 %v589
      %v713 = vpop.f32.mrf.mxu0
      %v714 = vadd.f32 %v481, %v713
      %715 = vmatmul.f32.gmra.mxu0 %v592
      %v716 = vpop.f32.mrf.mxu0
      %v717 = vadd.f32 %v484, %v716
      %718 = vmatmul.f32.gmra.mxu0 %v595
      %v719 = vpop.f32.mrf.mxu0
      %v720 = vadd.f32 %v487, %v719
      %721 = vmatmul.f32.gmra.mxu0 %v598
      %v722 = vpop.f32.mrf.mxu0
      %v723 = vadd.f32 %v490, %v722
      %724 = vmatmul.f32.gmra.mxu0 %v601
      %v725 = vpop.f32.mrf.mxu0
      %v726 = vadd.f32 %v493, %v725
      %727 = vmatmul.f32.gmra.mxu0 %v604
      %v728 = vpop.f32.mrf.mxu0
      %v729 = vadd.f32 %v496, %v728
      %730 = vmatmul.f32.gmra.mxu0 %v607
      %v731 = vpop.f32.mrf.mxu0
      %v732 = vadd.f32 %v499, %v731
      %733 = vmatmul.f32.gmra.mxu0 %v610
      %v734 = vpop.f32.mrf.mxu0
      %v735 = vadd.f32 %v502, %v734
      %736 = vmatmul.f32.gmra.mxu0 %v613
      %v737 = vpop.f32.mrf.mxu0
      %v738 = vadd.f32 %v505, %v737
      %739 = vmatmul.f32.gmra.mxu0 %v616
      %v740 = vpop.f32.mrf.mxu0
      %v741 = vadd.f32 %v508, %v740
      %742 = vmatmul.f32.gmra.mxu0 %v619
      %v743 = vpop.f32.mrf.mxu0
      %v744 = vadd.f32 %v511, %v743
      %745 = vmatmul.f32.gmra.mxu0 %v622
      %v746 = vpop.f32.mrf.mxu0
      %v747 = vadd.f32 %v514, %v746
      %748 = vmatmul.f32.gmra.mxu0 %v625
      %v749 = vpop.f32.mrf.mxu0
      %v750 = vadd.f32 %v517, %v749
      %751 = vmatmul.f32.gmra.mxu0 %v628
      %v752 = vpop.f32.mrf.mxu0
      %v753 = vadd.f32 %v520, %v752
      %754 = vmatmul.f32.gmra.mxu0 %v631
      %v755 = vpop.f32.mrf.mxu0
      %v756 = vadd.f32 %v523, %v755
      %757 = vmatmul.f32.gmra.mxu0 %v634
      %v758 = vpop.f32.mrf.mxu0
      %v759 = vadd.f32 %v526, %v758
      %760 = vmatmul.f32.gmra.mxu0 %v637
      %v761 = vpop.f32.mrf.mxu0
      %v762 = vadd.f32 %v529, %v761
      %763 = vmatmul.f32.gmra.mxu0 %v640
      %v764 = vpop.f32.mrf.mxu0
      %v765 = vadd.f32 %v532, %v764
      %766 = vmatmul.f32.gmra.mxu0 %v643
      %v767 = vpop.f32.mrf.mxu0
      %v768 = vadd.f32 %v535, %v767
      %769 = vmatmul.f32.gmra.mxu0 %v646
      %v770 = vpop.f32.mrf.mxu0
      %v771 = vadd.f32 %v538, %v770
      %772 = vmatmul.f32.gmra.mxu0 %v649
      %v773 = vpop.f32.mrf.mxu0
      %v774 = vadd.f32 %v541, %v773
      %775 = vmatmul.f32.gmra.mxu0 %v652
      %v776 = vpop.f32.mrf.mxu0
      %v777 = vadd.f32 %v544, %v776
      %778 = vmatmul.f32.gmra.mxu0 %v655
      %v779 = vpop.f32.mrf.mxu0
      %v780 = vadd.f32 %v547, %v779
      %781 = vmatmul.f32.gmra.mxu0 %v658
      %v782 = vpop.f32.mrf.mxu0
      %v783 = vadd.f32 %v550, %v782
      %784 = vmatmul.f32.gmra.mxu0 %v661
      %v785 = vpop.f32.mrf.mxu0
      %v786 = vadd.f32 %v553, %v785
      %787 = vmatmul.f32.gmra.mxu0 %v664
      %v788 = vpop.f32.mrf.mxu0
      %v789 = vadd.f32 %v556, %v788
      %790 = vmatmul.f32.gmra.mxu0 %v667
      %v791 = vpop.f32.mrf.mxu0
      %v792 = vadd.f32 %v559, %v791
      %793 = vmatmul.f32.gmra.mxu0 %v670
      %v794 = vpop.f32.mrf.mxu0
      %v795 = vadd.f32 %v562, %v794
      %796 = vmatmul.f32.gmra.mxu0 %v673
      %v797 = vpop.f32.mrf.mxu0
      %v798 = vadd.f32 %v565, %v797
      %799 = vmatmul.f32.gmra.mxu0 %v676
      %v800 = vpop.f32.mrf.mxu0
      %v801 = vadd.f32 %v568, %v800
      %802 = vmatmul.f32.gmra.mxu0 %v679
      %v803 = vpop.f32.mrf.mxu0
      %v804 = vadd.f32 %v571, %v803
      %805 = vmatmul.f32.gmra.mxu0 %v682
      %v806 = vpop.f32.mrf.mxu0
      %v807 = vadd.f32 %v574, %v806
      %808 = vmatmul.f32.gmra.mxu0 %v685
      %v809 = vpop.f32.mrf.mxu0
      %v810 = vadd.f32 %v577, %v809
      %811 = vmatmul.f32.gmra.mxu0 %v688
      %v812 = vpop.f32.mrf.mxu0
      %v813 = vadd.f32 %v580, %v812
      %814 = vmatmul.f32.gmra.mxu0 %v691
      %v815 = vpop.f32.mrf.mxu0
      %v816 = vadd.f32 %v583, %v815
      %817 = vmatmul.f32.gmra.mxu0 %v694
      %v818 = vpop.f32.mrf.mxu0
      %v819 = vadd.f32 %v586, %v818
      %820 = vdwg.mxu0
      %v821 = vld [vmem:[%s273 + $0x2] sm:$0xff]
      %v822 = vld [vmem:[%s273 + $0xa] sm:$0xff]
      %v823 = vld [vmem:[%s273 + $0x12] sm:$0xff]
      %v824 = vld [vmem:[%s273 + $0x1a] sm:$0xff]
      %v825 = vld [vmem:[%s273 + $0x22] sm:$0xff]
      %v826 = vld [vmem:[%s273 + $0x2a] sm:$0xff]
      %v827 = vld [vmem:[%s273 + $0x32] sm:$0xff]
      %v828 = vld [vmem:[%s273 + $0x3a] sm:$0xff]
      %v829 = vld [vmem:[%s273 + $0x42] sm:$0xff]
      %v830 = vld [vmem:[%s273 + $0x4a] sm:$0xff]
      %v831 = vld [vmem:[%s273 + $0x52] sm:$0xff]
      %v832 = vld [vmem:[%s273 + $0x5a] sm:$0xff]
      %v833 = vld [vmem:[%s273 + $0x62] sm:$0xff]
      %v834 = vld [vmem:[%s273 + $0x6a] sm:$0xff]
      %v835 = vld [vmem:[%s273 + $0x72] sm:$0xff]
      %v836 = vld [vmem:[%s273 + $0x7a] sm:$0xff]
      %v837 = vld [vmem:[%s273 + $0x82] sm:$0xff]
      %v838 = vld [vmem:[%s273 + $0x8a] sm:$0xff]
      %v839 = vld [vmem:[%s273 + $0x92] sm:$0xff]
      %v840 = vld [vmem:[%s273 + $0x9a] sm:$0xff]
      %v841 = vld [vmem:[%s273 + $0xa2] sm:$0xff]
      %v842 = vld [vmem:[%s273 + $0xaa] sm:$0xff]
      %v843 = vld [vmem:[%s273 + $0xb2] sm:$0xff]
      %v844 = vld [vmem:[%s273 + $0xba] sm:$0xff]
      %v845 = vld [vmem:[%s273 + $0xc2] sm:$0xff]
      %v846 = vld [vmem:[%s273 + $0xca] sm:$0xff]
      %v847 = vld [vmem:[%s273 + $0xd2] sm:$0xff]
      %v848 = vld [vmem:[%s273 + $0xda] sm:$0xff]
      %v849 = vld [vmem:[%s273 + $0xe2] sm:$0xff]
      %v850 = vld [vmem:[%s273 + $0xea] sm:$0xff]
      %v851 = vld [vmem:[%s273 + $0xf2] sm:$0xff]
      %v852 = vld [vmem:[%s273 + $0xfa] sm:$0xff]
      %v853 = vld [vmem:[%s273 + $0x102] sm:$0xff]
      %v854 = vld [vmem:[%s273 + $0x10a] sm:$0xff]
      %v855 = vld [vmem:[%s273 + $0x112] sm:$0xff]
      %v856 = vld [vmem:[%s273 + $0x11a] sm:$0xff]
      %s857 = scalar_lea.vmem %s1, 16
      %v858 = vld [vmem:[%s857] sm:$0xff]
      %v860 = vsel %vm354, %v821, 0
      %v863 = vsel %vm354, %v822, 0
      %v866 = vsel %vm354, %v823, 0
      %v869 = vsel %vm354, %v824, 0
      %v872 = vsel %vm354, %v825, 0
      %v875 = vsel %vm354, %v826, 0
      %v878 = vsel %vm354, %v827, 0
      %v881 = vsel %vm354, %v828, 0
      %v884 = vsel %vm354, %v829, 0
      %v887 = vsel %vm354, %v830, 0
      %v890 = vsel %vm354, %v831, 0
      %v893 = vsel %vm354, %v832, 0
      %v896 = vsel %vm354, %v833, 0
      %v899 = vsel %vm354, %v834, 0
      %v902 = vsel %vm354, %v835, 0
      %v905 = vsel %vm354, %v836, 0
      %v908 = vsel %vm354, %v837, 0
      %v911 = vsel %vm354, %v838, 0
      %v914 = vsel %vm354, %v839, 0
      %v917 = vsel %vm354, %v840, 0
      %v920 = vsel %vm354, %v841, 0
      %v923 = vsel %vm354, %v842, 0
      %v926 = vsel %vm354, %v843, 0
      %v929 = vsel %vm354, %v844, 0
      %v932 = vsel %vm354, %v845, 0
      %v935 = vsel %vm354, %v846, 0
      %v938 = vsel %vm354, %v847, 0
      %v941 = vsel %vm354, %v848, 0
      %v944 = vsel %vm354, %v849, 0
      %v947 = vsel %vm354, %v850, 0
      %v950 = vsel %vm354, %v851, 0
      %v953 = vsel %vm354, %v852, 0
      %v956 = vsel %vm354, %v853, 0
      %v959 = vsel %vm354, %v854, 0
      %v962 = vsel %vm354, %v855, 0
      %v965 = vsel %vm354, %v856, 0
      %967 = vmatpush.msra.mxu0 0.0
      %968 = vmatpush.msra.mxu0 0.0
      %969 = vmatpush.msra.mxu0 0.0
      %970 = vmatpush.msra.mxu0 0.0
      %971 = vmatpush.msra.mxu0 0.0
      %972 = vmatpush.msra.mxu0 0.0
      %973 = vmatpush.msra.mxu0 0.0
      %974 = vmatpush.msra.mxu0 0.0
      %975 = vmatpush.msra.mxu0 0.0
      %976 = vmatpush.msra.mxu0 0.0
      %977 = vmatpush.msra.mxu0 0.0
      %978 = vmatpush.msra.mxu0 0.0
      %979 = vmatpush.msra.mxu0 0.0
      %980 = vmatpush.msra.mxu0 0.0
      %981 = vmatpush.msra.mxu0 0.0
      %982 = vmatpush.msra.mxu0 %v858
      %983 = vmatmul.f32.gmra.mxu0 %v860
      %v984 = vpop.f32.mrf.mxu0
      %v985 = vadd.f32 0.0, %v984
      %986 = vmatmul.f32.gmra.mxu0 %v863
      %v987 = vpop.f32.mrf.mxu0
      %v988 = vadd.f32 0.0, %v987
      %989 = vmatmul.f32.gmra.mxu0 %v866
      %v990 = vpop.f32.mrf.mxu0
      %v991 = vadd.f32 0.0, %v990
      %992 = vmatmul.f32.gmra.mxu0 %v869
      %v993 = vpop.f32.mrf.mxu0
      %v994 = vadd.f32 0.0, %v993
      %995 = vmatmul.f32.gmra.mxu0 %v872
      %v996 = vpop.f32.mrf.mxu0
      %v997 = vadd.f32 0.0, %v996
      %998 = vmatmul.f32.gmra.mxu0 %v875
      %v999 = vpop.f32.mrf.mxu0
      %v1000 = vadd.f32 0.0, %v999
      %1001 = vmatmul.f32.gmra.mxu0 %v878
      %v1002 = vpop.f32.mrf.mxu0
      %v1003 = vadd.f32 0.0, %v1002
      %1004 = vmatmul.f32.gmra.mxu0 %v881
      %v1005 = vpop.f32.mrf.mxu0
      %v1006 = vadd.f32 0.0, %v1005
      %1007 = vmatmul.f32.gmra.mxu0 %v884
      %v1008 = vpop.f32.mrf.mxu0
      %v1009 = vadd.f32 0.0, %v1008
      %1010 = vmatmul.f32.gmra.mxu0 %v887
      %v1011 = vpop.f32.mrf.mxu0
      %v1012 = vadd.f32 0.0, %v1011
      %1013 = vmatmul.f32.gmra.mxu0 %v890
      %v1014 = vpop.f32.mrf.mxu0
      %v1015 = vadd.f32 0.0, %v1014
      %1016 = vmatmul.f32.gmra.mxu0 %v893
      %v1017 = vpop.f32.mrf.mxu0
      %v1018 = vadd.f32 0.0, %v1017
      %1019 = vmatmul.f32.gmra.mxu0 %v896
      %v1020 = vpop.f32.mrf.mxu0
      %v1021 = vadd.f32 0.0, %v1020
      %1022 = vmatmul.f32.gmra.mxu0 %v899
      %v1023 = vpop.f32.mrf.mxu0
      %v1024 = vadd.f32 0.0, %v1023
      %1025 = vmatmul.f32.gmra.mxu0 %v902
      %v1026 = vpop.f32.mrf.mxu0
      %v1027 = vadd.f32 0.0, %v1026
      %1028 = vmatmul.f32.gmra.mxu0 %v905
      %v1029 = vpop.f32.mrf.mxu0
      %v1030 = vadd.f32 0.0, %v1029
      %1031 = vmatmul.f32.gmra.mxu0 %v908
      %v1032 = vpop.f32.mrf.mxu0
      %v1033 = vadd.f32 0.0, %v1032
      %1034 = vmatmul.f32.gmra.mxu0 %v911
      %v1035 = vpop.f32.mrf.mxu0
      %v1036 = vadd.f32 0.0, %v1035
      %1037 = vmatmul.f32.gmra.mxu0 %v914
      %v1038 = vpop.f32.mrf.mxu0
      %v1039 = vadd.f32 0.0, %v1038
      %1040 = vmatmul.f32.gmra.mxu0 %v917
      %v1041 = vpop.f32.mrf.mxu0
      %v1042 = vadd.f32 0.0, %v1041
      %1043 = vmatmul.f32.gmra.mxu0 %v920
      %v1044 = vpop.f32.mrf.mxu0
      %v1045 = vadd.f32 0.0, %v1044
      %1046 = vmatmul.f32.gmra.mxu0 %v923
      %v1047 = vpop.f32.mrf.mxu0
      %v1048 = vadd.f32 0.0, %v1047
      %1049 = vmatmul.f32.gmra.mxu0 %v926
      %v1050 = vpop.f32.mrf.mxu0
      %v1051 = vadd.f32 0.0, %v1050
      %1052 = vmatmul.f32.gmra.mxu0 %v929
      %v1053 = vpop.f32.mrf.mxu0
      %v1054 = vadd.f32 0.0, %v1053
      %1055 = vmatmul.f32.gmra.mxu0 %v932
      %v1056 = vpop.f32.mrf.mxu0
      %v1057 = vadd.f32 0.0, %v1056
      %1058 = vmatmul.f32.gmra.mxu0 %v935
      %v1059 = vpop.f32.mrf.mxu0
      %v1060 = vadd.f32 0.0, %v1059
      %1061 = vmatmul.f32.gmra.mxu0 %v938
      %v1062 = vpop.f32.mrf.mxu0
      %v1063 = vadd.f32 0.0, %v1062
      %1064 = vmatmul.f32.gmra.mxu0 %v941
      %v1065 = vpop.f32.mrf.mxu0
      %v1066 = vadd.f32 0.0, %v1065
      %1067 = vmatmul.f32.gmra.mxu0 %v944
      %v1068 = vpop.f32.mrf.mxu0
      %v1069 = vadd.f32 0.0, %v1068
      %1070 = vmatmul.f32.gmra.mxu0 %v947
      %v1071 = vpop.f32.mrf.mxu0
      %v1072 = vadd.f32 0.0, %v1071
      %1073 = vmatmul.f32.gmra.mxu0 %v950
      %v1074 = vpop.f32.mrf.mxu0
      %v1075 = vadd.f32 0.0, %v1074
      %1076 = vmatmul.f32.gmra.mxu0 %v953
      %v1077 = vpop.f32.mrf.mxu0
      %v1078 = vadd.f32 0.0, %v1077
      %1079 = vmatmul.f32.gmra.mxu0 %v956
      %v1080 = vpop.f32.mrf.mxu0
      %v1081 = vadd.f32 0.0, %v1080
      %1082 = vmatmul.f32.gmra.mxu0 %v959
      %v1083 = vpop.f32.mrf.mxu0
      %v1084 = vadd.f32 0.0, %v1083
      %1085 = vmatmul.f32.gmra.mxu0 %v962
      %v1086 = vpop.f32.mrf.mxu0
      %v1087 = vadd.f32 0.0, %v1086
      %1088 = vmatmul.f32.gmra.mxu0 %v965
      %v1089 = vpop.f32.mrf.mxu0
      %v1090 = vadd.f32 0.0, %v1089
      %1091 = vdwg.mxu0
      %v1092 = vadd.f32 %v714, %v985
      %v1093 = vadd.f32 %v717, %v988
      %v1094 = vadd.f32 %v720, %v991
      %v1095 = vadd.f32 %v723, %v994
      %v1096 = vadd.f32 %v726, %v997
      %v1097 = vadd.f32 %v729, %v1000
      %v1098 = vadd.f32 %v732, %v1003
      %v1099 = vadd.f32 %v735, %v1006
      %v1100 = vadd.f32 %v738, %v1009
      %v1101 = vadd.f32 %v741, %v1012
      %v1102 = vadd.f32 %v744, %v1015
      %v1103 = vadd.f32 %v747, %v1018
      %v1104 = vadd.f32 %v750, %v1021
      %v1105 = vadd.f32 %v753, %v1024
      %v1106 = vadd.f32 %v756, %v1027
      %v1107 = vadd.f32 %v759, %v1030
      %v1108 = vadd.f32 %v762, %v1033
      %v1109 = vadd.f32 %v765, %v1036
      %v1110 = vadd.f32 %v768, %v1039
      %v1111 = vadd.f32 %v771, %v1042
      %v1112 = vadd.f32 %v774, %v1045
      %v1113 = vadd.f32 %v777, %v1048
      %v1114 = vadd.f32 %v780, %v1051
      %v1115 = vadd.f32 %v783, %v1054
      %v1116 = vadd.f32 %v786, %v1057
      %v1117 = vadd.f32 %v789, %v1060
      %v1118 = vadd.f32 %v792, %v1063
      %v1119 = vadd.f32 %v795, %v1066
      %v1120 = vadd.f32 %v798, %v1069
      %v1121 = vadd.f32 %v801, %v1072
      %v1122 = vadd.f32 %v804, %v1075
      %v1123 = vadd.f32 %v807, %v1078
      %v1124 = vadd.f32 %v810, %v1081
      %v1125 = vadd.f32 %v813, %v1084
      %v1126 = vadd.f32 %v816, %v1087
      %v1127 = vadd.f32 %v819, %v1090
      %v1128 = vld [vmem:[%s273 + $0x12] sm:$0xff]
      %v1129 = vld [vmem:[%s273 + $0x1a] sm:$0xff]
      %v1130 = vld [vmem:[%s273 + $0x22] sm:$0xff]
      %v1131 = vld [vmem:[%s273 + $0x2a] sm:$0xff]
      %v1132 = vld [vmem:[%s273 + $0x32] sm:$0xff]
      %v1133 = vld [vmem:[%s273 + $0x3a] sm:$0xff]
      %v1134 = vld [vmem:[%s273 + $0x42] sm:$0xff]
      %v1135 = vld [vmem:[%s273 + $0x4a] sm:$0xff]
      %v1136 = vld [vmem:[%s273 + $0x52] sm:$0xff]
      %v1137 = vld [vmem:[%s273 + $0x5a] sm:$0xff]
      %v1138 = vld [vmem:[%s273 + $0x62] sm:$0xff]
      %v1139 = vld [vmem:[%s273 + $0x6a] sm:$0xff]
      %v1140 = vld [vmem:[%s273 + $0x72] sm:$0xff]
      %v1141 = vld [vmem:[%s273 + $0x7a] sm:$0xff]
      %v1142 = vld [vmem:[%s273 + $0x82] sm:$0xff]
      %v1143 = vld [vmem:[%s273 + $0x8a] sm:$0xff]
      %v1144 = vld [vmem:[%s273 + $0x92] sm:$0xff]
      %v1145 = vld [vmem:[%s273 + $0x9a] sm:$0xff]
      %v1146 = vld [vmem:[%s273 + $0xa2] sm:$0xff]
      %v1147 = vld [vmem:[%s273 + $0xaa] sm:$0xff]
      %v1148 = vld [vmem:[%s273 + $0xb2] sm:$0xff]
      %v1149 = vld [vmem:[%s273 + $0xba] sm:$0xff]
      %v1150 = vld [vmem:[%s273 + $0xc2] sm:$0xff]
      %v1151 = vld [vmem:[%s273 + $0xca] sm:$0xff]
      %v1152 = vld [vmem:[%s273 + $0xd2] sm:$0xff]
      %v1153 = vld [vmem:[%s273 + $0xda] sm:$0xff]
      %v1154 = vld [vmem:[%s273 + $0xe2] sm:$0xff]
      %v1155 = vld [vmem:[%s273 + $0xea] sm:$0xff]
      %v1156 = vld [vmem:[%s273 + $0xf2] sm:$0xff]
      %v1157 = vld [vmem:[%s273 + $0xfa] sm:$0xff]
      %v1158 = vld [vmem:[%s273 + $0x102] sm:$0xff]
      %v1159 = vld [vmem:[%s273 + $0x10a] sm:$0xff]
      %v1160 = vld [vmem:[%s273 + $0x112] sm:$0xff]
      %v1161 = vld [vmem:[%s273 + $0x11a] sm:$0xff]
      %v1162 = vld [vmem:[%s273 + $0x122] sm:$0xff]
      %v1163 = vld [vmem:[%s273 + $0x12a] sm:$0xff]
      %s1164 = scalar_lea.vmem %s1, 24
      %v1165 = vld [vmem:[%s1164] sm:$0xff]
      %v1167 = vsel %vm354, %v1128, 0
      %v1170 = vsel %vm354, %v1129, 0
      %v1173 = vsel %vm354, %v1130, 0
      %v1176 = vsel %vm354, %v1131, 0
      %v1179 = vsel %vm354, %v1132, 0
      %v1182 = vsel %vm354, %v1133, 0
      %v1185 = vsel %vm354, %v1134, 0
      %v1188 = vsel %vm354, %v1135, 0
      %v1191 = vsel %vm354, %v1136, 0
      %v1194 = vsel %vm354, %v1137, 0
      %v1197 = vsel %vm354, %v1138, 0
      %v1200 = vsel %vm354, %v1139, 0
      %v1203 = vsel %vm354, %v1140, 0
      %v1206 = vsel %vm354, %v1141, 0
      %v1209 = vsel %vm354, %v1142, 0
      %v1212 = vsel %vm354, %v1143, 0
      %v1215 = vsel %vm354, %v1144, 0
      %v1218 = vsel %vm354, %v1145, 0
      %v1221 = vsel %vm354, %v1146, 0
      %v1224 = vsel %vm354, %v1147, 0
      %v1227 = vsel %vm354, %v1148, 0
      %v1230 = vsel %vm354, %v1149, 0
      %v1233 = vsel %vm354, %v1150, 0
      %v1236 = vsel %vm354, %v1151, 0
      %v1239 = vsel %vm354, %v1152, 0
      %v1242 = vsel %vm354, %v1153, 0
      %v1245 = vsel %vm354, %v1154, 0
      %v1248 = vsel %vm354, %v1155, 0
      %v1251 = vsel %vm354, %v1156, 0
      %v1254 = vsel %vm354, %v1157, 0
      %v1257 = vsel %vm354, %v1158, 0
      %v1260 = vsel %vm354, %v1159, 0
      %v1263 = vsel %vm354, %v1160, 0
      %v1266 = vsel %vm354, %v1161, 0
      %v1269 = vsel %vm354, %v1162, 0
      %v1272 = vsel %vm354, %v1163, 0
      %1274 = vmatpush.msra.mxu0 0.0
      %1275 = vmatpush.msra.mxu0 0.0
      %1276 = vmatpush.msra.mxu0 0.0
      %1277 = vmatpush.msra.mxu0 0.0
      %1278 = vmatpush.msra.mxu0 0.0
      %1279 = vmatpush.msra.mxu0 0.0
      %1280 = vmatpush.msra.mxu0 0.0
      %1281 = vmatpush.msra.mxu0 0.0
      %1282 = vmatpush.msra.mxu0 0.0
      %1283 = vmatpush.msra.mxu0 0.0
      %1284 = vmatpush.msra.mxu0 0.0
      %1285 = vmatpush.msra.mxu0 0.0
      %1286 = vmatpush.msra.mxu0 0.0
      %1287 = vmatpush.msra.mxu0 0.0
      %1288 = vmatpush.msra.mxu0 0.0
      %1289 = vmatpush.msra.mxu0 %v1165
      %1290 = vmatmul.f32.gmra.mxu0 %v1167
      %v1291 = vpop.f32.mrf.mxu0
      %v1292 = vadd.f32 0.0, %v1291
      %1293 = vmatmul.f32.gmra.mxu0 %v1170
      %v1294 = vpop.f32.mrf.mxu0
      %v1295 = vadd.f32 0.0, %v1294
      %1296 = vmatmul.f32.gmra.mxu0 %v1173
      %v1297 = vpop.f32.mrf.mxu0
      %v1298 = vadd.f32 0.0, %v1297
      %1299 = vmatmul.f32.gmra.mxu0 %v1176
      %v1300 = vpop.f32.mrf.mxu0
      %v1301 = vadd.f32 0.0, %v1300
      %1302 = vmatmul.f32.gmra.mxu0 %v1179
      %v1303 = vpop.f32.mrf.mxu0
      %v1304 = vadd.f32 0.0, %v1303
      %1305 = vmatmul.f32.gmra.mxu0 %v1182
      %v1306 = vpop.f32.mrf.mxu0
      %v1307 = vadd.f32 0.0, %v1306
      %1308 = vmatmul.f32.gmra.mxu0 %v1185
      %v1309 = vpop.f32.mrf.mxu0
      %v1310 = vadd.f32 0.0, %v1309
      %1311 = vmatmul.f32.gmra.mxu0 %v1188
      %v1312 = vpop.f32.mrf.mxu0
      %v1313 = vadd.f32 0.0, %v1312
      %1314 = vmatmul.f32.gmra.mxu0 %v1191
      %v1315 = vpop.f32.mrf.mxu0
      %v1316 = vadd.f32 0.0, %v1315
      %1317 = vmatmul.f32.gmra.mxu0 %v1194
      %v1318 = vpop.f32.mrf.mxu0
      %v1319 = vadd.f32 0.0, %v1318
      %1320 = vmatmul.f32.gmra.mxu0 %v1197
      %v1321 = vpop.f32.mrf.mxu0
      %v1322 = vadd.f32 0.0, %v1321
      %1323 = vmatmul.f32.gmra.mxu0 %v1200
      %v1324 = vpop.f32.mrf.mxu0
      %v1325 = vadd.f32 0.0, %v1324
      %1326 = vmatmul.f32.gmra.mxu0 %v1203
      %v1327 = vpop.f32.mrf.mxu0
      %v1328 = vadd.f32 0.0, %v1327
      %1329 = vmatmul.f32.gmra.mxu0 %v1206
      %v1330 = vpop.f32.mrf.mxu0
      %v1331 = vadd.f32 0.0, %v1330
      %1332 = vmatmul.f32.gmra.mxu0 %v1209
      %v1333 = vpop.f32.mrf.mxu0
      %v1334 = vadd.f32 0.0, %v1333
      %1335 = vmatmul.f32.gmra.mxu0 %v1212
      %v1336 = vpop.f32.mrf.mxu0
      %v1337 = vadd.f32 0.0, %v1336
      %1338 = vmatmul.f32.gmra.mxu0 %v1215
      %v1339 = vpop.f32.mrf.mxu0
      %v1340 = vadd.f32 0.0, %v1339
      %1341 = vmatmul.f32.gmra.mxu0 %v1218
      %v1342 = vpop.f32.mrf.mxu0
      %v1343 = vadd.f32 0.0, %v1342
      %1344 = vmatmul.f32.gmra.mxu0 %v1221
      %v1345 = vpop.f32.mrf.mxu0
      %v1346 = vadd.f32 0.0, %v1345
      %1347 = vmatmul.f32.gmra.mxu0 %v1224
      %v1348 = vpop.f32.mrf.mxu0
      %v1349 = vadd.f32 0.0, %v1348
      %1350 = vmatmul.f32.gmra.mxu0 %v1227
      %v1351 = vpop.f32.mrf.mxu0
      %v1352 = vadd.f32 0.0, %v1351
      %1353 = vmatmul.f32.gmra.mxu0 %v1230
      %v1354 = vpop.f32.mrf.mxu0
      %v1355 = vadd.f32 0.0, %v1354
      %1356 = vmatmul.f32.gmra.mxu0 %v1233
      %v1357 = vpop.f32.mrf.mxu0
      %v1358 = vadd.f32 0.0, %v1357
      %1359 = vmatmul.f32.gmra.mxu0 %v1236
      %v1360 = vpop.f32.mrf.mxu0
      %v1361 = vadd.f32 0.0, %v1360
      %1362 = vmatmul.f32.gmra.mxu0 %v1239
      %v1363 = vpop.f32.mrf.mxu0
      %v1364 = vadd.f32 0.0, %v1363
      %1365 = vmatmul.f32.gmra.mxu0 %v1242
      %v1366 = vpop.f32.mrf.mxu0
      %v1367 = vadd.f32 0.0, %v1366
      %1368 = vmatmul.f32.gmra.mxu0 %v1245
      %v1369 = vpop.f32.mrf.mxu0
      %v1370 = vadd.f32 0.0, %v1369
      %1371 = vmatmul.f32.gmra.mxu0 %v1248
      %v1372 = vpop.f32.mrf.mxu0
      %v1373 = vadd.f32 0.0, %v1372
      %1374 = vmatmul.f32.gmra.mxu0 %v1251
      %v1375 = vpop.f32.mrf.mxu0
      %v1376 = vadd.f32 0.0, %v1375
      %1377 = vmatmul.f32.gmra.mxu0 %v1254
      %v1378 = vpop.f32.mrf.mxu0
      %v1379 = vadd.f32 0.0, %v1378
      %1380 = vmatmul.f32.gmra.mxu0 %v1257
      %v1381 = vpop.f32.mrf.mxu0
      %v1382 = vadd.f32 0.0, %v1381
      %1383 = vmatmul.f32.gmra.mxu0 %v1260
      %v1384 = vpop.f32.mrf.mxu0
      %v1385 = vadd.f32 0.0, %v1384
      %1386 = vmatmul.f32.gmra.mxu0 %v1263
      %v1387 = vpop.f32.mrf.mxu0
      %v1388 = vadd.f32 0.0, %v1387
      %1389 = vmatmul.f32.gmra.mxu0 %v1266
      %v1390 = vpop.f32.mrf.mxu0
      %v1391 = vadd.f32 0.0, %v1390
      %1392 = vmatmul.f32.gmra.mxu0 %v1269
      %v1393 = vpop.f32.mrf.mxu0
      %v1394 = vadd.f32 0.0, %v1393
      %1395 = vmatmul.f32.gmra.mxu0 %v1272
      %v1396 = vpop.f32.mrf.mxu0
      %v1397 = vadd.f32 0.0, %v1396
      %1398 = vdwg.mxu0
      %v1399 = vadd.f32 %v1092, %v1292
      %v1400 = vadd.f32 %v1093, %v1295
      %v1401 = vadd.f32 %v1094, %v1298
      %v1402 = vadd.f32 %v1095, %v1301
      %v1403 = vadd.f32 %v1096, %v1304
      %v1404 = vadd.f32 %v1097, %v1307
      %v1405 = vadd.f32 %v1098, %v1310
      %v1406 = vadd.f32 %v1099, %v1313
      %v1407 = vadd.f32 %v1100, %v1316
      %v1408 = vadd.f32 %v1101, %v1319
      %v1409 = vadd.f32 %v1102, %v1322
      %v1410 = vadd.f32 %v1103, %v1325
      %v1411 = vadd.f32 %v1104, %v1328
      %v1412 = vadd.f32 %v1105, %v1331
      %v1413 = vadd.f32 %v1106, %v1334
      %v1414 = vadd.f32 %v1107, %v1337
      %v1415 = vadd.f32 %v1108, %v1340
      %v1416 = vadd.f32 %v1109, %v1343
      %v1417 = vadd.f32 %v1110, %v1346
      %v1418 = vadd.f32 %v1111, %v1349
      %v1419 = vadd.f32 %v1112, %v1352
      %v1420 = vadd.f32 %v1113, %v1355
      %v1421 = vadd.f32 %v1114, %v1358
      %v1422 = vadd.f32 %v1115, %v1361
      %v1423 = vadd.f32 %v1116, %v1364
      %v1424 = vadd.f32 %v1117, %v1367
      %v1425 = vadd.f32 %v1118, %v1370
      %v1426 = vadd.f32 %v1119, %v1373
      %v1427 = vadd.f32 %v1120, %v1376
      %v1428 = vadd.f32 %v1121, %v1379
      %v1429 = vadd.f32 %v1122, %v1382
      %v1430 = vadd.f32 %v1123, %v1385
      %v1431 = vadd.f32 %v1124, %v1388
      %v1432 = vadd.f32 %v1125, %v1391
      %v1433 = vadd.f32 %v1126, %v1394
      %v1434 = vadd.f32 %v1127, %v1397
      %v1435 = vld [vmem:[%s273 + $0x13] sm:$0xff]
      %v1436 = vld [vmem:[%s273 + $0x1b] sm:$0xff]
      %v1437 = vld [vmem:[%s273 + $0x23] sm:$0xff]
      %v1438 = vld [vmem:[%s273 + $0x2b] sm:$0xff]
      %v1439 = vld [vmem:[%s273 + $0x33] sm:$0xff]
      %v1440 = vld [vmem:[%s273 + $0x3b] sm:$0xff]
      %v1441 = vld [vmem:[%s273 + $0x43] sm:$0xff]
      %v1442 = vld [vmem:[%s273 + $0x4b] sm:$0xff]
      %v1443 = vld [vmem:[%s273 + $0x53] sm:$0xff]
      %v1444 = vld [vmem:[%s273 + $0x5b] sm:$0xff]
      %v1445 = vld [vmem:[%s273 + $0x63] sm:$0xff]
      %v1446 = vld [vmem:[%s273 + $0x6b] sm:$0xff]
      %v1447 = vld [vmem:[%s273 + $0x73] sm:$0xff]
      %v1448 = vld [vmem:[%s273 + $0x7b] sm:$0xff]
      %v1449 = vld [vmem:[%s273 + $0x83] sm:$0xff]
      %v1450 = vld [vmem:[%s273 + $0x8b] sm:$0xff]
      %v1451 = vld [vmem:[%s273 + $0x93] sm:$0xff]
      %v1452 = vld [vmem:[%s273 + $0x9b] sm:$0xff]
      %v1453 = vld [vmem:[%s273 + $0xa3] sm:$0xff]
      %v1454 = vld [vmem:[%s273 + $0xab] sm:$0xff]
      %v1455 = vld [vmem:[%s273 + $0xb3] sm:$0xff]
      %v1456 = vld [vmem:[%s273 + $0xbb] sm:$0xff]
      %v1457 = vld [vmem:[%s273 + $0xc3] sm:$0xff]
      %v1458 = vld [vmem:[%s273 + $0xcb] sm:$0xff]
      %v1459 = vld [vmem:[%s273 + $0xd3] sm:$0xff]
      %v1460 = vld [vmem:[%s273 + $0xdb] sm:$0xff]
      %v1461 = vld [vmem:[%s273 + $0xe3] sm:$0xff]
      %v1462 = vld [vmem:[%s273 + $0xeb] sm:$0xff]
      %v1463 = vld [vmem:[%s273 + $0xf3] sm:$0xff]
      %v1464 = vld [vmem:[%s273 + $0xfb] sm:$0xff]
      %v1465 = vld [vmem:[%s273 + $0x103] sm:$0xff]
      %v1466 = vld [vmem:[%s273 + $0x10b] sm:$0xff]
      %v1467 = vld [vmem:[%s273 + $0x113] sm:$0xff]
      %v1468 = vld [vmem:[%s273 + $0x11b] sm:$0xff]
      %v1469 = vld [vmem:[%s273 + $0x123] sm:$0xff]
      %v1470 = vld [vmem:[%s273 + $0x12b] sm:$0xff]
      %s1471 = scalar_lea.vmem %s1, 32
      %v1472 = vld [vmem:[%s1471] sm:$0xff]
      %v1474 = vsel %vm354, %v1435, 0
      %v1477 = vsel %vm354, %v1436, 0
      %v1480 = vsel %vm354, %v1437, 0
      %v1483 = vsel %vm354, %v1438, 0
      %v1486 = vsel %vm354, %v1439, 0
      %v1489 = vsel %vm354, %v1440, 0
      %v1492 = vsel %vm354, %v1441, 0
      %v1495 = vsel %vm354, %v1442, 0
      %v1498 = vsel %vm354, %v1443, 0
      %v1501 = vsel %vm354, %v1444, 0
      %v1504 = vsel %vm354, %v1445, 0
      %v1507 = vsel %vm354, %v1446, 0
      %v1510 = vsel %vm354, %v1447, 0
      %v1513 = vsel %vm354, %v1448, 0
      %v1516 = vsel %vm354, %v1449, 0
      %v1519 = vsel %vm354, %v1450, 0
      %v1522 = vsel %vm354, %v1451, 0
      %v1525 = vsel %vm354, %v1452, 0
      %v1528 = vsel %vm354, %v1453, 0
      %v1531 = vsel %vm354, %v1454, 0
      %v1534 = vsel %vm354, %v1455, 0
      %v1537 = vsel %vm354, %v1456, 0
      %v1540 = vsel %vm354, %v1457, 0
      %v1543 = vsel %vm354, %v1458, 0
      %v1546 = vsel %vm354, %v1459, 0
      %v1549 = vsel %vm354, %v1460, 0
      %v1552 = vsel %vm354, %v1461, 0
      %v1555 = vsel %vm354, %v1462, 0
      %v1558 = vsel %vm354, %v1463, 0
      %v1561 = vsel %vm354, %v1464, 0
      %v1564 = vsel %vm354, %v1465, 0
      %v1567 = vsel %vm354, %v1466, 0
      %v1570 = vsel %vm354, %v1467, 0
      %v1573 = vsel %vm354, %v1468, 0
      %v1576 = vsel %vm354, %v1469, 0
      %v1579 = vsel %vm354, %v1470, 0
      %1581 = vmatpush.msra.mxu0 0.0
      %1582 = vmatpush.msra.mxu0 0.0
      %1583 = vmatpush.msra.mxu0 0.0
      %1584 = vmatpush.msra.mxu0 0.0
      %1585 = vmatpush.msra.mxu0 0.0
      %1586 = vmatpush.msra.mxu0 0.0
      %1587 = vmatpush.msra.mxu0 0.0
      %1588 = vmatpush.msra.mxu0 0.0
      %1589 = vmatpush.msra.mxu0 0.0
      %1590 = vmatpush.msra.mxu0 0.0
      %1591 = vmatpush.msra.mxu0 0.0
      %1592 = vmatpush.msra.mxu0 0.0
      %1593 = vmatpush.msra.mxu0 0.0
      %1594 = vmatpush.msra.mxu0 0.0
      %1595 = vmatpush.msra.mxu0 0.0
      %1596 = vmatpush.msra.mxu0 %v1472
      %1597 = vmatmul.f32.gmra.mxu0 %v1474
      %v1598 = vpop.f32.mrf.mxu0
      %v1599 = vadd.f32 0.0, %v1598
      %1600 = vmatmul.f32.gmra.mxu0 %v1477
      %v1601 = vpop.f32.mrf.mxu0
      %v1602 = vadd.f32 0.0, %v1601
      %1603 = vmatmul.f32.gmra.mxu0 %v1480
      %v1604 = vpop.f32.mrf.mxu0
      %v1605 = vadd.f32 0.0, %v1604
      %1606 = vmatmul.f32.gmra.mxu0 %v1483
      %v1607 = vpop.f32.mrf.mxu0
      %v1608 = vadd.f32 0.0, %v1607
      %1609 = vmatmul.f32.gmra.mxu0 %v1486
      %v1610 = vpop.f32.mrf.mxu0
      %v1611 = vadd.f32 0.0, %v1610
      %1612 = vmatmul.f32.gmra.mxu0 %v1489
      %v1613 = vpop.f32.mrf.mxu0
      %v1614 = vadd.f32 0.0, %v1613
      %1615 = vmatmul.f32.gmra.mxu0 %v1492
      %v1616 = vpop.f32.mrf.mxu0
      %v1617 = vadd.f32 0.0, %v1616
      %1618 = vmatmul.f32.gmra.mxu0 %v1495
      %v1619 = vpop.f32.mrf.mxu0
      %v1620 = vadd.f32 0.0, %v1619
      %1621 = vmatmul.f32.gmra.mxu0 %v1498
      %v1622 = vpop.f32.mrf.mxu0
      %v1623 = vadd.f32 0.0, %v1622
      %1624 = vmatmul.f32.gmra.mxu0 %v1501
      %v1625 = vpop.f32.mrf.mxu0
      %v1626 = vadd.f32 0.0, %v1625
      %1627 = vmatmul.f32.gmra.mxu0 %v1504
      %v1628 = vpop.f32.mrf.mxu0
      %v1629 = vadd.f32 0.0, %v1628
      %1630 = vmatmul.f32.gmra.mxu0 %v1507
      %v1631 = vpop.f32.mrf.mxu0
      %v1632 = vadd.f32 0.0, %v1631
      %1633 = vmatmul.f32.gmra.mxu0 %v1510
      %v1634 = vpop.f32.mrf.mxu0
      %v1635 = vadd.f32 0.0, %v1634
      %1636 = vmatmul.f32.gmra.mxu0 %v1513
      %v1637 = vpop.f32.mrf.mxu0
      %v1638 = vadd.f32 0.0, %v1637
      %1639 = vmatmul.f32.gmra.mxu0 %v1516
      %v1640 = vpop.f32.mrf.mxu0
      %v1641 = vadd.f32 0.0, %v1640
      %1642 = vmatmul.f32.gmra.mxu0 %v1519
      %v1643 = vpop.f32.mrf.mxu0
      %v1644 = vadd.f32 0.0, %v1643
      %1645 = vmatmul.f32.gmra.mxu0 %v1522
      %v1646 = vpop.f32.mrf.mxu0
      %v1647 = vadd.f32 0.0, %v1646
      %1648 = vmatmul.f32.gmra.mxu0 %v1525
      %v1649 = vpop.f32.mrf.mxu0
      %v1650 = vadd.f32 0.0, %v1649
      %1651 = vmatmul.f32.gmra.mxu0 %v1528
      %v1652 = vpop.f32.mrf.mxu0
      %v1653 = vadd.f32 0.0, %v1652
      %1654 = vmatmul.f32.gmra.mxu0 %v1531
      %v1655 = vpop.f32.mrf.mxu0
      %v1656 = vadd.f32 0.0, %v1655
      %1657 = vmatmul.f32.gmra.mxu0 %v1534
      %v1658 = vpop.f32.mrf.mxu0
      %v1659 = vadd.f32 0.0, %v1658
      %1660 = vmatmul.f32.gmra.mxu0 %v1537
      %v1661 = vpop.f32.mrf.mxu0
      %v1662 = vadd.f32 0.0, %v1661
      %1663 = vmatmul.f32.gmra.mxu0 %v1540
      %v1664 = vpop.f32.mrf.mxu0
      %v1665 = vadd.f32 0.0, %v1664
      %1666 = vmatmul.f32.gmra.mxu0 %v1543
      %v1667 = vpop.f32.mrf.mxu0
      %v1668 = vadd.f32 0.0, %v1667
      %1669 = vmatmul.f32.gmra.mxu0 %v1546
      %v1670 = vpop.f32.mrf.mxu0
      %v1671 = vadd.f32 0.0, %v1670
      %1672 = vmatmul.f32.gmra.mxu0 %v1549
      %v1673 = vpop.f32.mrf.mxu0
      %v1674 = vadd.f32 0.0, %v1673
      %1675 = vmatmul.f32.gmra.mxu0 %v1552
      %v1676 = vpop.f32.mrf.mxu0
      %v1677 = vadd.f32 0.0, %v1676
      %1678 = vmatmul.f32.gmra.mxu0 %v1555
      %v1679 = vpop.f32.mrf.mxu0
      %v1680 = vadd.f32 0.0, %v1679
      %1681 = vmatmul.f32.gmra.mxu0 %v1558
      %v1682 = vpop.f32.mrf.mxu0
      %v1683 = vadd.f32 0.0, %v1682
      %1684 = vmatmul.f32.gmra.mxu0 %v1561
      %v1685 = vpop.f32.mrf.mxu0
      %v1686 = vadd.f32 0.0, %v1685
      %1687 = vmatmul.f32.gmra.mxu0 %v1564
      %v1688 = vpop.f32.mrf.mxu0
      %v1689 = vadd.f32 0.0, %v1688
      %1690 = vmatmul.f32.gmra.mxu0 %v1567
      %v1691 = vpop.f32.mrf.mxu0
      %v1692 = vadd.f32 0.0, %v1691
      %1693 = vmatmul.f32.gmra.mxu0 %v1570
      %v1694 = vpop.f32.mrf.mxu0
      %v1695 = vadd.f32 0.0, %v1694
      %1696 = vmatmul.f32.gmra.mxu0 %v1573
      %v1697 = vpop.f32.mrf.mxu0
      %v1698 = vadd.f32 0.0, %v1697
      %1699 = vmatmul.f32.gmra.mxu0 %v1576
      %v1700 = vpop.f32.mrf.mxu0
      %v1701 = vadd.f32 0.0, %v1700
      %1702 = vmatmul.f32.gmra.mxu0 %v1579
      %v1703 = vpop.f32.mrf.mxu0
      %v1704 = vadd.f32 0.0, %v1703
      %1705 = vdwg.mxu0
      %v1706 = vadd.f32 %v1399, %v1599
      %v1707 = vadd.f32 %v1400, %v1602
      %v1708 = vadd.f32 %v1401, %v1605
      %v1709 = vadd.f32 %v1402, %v1608
      %v1710 = vadd.f32 %v1403, %v1611
      %v1711 = vadd.f32 %v1404, %v1614
      %v1712 = vadd.f32 %v1405, %v1617
      %v1713 = vadd.f32 %v1406, %v1620
      %v1714 = vadd.f32 %v1407, %v1623
      %v1715 = vadd.f32 %v1408, %v1626
      %v1716 = vadd.f32 %v1409, %v1629
      %v1717 = vadd.f32 %v1410, %v1632
      %v1718 = vadd.f32 %v1411, %v1635
      %v1719 = vadd.f32 %v1412, %v1638
      %v1720 = vadd.f32 %v1413, %v1641
      %v1721 = vadd.f32 %v1414, %v1644
      %v1722 = vadd.f32 %v1415, %v1647
      %v1723 = vadd.f32 %v1416, %v1650
      %v1724 = vadd.f32 %v1417, %v1653
      %v1725 = vadd.f32 %v1418, %v1656
      %v1726 = vadd.f32 %v1419, %v1659
      %v1727 = vadd.f32 %v1420, %v1662
      %v1728 = vadd.f32 %v1421, %v1665
      %v1729 = vadd.f32 %v1422, %v1668
      %v1730 = vadd.f32 %v1423, %v1671
      %v1731 = vadd.f32 %v1424, %v1674
      %v1732 = vadd.f32 %v1425, %v1677
      %v1733 = vadd.f32 %v1426, %v1680
      %v1734 = vadd.f32 %v1427, %v1683
      %v1735 = vadd.f32 %v1428, %v1686
      %v1736 = vadd.f32 %v1429, %v1689
      %v1737 = vadd.f32 %v1430, %v1692
      %v1738 = vadd.f32 %v1431, %v1695
      %v1739 = vadd.f32 %v1432, %v1698
      %v1740 = vadd.f32 %v1433, %v1701
      %v1741 = vadd.f32 %v1434, %v1704
      %v1742 = vld [vmem:[%s273 + $0x14] sm:$0xff]
      %v1743 = vld [vmem:[%s273 + $0x1c] sm:$0xff]
      %v1744 = vld [vmem:[%s273 + $0x24] sm:$0xff]
      %v1745 = vld [vmem:[%s273 + $0x2c] sm:$0xff]
      %v1746 = vld [vmem:[%s273 + $0x34] sm:$0xff]
      %v1747 = vld [vmem:[%s273 + $0x3c] sm:$0xff]
      %v1748 = vld [vmem:[%s273 + $0x44] sm:$0xff]
      %v1749 = vld [vmem:[%s273 + $0x4c] sm:$0xff]
      %v1750 = vld [vmem:[%s273 + $0x54] sm:$0xff]
      %v1751 = vld [vmem:[%s273 + $0x5c] sm:$0xff]
      %v1752 = vld [vmem:[%s273 + $0x64] sm:$0xff]
      %v1753 = vld [vmem:[%s273 + $0x6c] sm:$0xff]
      %v1754 = vld [vmem:[%s273 + $0x74] sm:$0xff]
      %v1755 = vld [vmem:[%s273 + $0x7c] sm:$0xff]
      %v1756 = vld [vmem:[%s273 + $0x84] sm:$0xff]
      %v1757 = vld [vmem:[%s273 + $0x8c] sm:$0xff]
      %v1758 = vld [vmem:[%s273 + $0x94] sm:$0xff]
      %v1759 = vld [vmem:[%s273 + $0x9c] sm:$0xff]
      %v1760 = vld [vmem:[%s273 + $0xa4] sm:$0xff]
      %v1761 = vld [vmem:[%s273 + $0xac] sm:$0xff]
      %v1762 = vld [vmem:[%s273 + $0xb4] sm:$0xff]
      %v1763 = vld [vmem:[%s273 + $0xbc] sm:$0xff]
      %v1764 = vld [vmem:[%s273 + $0xc4] sm:$0xff]
      %v1765 = vld [vmem:[%s273 + $0xcc] sm:$0xff]
      %v1766 = vld [vmem:[%s273 + $0xd4] sm:$0xff]
      %v1767 = vld [vmem:[%s273 + $0xdc] sm:$0xff]
      %v1768 = vld [vmem:[%s273 + $0xe4] sm:$0xff]
      %v1769 = vld [vmem:[%s273 + $0xec] sm:$0xff]
      %v1770 = vld [vmem:[%s273 + $0xf4] sm:$0xff]
      %v1771 = vld [vmem:[%s273 + $0xfc] sm:$0xff]
      %v1772 = vld [vmem:[%s273 + $0x104] sm:$0xff]
      %v1773 = vld [vmem:[%s273 + $0x10c] sm:$0xff]
      %v1774 = vld [vmem:[%s273 + $0x114] sm:$0xff]
      %v1775 = vld [vmem:[%s273 + $0x11c] sm:$0xff]
      %v1776 = vld [vmem:[%s273 + $0x124] sm:$0xff]
      %v1777 = vld [vmem:[%s273 + $0x12c] sm:$0xff]
      %s1778 = scalar_lea.vmem %s1, 40
      %v1779 = vld [vmem:[%s1778] sm:$0xff]
      %v1781 = vsel %vm354, %v1742, 0
      %v1784 = vsel %vm354, %v1743, 0
      %v1787 = vsel %vm354, %v1744, 0
      %v1790 = vsel %vm354, %v1745, 0
      %v1793 = vsel %vm354, %v1746, 0
      %v1796 = vsel %vm354, %v1747, 0
      %v1799 = vsel %vm354, %v1748, 0
      %v1802 = vsel %vm354, %v1749, 0
      %v1805 = vsel %vm354, %v1750, 0
      %v1808 = vsel %vm354, %v1751, 0
      %v1811 = vsel %vm354, %v1752, 0
      %v1814 = vsel %vm354, %v1753, 0
      %v1817 = vsel %vm354, %v1754, 0
      %v1820 = vsel %vm354, %v1755, 0
      %v1823 = vsel %vm354, %v1756, 0
      %v1826 = vsel %vm354, %v1757, 0
      %v1829 = vsel %vm354, %v1758, 0
      %v1832 = vsel %vm354, %v1759, 0
      %v1835 = vsel %vm354, %v1760, 0
      %v1838 = vsel %vm354, %v1761, 0
      %v1841 = vsel %vm354, %v1762, 0
      %v1844 = vsel %vm354, %v1763, 0
      %v1847 = vsel %vm354, %v1764, 0
      %v1850 = vsel %vm354, %v1765, 0
      %v1853 = vsel %vm354, %v1766, 0
      %v1856 = vsel %vm354, %v1767, 0
      %v1859 = vsel %vm354, %v1768, 0
      %v1862 = vsel %vm354, %v1769, 0
      %v1865 = vsel %vm354, %v1770, 0
      %v1868 = vsel %vm354, %v1771, 0
      %v1871 = vsel %vm354, %v1772, 0
      %v1874 = vsel %vm354, %v1773, 0
      %v1877 = vsel %vm354, %v1774, 0
      %v1880 = vsel %vm354, %v1775, 0
      %v1883 = vsel %vm354, %v1776, 0
      %v1886 = vsel %vm354, %v1777, 0
      %1888 = vmatpush.msra.mxu0 0.0
      %1889 = vmatpush.msra.mxu0 0.0
      %1890 = vmatpush.msra.mxu0 0.0
      %1891 = vmatpush.msra.mxu0 0.0
      %1892 = vmatpush.msra.mxu0 0.0
      %1893 = vmatpush.msra.mxu0 0.0
      %1894 = vmatpush.msra.mxu0 0.0
      %1895 = vmatpush.msra.mxu0 0.0
      %1896 = vmatpush.msra.mxu0 0.0
      %1897 = vmatpush.msra.mxu0 0.0
      %1898 = vmatpush.msra.mxu0 0.0
      %1899 = vmatpush.msra.mxu0 0.0
      %1900 = vmatpush.msra.mxu0 0.0
      %1901 = vmatpush.msra.mxu0 0.0
      %1902 = vmatpush.msra.mxu0 0.0
      %1903 = vmatpush.msra.mxu0 %v1779
      %1904 = vmatmul.f32.gmra.mxu0 %v1781
      %v1905 = vpop.f32.mrf.mxu0
      %v1906 = vadd.f32 0.0, %v1905
      %1907 = vmatmul.f32.gmra.mxu0 %v1784
      %v1908 = vpop.f32.mrf.mxu0
      %v1909 = vadd.f32 0.0, %v1908
      %1910 = vmatmul.f32.gmra.mxu0 %v1787
      %v1911 = vpop.f32.mrf.mxu0
      %v1912 = vadd.f32 0.0, %v1911
      %1913 = vmatmul.f32.gmra.mxu0 %v1790
      %v1914 = vpop.f32.mrf.mxu0
      %v1915 = vadd.f32 0.0, %v1914
      %1916 = vmatmul.f32.gmra.mxu0 %v1793
      %v1917 = vpop.f32.mrf.mxu0
      %v1918 = vadd.f32 0.0, %v1917
      %1919 = vmatmul.f32.gmra.mxu0 %v1796
      %v1920 = vpop.f32.mrf.mxu0
      %v1921 = vadd.f32 0.0, %v1920
      %1922 = vmatmul.f32.gmra.mxu0 %v1799
      %v1923 = vpop.f32.mrf.mxu0
      %v1924 = vadd.f32 0.0, %v1923
      %1925 = vmatmul.f32.gmra.mxu0 %v1802
      %v1926 = vpop.f32.mrf.mxu0
      %v1927 = vadd.f32 0.0, %v1926
      %1928 = vmatmul.f32.gmra.mxu0 %v1805
      %v1929 = vpop.f32.mrf.mxu0
      %v1930 = vadd.f32 0.0, %v1929
      %1931 = vmatmul.f32.gmra.mxu0 %v1808
      %v1932 = vpop.f32.mrf.mxu0
      %v1933 = vadd.f32 0.0, %v1932
      %1934 = vmatmul.f32.gmra.mxu0 %v1811
      %v1935 = vpop.f32.mrf.mxu0
      %v1936 = vadd.f32 0.0, %v1935
      %1937 = vmatmul.f32.gmra.mxu0 %v1814
      %v1938 = vpop.f32.mrf.mxu0
      %v1939 = vadd.f32 0.0, %v1938
      %1940 = vmatmul.f32.gmra.mxu0 %v1817
      %v1941 = vpop.f32.mrf.mxu0
      %v1942 = vadd.f32 0.0, %v1941
      %1943 = vmatmul.f32.gmra.mxu0 %v1820
      %v1944 = vpop.f32.mrf.mxu0
      %v1945 = vadd.f32 0.0, %v1944
      %1946 = vmatmul.f32.gmra.mxu0 %v1823
      %v1947 = vpop.f32.mrf.mxu0
      %v1948 = vadd.f32 0.0, %v1947
      %1949 = vmatmul.f32.gmra.mxu0 %v1826
      %v1950 = vpop.f32.mrf.mxu0
      %v1951 = vadd.f32 0.0, %v1950
      %1952 = vmatmul.f32.gmra.mxu0 %v1829
      %v1953 = vpop.f32.mrf.mxu0
      %v1954 = vadd.f32 0.0, %v1953
      %1955 = vmatmul.f32.gmra.mxu0 %v1832
      %v1956 = vpop.f32.mrf.mxu0
      %v1957 = vadd.f32 0.0, %v1956
      %1958 = vmatmul.f32.gmra.mxu0 %v1835
      %v1959 = vpop.f32.mrf.mxu0
      %v1960 = vadd.f32 0.0, %v1959
      %1961 = vmatmul.f32.gmra.mxu0 %v1838
      %v1962 = vpop.f32.mrf.mxu0
      %v1963 = vadd.f32 0.0, %v1962
      %1964 = vmatmul.f32.gmra.mxu0 %v1841
      %v1965 = vpop.f32.mrf.mxu0
      %v1966 = vadd.f32 0.0, %v1965
      %1967 = vmatmul.f32.gmra.mxu0 %v1844
      %v1968 = vpop.f32.mrf.mxu0
      %v1969 = vadd.f32 0.0, %v1968
      %1970 = vmatmul.f32.gmra.mxu0 %v1847
      %v1971 = vpop.f32.mrf.mxu0
      %v1972 = vadd.f32 0.0, %v1971
      %1973 = vmatmul.f32.gmra.mxu0 %v1850
      %v1974 = vpop.f32.mrf.mxu0
      %v1975 = vadd.f32 0.0, %v1974
      %1976 = vmatmul.f32.gmra.mxu0 %v1853
      %v1977 = vpop.f32.mrf.mxu0
      %v1978 = vadd.f32 0.0, %v1977
      %1979 = vmatmul.f32.gmra.mxu0 %v1856
      %v1980 = vpop.f32.mrf.mxu0
      %v1981 = vadd.f32 0.0, %v1980
      %1982 = vmatmul.f32.gmra.mxu0 %v1859
      %v1983 = vpop.f32.mrf.mxu0
      %v1984 = vadd.f32 0.0, %v1983
      %1985 = vmatmul.f32.gmra.mxu0 %v1862
      %v1986 = vpop.f32.mrf.mxu0
      %v1987 = vadd.f32 0.0, %v1986
      %1988 = vmatmul.f32.gmra.mxu0 %v1865
      %v1989 = vpop.f32.mrf.mxu0
      %v1990 = vadd.f32 0.0, %v1989
      %1991 = vmatmul.f32.gmra.mxu0 %v1868
      %v1992 = vpop.f32.mrf.mxu0
      %v1993 = vadd.f32 0.0, %v1992
      %1994 = vmatmul.f32.gmra.mxu0 %v1871
      %v1995 = vpop.f32.mrf.mxu0
      %v1996 = vadd.f32 0.0, %v1995
      %1997 = vmatmul.f32.gmra.mxu0 %v1874
      %v1998 = vpop.f32.mrf.mxu0
      %v1999 = vadd.f32 0.0, %v1998
      %2000 = vmatmul.f32.gmra.mxu0 %v1877
      %v2001 = vpop.f32.mrf.mxu0
      %v2002 = vadd.f32 0.0, %v2001
      %2003 = vmatmul.f32.gmra.mxu0 %v1880
      %v2004 = vpop.f32.mrf.mxu0
      %v2005 = vadd.f32 0.0, %v2004
      %2006 = vmatmul.f32.gmra.mxu0 %v1883
      %v2007 = vpop.f32.mrf.mxu0
      %v2008 = vadd.f32 0.0, %v2007
      %2009 = vmatmul.f32.gmra.mxu0 %v1886
      %v2010 = vpop.f32.mrf.mxu0
      %v2011 = vadd.f32 0.0, %v2010
      %2012 = vdwg.mxu0
      %v2013 = vadd.f32 %v1706, %v1906
      %v2014 = vadd.f32 %v1707, %v1909
      %v2015 = vadd.f32 %v1708, %v1912
      %v2016 = vadd.f32 %v1709, %v1915
      %v2017 = vadd.f32 %v1710, %v1918
      %v2018 = vadd.f32 %v1711, %v1921
      %v2019 = vadd.f32 %v1712, %v1924
      %v2020 = vadd.f32 %v1713, %v1927
      %v2021 = vadd.f32 %v1714, %v1930
      %v2022 = vadd.f32 %v1715, %v1933
      %v2023 = vadd.f32 %v1716, %v1936
      %v2024 = vadd.f32 %v1717, %v1939
      %v2025 = vadd.f32 %v1718, %v1942
      %v2026 = vadd.f32 %v1719, %v1945
      %v2027 = vadd.f32 %v1720, %v1948
      %v2028 = vadd.f32 %v1721, %v1951
      %v2029 = vadd.f32 %v1722, %v1954
      %v2030 = vadd.f32 %v1723, %v1957
      %v2031 = vadd.f32 %v1724, %v1960
      %v2032 = vadd.f32 %v1725, %v1963
      %v2033 = vadd.f32 %v1726, %v1966
      %v2034 = vadd.f32 %v1727, %v1969
      %v2035 = vadd.f32 %v1728, %v1972
      %v2036 = vadd.f32 %v1729, %v1975
      %v2037 = vadd.f32 %v1730, %v1978
      %v2038 = vadd.f32 %v1731, %v1981
      %v2039 = vadd.f32 %v1732, %v1984
      %v2040 = vadd.f32 %v1733, %v1987
      %v2041 = vadd.f32 %v1734, %v1990
      %v2042 = vadd.f32 %v1735, %v1993
      %v2043 = vadd.f32 %v1736, %v1996
      %v2044 = vadd.f32 %v1737, %v1999
      %v2045 = vadd.f32 %v1738, %v2002
      %v2046 = vadd.f32 %v1739, %v2005
      %v2047 = vadd.f32 %v1740, %v2008
      %v2048 = vadd.f32 %v1741, %v2011
      %v2049 = vld [vmem:[%s273 + $0x24] sm:$0xff]
      %v2050 = vld [vmem:[%s273 + $0x2c] sm:$0xff]
      %v2051 = vld [vmem:[%s273 + $0x34] sm:$0xff]
      %v2052 = vld [vmem:[%s273 + $0x3c] sm:$0xff]
      %v2053 = vld [vmem:[%s273 + $0x44] sm:$0xff]
      %v2054 = vld [vmem:[%s273 + $0x4c] sm:$0xff]
      %v2055 = vld [vmem:[%s273 + $0x54] sm:$0xff]
      %v2056 = vld [vmem:[%s273 + $0x5c] sm:$0xff]
      %v2057 = vld [vmem:[%s273 + $0x64] sm:$0xff]
      %v2058 = vld [vmem:[%s273 + $0x6c] sm:$0xff]
      %v2059 = vld [vmem:[%s273 + $0x74] sm:$0xff]
      %v2060 = vld [vmem:[%s273 + $0x7c] sm:$0xff]
      %v2061 = vld [vmem:[%s273 + $0x84] sm:$0xff]
      %v2062 = vld [vmem:[%s273 + $0x8c] sm:$0xff]
      %v2063 = vld [vmem:[%s273 + $0x94] sm:$0xff]
      %v2064 = vld [vmem:[%s273 + $0x9c] sm:$0xff]
      %v2065 = vld [vmem:[%s273 + $0xa4] sm:$0xff]
      %v2066 = vld [vmem:[%s273 + $0xac] sm:$0xff]
      %v2067 = vld [vmem:[%s273 + $0xb4] sm:$0xff]
      %v2068 = vld [vmem:[%s273 + $0xbc] sm:$0xff]
      %v2069 = vld [vmem:[%s273 + $0xc4] sm:$0xff]
      %v2070 = vld [vmem:[%s273 + $0xcc] sm:$0xff]
      %v2071 = vld [vmem:[%s273 + $0xd4] sm:$0xff]
      %v2072 = vld [vmem:[%s273 + $0xdc] sm:$0xff]
      %v2073 = vld [vmem:[%s273 + $0xe4] sm:$0xff]
      %v2074 = vld [vmem:[%s273 + $0xec] sm:$0xff]
      %v2075 = vld [vmem:[%s273 + $0xf4] sm:$0xff]
      %v2076 = vld [vmem:[%s273 + $0xfc] sm:$0xff]
      %v2077 = vld [vmem:[%s273 + $0x104] sm:$0xff]
      %v2078 = vld [vmem:[%s273 + $0x10c] sm:$0xff]
      %v2079 = vld [vmem:[%s273 + $0x114] sm:$0xff]
      %v2080 = vld [vmem:[%s273 + $0x11c] sm:$0xff]
      %v2081 = vld [vmem:[%s273 + $0x124] sm:$0xff]
      %v2082 = vld [vmem:[%s273 + $0x12c] sm:$0xff]
      %v2083 = vld [vmem:[%s273 + $0x134] sm:$0xff]
      %v2084 = vld [vmem:[%s273 + $0x13c] sm:$0xff]
      %s2085 = scalar_lea.vmem %s1, 48
      %v2086 = vld [vmem:[%s2085] sm:$0xff]
      %v2088 = vsel %vm354, %v2049, 0
      %v2091 = vsel %vm354, %v2050, 0
      %v2094 = vsel %vm354, %v2051, 0
      %v2097 = vsel %vm354, %v2052, 0
      %v2100 = vsel %vm354, %v2053, 0
      %v2103 = vsel %vm354, %v2054, 0
      %v2106 = vsel %vm354, %v2055, 0
      %v2109 = vsel %vm354, %v2056, 0
      %v2112 = vsel %vm354, %v2057, 0
      %v2115 = vsel %vm354, %v2058, 0
      %v2118 = vsel %vm354, %v2059, 0
      %v2121 = vsel %vm354, %v2060, 0
      %v2124 = vsel %vm354, %v2061, 0
      %v2127 = vsel %vm354, %v2062, 0
      %v2130 = vsel %vm354, %v2063, 0
      %v2133 = vsel %vm354, %v2064, 0
      %v2136 = vsel %vm354, %v2065, 0
      %v2139 = vsel %vm354, %v2066, 0
      %v2142 = vsel %vm354, %v2067, 0
      %v2145 = vsel %vm354, %v2068, 0
      %v2148 = vsel %vm354, %v2069, 0
      %v2151 = vsel %vm354, %v2070, 0
      %v2154 = vsel %vm354, %v2071, 0
      %v2157 = vsel %vm354, %v2072, 0
      %v2160 = vsel %vm354, %v2073, 0
      %v2163 = vsel %vm354, %v2074, 0
      %v2166 = vsel %vm354, %v2075, 0
      %v2169 = vsel %vm354, %v2076, 0
      %v2172 = vsel %vm354, %v2077, 0
      %v2175 = vsel %vm354, %v2078, 0
      %v2178 = vsel %vm354, %v2079, 0
      %v2181 = vsel %vm354, %v2080, 0
      %v2184 = vsel %vm354, %v2081, 0
      %v2187 = vsel %vm354, %v2082, 0
      %v2190 = vsel %vm354, %v2083, 0
      %v2193 = vsel %vm354, %v2084, 0
      %2195 = vmatpush.msra.mxu0 0.0
      %2196 = vmatpush.msra.mxu0 0.0
      %2197 = vmatpush.msra.mxu0 0.0
      %2198 = vmatpush.msra.mxu0 0.0
      %2199 = vmatpush.msra.mxu0 0.0
      %2200 = vmatpush.msra.mxu0 0.0
      %2201 = vmatpush.msra.mxu0 0.0
      %2202 = vmatpush.msra.mxu0 0.0
      %2203 = vmatpush.msra.mxu0 0.0
      %2204 = vmatpush.msra.mxu0 0.0
      %2205 = vmatpush.msra.mxu0 0.0
      %2206 = vmatpush.msra.mxu0 0.0
      %2207 = vmatpush.msra.mxu0 0.0
      %2208 = vmatpush.msra.mxu0 0.0
      %2209 = vmatpush.msra.mxu0 0.0
      %2210 = vmatpush.msra.mxu0 %v2086
      %2211 = vmatmul.f32.gmra.mxu0 %v2088
      %v2212 = vpop.f32.mrf.mxu0
      %v2213 = vadd.f32 0.0, %v2212
      %2214 = vmatmul.f32.gmra.mxu0 %v2091
      %v2215 = vpop.f32.mrf.mxu0
      %v2216 = vadd.f32 0.0, %v2215
      %2217 = vmatmul.f32.gmra.mxu0 %v2094
      %v2218 = vpop.f32.mrf.mxu0
      %v2219 = vadd.f32 0.0, %v2218
      %2220 = vmatmul.f32.gmra.mxu0 %v2097
      %v2221 = vpop.f32.mrf.mxu0
      %v2222 = vadd.f32 0.0, %v2221
      %2223 = vmatmul.f32.gmra.mxu0 %v2100
      %v2224 = vpop.f32.mrf.mxu0
      %v2225 = vadd.f32 0.0, %v2224
      %2226 = vmatmul.f32.gmra.mxu0 %v2103
      %v2227 = vpop.f32.mrf.mxu0
      %v2228 = vadd.f32 0.0, %v2227
      %2229 = vmatmul.f32.gmra.mxu0 %v2106
      %v2230 = vpop.f32.mrf.mxu0
      %v2231 = vadd.f32 0.0, %v2230
      %2232 = vmatmul.f32.gmra.mxu0 %v2109
      %v2233 = vpop.f32.mrf.mxu0
      %v2234 = vadd.f32 0.0, %v2233
      %2235 = vmatmul.f32.gmra.mxu0 %v2112
      %v2236 = vpop.f32.mrf.mxu0
      %v2237 = vadd.f32 0.0, %v2236
      %2238 = vmatmul.f32.gmra.mxu0 %v2115
      %v2239 = vpop.f32.mrf.mxu0
      %v2240 = vadd.f32 0.0, %v2239
      %2241 = vmatmul.f32.gmra.mxu0 %v2118
      %v2242 = vpop.f32.mrf.mxu0
      %v2243 = vadd.f32 0.0, %v2242
      %2244 = vmatmul.f32.gmra.mxu0 %v2121
      %v2245 = vpop.f32.mrf.mxu0
      %v2246 = vadd.f32 0.0, %v2245
      %2247 = vmatmul.f32.gmra.mxu0 %v2124
      %v2248 = vpop.f32.mrf.mxu0
      %v2249 = vadd.f32 0.0, %v2248
      %2250 = vmatmul.f32.gmra.mxu0 %v2127
      %v2251 = vpop.f32.mrf.mxu0
      %v2252 = vadd.f32 0.0, %v2251
      %2253 = vmatmul.f32.gmra.mxu0 %v2130
      %v2254 = vpop.f32.mrf.mxu0
      %v2255 = vadd.f32 0.0, %v2254
      %2256 = vmatmul.f32.gmra.mxu0 %v2133
      %v2257 = vpop.f32.mrf.mxu0
      %v2258 = vadd.f32 0.0, %v2257
      %2259 = vmatmul.f32.gmra.mxu0 %v2136
      %v2260 = vpop.f32.mrf.mxu0
      %v2261 = vadd.f32 0.0, %v2260
      %2262 = vmatmul.f32.gmra.mxu0 %v2139
      %v2263 = vpop.f32.mrf.mxu0
      %v2264 = vadd.f32 0.0, %v2263
      %2265 = vmatmul.f32.gmra.mxu0 %v2142
      %v2266 = vpop.f32.mrf.mxu0
      %v2267 = vadd.f32 0.0, %v2266
      %2268 = vmatmul.f32.gmra.mxu0 %v2145
      %v2269 = vpop.f32.mrf.mxu0
      %v2270 = vadd.f32 0.0, %v2269
      %2271 = vmatmul.f32.gmra.mxu0 %v2148
      %v2272 = vpop.f32.mrf.mxu0
      %v2273 = vadd.f32 0.0, %v2272
      %2274 = vmatmul.f32.gmra.mxu0 %v2151
      %v2275 = vpop.f32.mrf.mxu0
      %v2276 = vadd.f32 0.0, %v2275
      %2277 = vmatmul.f32.gmra.mxu0 %v2154
      %v2278 = vpop.f32.mrf.mxu0
      %v2279 = vadd.f32 0.0, %v2278
      %2280 = vmatmul.f32.gmra.mxu0 %v2157
      %v2281 = vpop.f32.mrf.mxu0
      %v2282 = vadd.f32 0.0, %v2281
      %2283 = vmatmul.f32.gmra.mxu0 %v2160
      %v2284 = vpop.f32.mrf.mxu0
      %v2285 = vadd.f32 0.0, %v2284
      %2286 = vmatmul.f32.gmra.mxu0 %v2163
      %v2287 = vpop.f32.mrf.mxu0
      %v2288 = vadd.f32 0.0, %v2287
      %2289 = vmatmul.f32.gmra.mxu0 %v2166
      %v2290 = vpop.f32.mrf.mxu0
      %v2291 = vadd.f32 0.0, %v2290
      %2292 = vmatmul.f32.gmra.mxu0 %v2169
      %v2293 = vpop.f32.mrf.mxu0
      %v2294 = vadd.f32 0.0, %v2293
      %2295 = vmatmul.f32.gmra.mxu0 %v2172
      %v2296 = vpop.f32.mrf.mxu0
      %v2297 = vadd.f32 0.0, %v2296
      %2298 = vmatmul.f32.gmra.mxu0 %v2175
      %v2299 = vpop.f32.mrf.mxu0
      %v2300 = vadd.f32 0.0, %v2299
      %2301 = vmatmul.f32.gmra.mxu0 %v2178
      %v2302 = vpop.f32.mrf.mxu0
      %v2303 = vadd.f32 0.0, %v2302
      %2304 = vmatmul.f32.gmra.mxu0 %v2181
      %v2305 = vpop.f32.mrf.mxu0
      %v2306 = vadd.f32 0.0, %v2305
      %2307 = vmatmul.f32.gmra.mxu0 %v2184
      %v2308 = vpop.f32.mrf.mxu0
      %v2309 = vadd.f32 0.0, %v2308
      %2310 = vmatmul.f32.gmra.mxu0 %v2187
      %v2311 = vpop.f32.mrf.mxu0
      %v2312 = vadd.f32 0.0, %v2311
      %2313 = vmatmul.f32.gmra.mxu0 %v2190
      %v2314 = vpop.f32.mrf.mxu0
      %v2315 = vadd.f32 0.0, %v2314
      %2316 = vmatmul.f32.gmra.mxu0 %v2193
      %v2317 = vpop.f32.mrf.mxu0
      %v2318 = vadd.f32 0.0, %v2317
      %2319 = vdwg.mxu0
      %v2320 = vadd.f32 %v2013, %v2213
      %v2321 = vadd.f32 %v2014, %v2216
      %v2322 = vadd.f32 %v2015, %v2219
      %v2323 = vadd.f32 %v2016, %v2222
      %v2324 = vadd.f32 %v2017, %v2225
      %v2325 = vadd.f32 %v2018, %v2228
      %v2326 = vadd.f32 %v2019, %v2231
      %v2327 = vadd.f32 %v2020, %v2234
      %v2328 = vadd.f32 %v2021, %v2237
      %v2329 = vadd.f32 %v2022, %v2240
      %v2330 = vadd.f32 %v2023, %v2243
      %v2331 = vadd.f32 %v2024, %v2246
      %v2332 = vadd.f32 %v2025, %v2249
      %v2333 = vadd.f32 %v2026, %v2252
      %v2334 = vadd.f32 %v2027, %v2255
      %v2335 = vadd.f32 %v2028, %v2258
      %v2336 = vadd.f32 %v2029, %v2261
      %v2337 = vadd.f32 %v2030, %v2264
      %v2338 = vadd.f32 %v2031, %v2267
      %v2339 = vadd.f32 %v2032, %v2270
      %v2340 = vadd.f32 %v2033, %v2273
      %v2341 = vadd.f32 %v2034, %v2276
      %v2342 = vadd.f32 %v2035, %v2279
      %v2343 = vadd.f32 %v2036, %v2282
      %v2344 = vadd.f32 %v2037, %v2285
      %v2345 = vadd.f32 %v2038, %v2288
      %v2346 = vadd.f32 %v2039, %v2291
      %v2347 = vadd.f32 %v2040, %v2294
      %v2348 = vadd.f32 %v2041, %v2297
      %v2349 = vadd.f32 %v2042, %v2300
      %v2350 = vadd.f32 %v2043, %v2303
      %v2351 = vadd.f32 %v2044, %v2306
      %v2352 = vadd.f32 %v2045, %v2309
      %v2353 = vadd.f32 %v2046, %v2312
      %v2354 = vadd.f32 %v2047, %v2315
      %v2355 = vadd.f32 %v2048, %v2318
      %v2356 = vld [vmem:[%s273 + $0x25] sm:$0xff]
      %v2357 = vld [vmem:[%s273 + $0x2d] sm:$0xff]
      %v2358 = vld [vmem:[%s273 + $0x35] sm:$0xff]
      %v2359 = vld [vmem:[%s273 + $0x3d] sm:$0xff]
      %v2360 = vld [vmem:[%s273 + $0x45] sm:$0xff]
      %v2361 = vld [vmem:[%s273 + $0x4d] sm:$0xff]
      %v2362 = vld [vmem:[%s273 + $0x55] sm:$0xff]
      %v2363 = vld [vmem:[%s273 + $0x5d] sm:$0xff]
      %v2364 = vld [vmem:[%s273 + $0x65] sm:$0xff]
      %v2365 = vld [vmem:[%s273 + $0x6d] sm:$0xff]
      %v2366 = vld [vmem:[%s273 + $0x75] sm:$0xff]
      %v2367 = vld [vmem:[%s273 + $0x7d] sm:$0xff]
      %v2368 = vld [vmem:[%s273 + $0x85] sm:$0xff]
      %v2369 = vld [vmem:[%s273 + $0x8d] sm:$0xff]
      %v2370 = vld [vmem:[%s273 + $0x95] sm:$0xff]
      %v2371 = vld [vmem:[%s273 + $0x9d] sm:$0xff]
      %v2372 = vld [vmem:[%s273 + $0xa5] sm:$0xff]
      %v2373 = vld [vmem:[%s273 + $0xad] sm:$0xff]
      %v2374 = vld [vmem:[%s273 + $0xb5] sm:$0xff]
      %v2375 = vld [vmem:[%s273 + $0xbd] sm:$0xff]
      %v2376 = vld [vmem:[%s273 + $0xc5] sm:$0xff]
      %v2377 = vld [vmem:[%s273 + $0xcd] sm:$0xff]
      %v2378 = vld [vmem:[%s273 + $0xd5] sm:$0xff]
      %v2379 = vld [vmem:[%s273 + $0xdd] sm:$0xff]
      %v2380 = vld [vmem:[%s273 + $0xe5] sm:$0xff]
      %v2381 = vld [vmem:[%s273 + $0xed] sm:$0xff]
      %v2382 = vld [vmem:[%s273 + $0xf5] sm:$0xff]
      %v2383 = vld [vmem:[%s273 + $0xfd] sm:$0xff]
      %v2384 = vld [vmem:[%s273 + $0x105] sm:$0xff]
      %v2385 = vld [vmem:[%s273 + $0x10d] sm:$0xff]
      %v2386 = vld [vmem:[%s273 + $0x115] sm:$0xff]
      %v2387 = vld [vmem:[%s273 + $0x11d] sm:$0xff]
      %v2388 = vld [vmem:[%s273 + $0x125] sm:$0xff]
      %v2389 = vld [vmem:[%s273 + $0x12d] sm:$0xff]
      %v2390 = vld [vmem:[%s273 + $0x135] sm:$0xff]
      %v2391 = vld [vmem:[%s273 + $0x13d] sm:$0xff]
      %s2392 = scalar_lea.vmem %s1, 56
      %v2393 = vld [vmem:[%s2392] sm:$0xff]
      %v2395 = vsel %vm354, %v2356, 0
      %v2398 = vsel %vm354, %v2357, 0
      %v2401 = vsel %vm354, %v2358, 0
      %v2404 = vsel %vm354, %v2359, 0
      %v2407 = vsel %vm354, %v2360, 0
      %v2410 = vsel %vm354, %v2361, 0
      %v2413 = vsel %vm354, %v2362, 0
      %v2416 = vsel %vm354, %v2363, 0
      %v2419 = vsel %vm354, %v2364, 0
      %v2422 = vsel %vm354, %v2365, 0
      %v2425 = vsel %vm354, %v2366, 0
      %v2428 = vsel %vm354, %v2367, 0
      %v2431 = vsel %vm354, %v2368, 0
      %v2434 = vsel %vm354, %v2369, 0
      %v2437 = vsel %vm354, %v2370, 0
      %v2440 = vsel %vm354, %v2371, 0
      %v2443 = vsel %vm354, %v2372, 0
      %v2446 = vsel %vm354, %v2373, 0
      %v2449 = vsel %vm354, %v2374, 0
      %v2452 = vsel %vm354, %v2375, 0
      %v2455 = vsel %vm354, %v2376, 0
      %v2458 = vsel %vm354, %v2377, 0
      %v2461 = vsel %vm354, %v2378, 0
      %v2464 = vsel %vm354, %v2379, 0
      %v2467 = vsel %vm354, %v2380, 0
      %v2470 = vsel %vm354, %v2381, 0
      %v2473 = vsel %vm354, %v2382, 0
      %v2476 = vsel %vm354, %v2383, 0
      %v2479 = vsel %vm354, %v2384, 0
      %v2482 = vsel %vm354, %v2385, 0
      %v2485 = vsel %vm354, %v2386, 0
      %v2488 = vsel %vm354, %v2387, 0
      %v2491 = vsel %vm354, %v2388, 0
      %v2494 = vsel %vm354, %v2389, 0
      %v2497 = vsel %vm354, %v2390, 0
      %v2500 = vsel %vm354, %v2391, 0
      %2502 = vmatpush.msra.mxu0 0.0
      %2503 = vmatpush.msra.mxu0 0.0
      %2504 = vmatpush.msra.mxu0 0.0
      %2505 = vmatpush.msra.mxu0 0.0
      %2506 = vmatpush.msra.mxu0 0.0
      %2507 = vmatpush.msra.mxu0 0.0
      %2508 = vmatpush.msra.mxu0 0.0
      %2509 = vmatpush.msra.mxu0 0.0
      %2510 = vmatpush.msra.mxu0 0.0
      %2511 = vmatpush.msra.mxu0 0.0
      %2512 = vmatpush.msra.mxu0 0.0
      %2513 = vmatpush.msra.mxu0 0.0
      %2514 = vmatpush.msra.mxu0 0.0
      %2515 = vmatpush.msra.mxu0 0.0
      %2516 = vmatpush.msra.mxu0 0.0
      %2517 = vmatpush.msra.mxu0 %v2393
      %2518 = vmatmul.f32.gmra.mxu0 %v2395
      %v2519 = vpop.f32.mrf.mxu0
      %v2520 = vadd.f32 0.0, %v2519
      %2521 = vmatmul.f32.gmra.mxu0 %v2398
      %v2522 = vpop.f32.mrf.mxu0
      %v2523 = vadd.f32 0.0, %v2522
      %2524 = vmatmul.f32.gmra.mxu0 %v2401
      %v2525 = vpop.f32.mrf.mxu0
      %v2526 = vadd.f32 0.0, %v2525
      %2527 = vmatmul.f32.gmra.mxu0 %v2404
      %v2528 = vpop.f32.mrf.mxu0
      %v2529 = vadd.f32 0.0, %v2528
      %2530 = vmatmul.f32.gmra.mxu0 %v2407
      %v2531 = vpop.f32.mrf.mxu0
      %v2532 = vadd.f32 0.0, %v2531
      %2533 = vmatmul.f32.gmra.mxu0 %v2410
      %v2534 = vpop.f32.mrf.mxu0
      %v2535 = vadd.f32 0.0, %v2534
      %2536 = vmatmul.f32.gmra.mxu0 %v2413
      %v2537 = vpop.f32.mrf.mxu0
      %v2538 = vadd.f32 0.0, %v2537
      %2539 = vmatmul.f32.gmra.mxu0 %v2416
      %v2540 = vpop.f32.mrf.mxu0
      %v2541 = vadd.f32 0.0, %v2540
      %2542 = vmatmul.f32.gmra.mxu0 %v2419
      %v2543 = vpop.f32.mrf.mxu0
      %v2544 = vadd.f32 0.0, %v2543
      %2545 = vmatmul.f32.gmra.mxu0 %v2422
      %v2546 = vpop.f32.mrf.mxu0
      %v2547 = vadd.f32 0.0, %v2546
      %2548 = vmatmul.f32.gmra.mxu0 %v2425
      %v2549 = vpop.f32.mrf.mxu0
      %v2550 = vadd.f32 0.0, %v2549
      %2551 = vmatmul.f32.gmra.mxu0 %v2428
      %v2552 = vpop.f32.mrf.mxu0
      %v2553 = vadd.f32 0.0, %v2552
      %2554 = vmatmul.f32.gmra.mxu0 %v2431
      %v2555 = vpop.f32.mrf.mxu0
      %v2556 = vadd.f32 0.0, %v2555
      %2557 = vmatmul.f32.gmra.mxu0 %v2434
      %v2558 = vpop.f32.mrf.mxu0
      %v2559 = vadd.f32 0.0, %v2558
      %2560 = vmatmul.f32.gmra.mxu0 %v2437
      %v2561 = vpop.f32.mrf.mxu0
      %v2562 = vadd.f32 0.0, %v2561
      %2563 = vmatmul.f32.gmra.mxu0 %v2440
      %v2564 = vpop.f32.mrf.mxu0
      %v2565 = vadd.f32 0.0, %v2564
      %2566 = vmatmul.f32.gmra.mxu0 %v2443
      %v2567 = vpop.f32.mrf.mxu0
      %v2568 = vadd.f32 0.0, %v2567
      %2569 = vmatmul.f32.gmra.mxu0 %v2446
      %v2570 = vpop.f32.mrf.mxu0
      %v2571 = vadd.f32 0.0, %v2570
      %2572 = vmatmul.f32.gmra.mxu0 %v2449
      %v2573 = vpop.f32.mrf.mxu0
      %v2574 = vadd.f32 0.0, %v2573
      %2575 = vmatmul.f32.gmra.mxu0 %v2452
      %v2576 = vpop.f32.mrf.mxu0
      %v2577 = vadd.f32 0.0, %v2576
      %2578 = vmatmul.f32.gmra.mxu0 %v2455
      %v2579 = vpop.f32.mrf.mxu0
      %v2580 = vadd.f32 0.0, %v2579
      %2581 = vmatmul.f32.gmra.mxu0 %v2458
      %v2582 = vpop.f32.mrf.mxu0
      %v2583 = vadd.f32 0.0, %v2582
      %2584 = vmatmul.f32.gmra.mxu0 %v2461
      %v2585 = vpop.f32.mrf.mxu0
      %v2586 = vadd.f32 0.0, %v2585
      %2587 = vmatmul.f32.gmra.mxu0 %v2464
      %v2588 = vpop.f32.mrf.mxu0
      %v2589 = vadd.f32 0.0, %v2588
      %2590 = vmatmul.f32.gmra.mxu0 %v2467
      %v2591 = vpop.f32.mrf.mxu0
      %v2592 = vadd.f32 0.0, %v2591
      %2593 = vmatmul.f32.gmra.mxu0 %v2470
      %v2594 = vpop.f32.mrf.mxu0
      %v2595 = vadd.f32 0.0, %v2594
      %2596 = vmatmul.f32.gmra.mxu0 %v2473
      %v2597 = vpop.f32.mrf.mxu0
      %v2598 = vadd.f32 0.0, %v2597
      %2599 = vmatmul.f32.gmra.mxu0 %v2476
      %v2600 = vpop.f32.mrf.mxu0
      %v2601 = vadd.f32 0.0, %v2600
      %2602 = vmatmul.f32.gmra.mxu0 %v2479
      %v2603 = vpop.f32.mrf.mxu0
      %v2604 = vadd.f32 0.0, %v2603
      %2605 = vmatmul.f32.gmra.mxu0 %v2482
      %v2606 = vpop.f32.mrf.mxu0
      %v2607 = vadd.f32 0.0, %v2606
      %2608 = vmatmul.f32.gmra.mxu0 %v2485
      %v2609 = vpop.f32.mrf.mxu0
      %v2610 = vadd.f32 0.0, %v2609
      %2611 = vmatmul.f32.gmra.mxu0 %v2488
      %v2612 = vpop.f32.mrf.mxu0
      %v2613 = vadd.f32 0.0, %v2612
      %2614 = vmatmul.f32.gmra.mxu0 %v2491
      %v2615 = vpop.f32.mrf.mxu0
      %v2616 = vadd.f32 0.0, %v2615
      %2617 = vmatmul.f32.gmra.mxu0 %v2494
      %v2618 = vpop.f32.mrf.mxu0
      %v2619 = vadd.f32 0.0, %v2618
      %2620 = vmatmul.f32.gmra.mxu0 %v2497
      %v2621 = vpop.f32.mrf.mxu0
      %v2622 = vadd.f32 0.0, %v2621
      %2623 = vmatmul.f32.gmra.mxu0 %v2500
      %v2624 = vpop.f32.mrf.mxu0
      %v2625 = vadd.f32 0.0, %v2624
      %2626 = vdwg.mxu0
      %v2627 = vadd.f32 %v2320, %v2520
      %v2628 = vadd.f32 %v2321, %v2523
      %v2629 = vadd.f32 %v2322, %v2526
      %v2630 = vadd.f32 %v2323, %v2529
      %v2631 = vadd.f32 %v2324, %v2532
      %v2632 = vadd.f32 %v2325, %v2535
      %v2633 = vadd.f32 %v2326, %v2538
      %v2634 = vadd.f32 %v2327, %v2541
      %v2635 = vadd.f32 %v2328, %v2544
      %v2636 = vadd.f32 %v2329, %v2547
      %v2637 = vadd.f32 %v2330, %v2550
      %v2638 = vadd.f32 %v2331, %v2553
      %v2639 = vadd.f32 %v2332, %v2556
      %v2640 = vadd.f32 %v2333, %v2559
      %v2641 = vadd.f32 %v2334, %v2562
      %v2642 = vadd.f32 %v2335, %v2565
      %v2643 = vadd.f32 %v2336, %v2568
      %v2644 = vadd.f32 %v2337, %v2571
      %v2645 = vadd.f32 %v2338, %v2574
      %v2646 = vadd.f32 %v2339, %v2577
      %v2647 = vadd.f32 %v2340, %v2580
      %v2648 = vadd.f32 %v2341, %v2583
      %v2649 = vadd.f32 %v2342, %v2586
      %v2650 = vadd.f32 %v2343, %v2589
      %v2651 = vadd.f32 %v2344, %v2592
      %v2652 = vadd.f32 %v2345, %v2595
      %v2653 = vadd.f32 %v2346, %v2598
      %v2654 = vadd.f32 %v2347, %v2601
      %v2655 = vadd.f32 %v2348, %v2604
      %v2656 = vadd.f32 %v2349, %v2607
      %v2657 = vadd.f32 %v2350, %v2610
      %v2658 = vadd.f32 %v2351, %v2613
      %v2659 = vadd.f32 %v2352, %v2616
      %v2660 = vadd.f32 %v2353, %v2619
      %v2661 = vadd.f32 %v2354, %v2622
      %v2662 = vadd.f32 %v2355, %v2625
      %v2663 = vld [vmem:[%s273 + $0x26] sm:$0xff]
      %v2664 = vld [vmem:[%s273 + $0x2e] sm:$0xff]
      %v2665 = vld [vmem:[%s273 + $0x36] sm:$0xff]
      %v2666 = vld [vmem:[%s273 + $0x3e] sm:$0xff]
      %v2667 = vld [vmem:[%s273 + $0x46] sm:$0xff]
      %v2668 = vld [vmem:[%s273 + $0x4e] sm:$0xff]
      %v2669 = vld [vmem:[%s273 + $0x56] sm:$0xff]
      %v2670 = vld [vmem:[%s273 + $0x5e] sm:$0xff]
      %v2671 = vld [vmem:[%s273 + $0x66] sm:$0xff]
      %v2672 = vld [vmem:[%s273 + $0x6e] sm:$0xff]
      %v2673 = vld [vmem:[%s273 + $0x76] sm:$0xff]
      %v2674 = vld [vmem:[%s273 + $0x7e] sm:$0xff]
      %v2675 = vld [vmem:[%s273 + $0x86] sm:$0xff]
      %v2676 = vld [vmem:[%s273 + $0x8e] sm:$0xff]
      %v2677 = vld [vmem:[%s273 + $0x96] sm:$0xff]
      %v2678 = vld [vmem:[%s273 + $0x9e] sm:$0xff]
      %v2679 = vld [vmem:[%s273 + $0xa6] sm:$0xff]
      %v2680 = vld [vmem:[%s273 + $0xae] sm:$0xff]
      %v2681 = vld [vmem:[%s273 + $0xb6] sm:$0xff]
      %v2682 = vld [vmem:[%s273 + $0xbe] sm:$0xff]
      %v2683 = vld [vmem:[%s273 + $0xc6] sm:$0xff]
      %v2684 = vld [vmem:[%s273 + $0xce] sm:$0xff]
      %v2685 = vld [vmem:[%s273 + $0xd6] sm:$0xff]
      %v2686 = vld [vmem:[%s273 + $0xde] sm:$0xff]
      %v2687 = vld [vmem:[%s273 + $0xe6] sm:$0xff]
      %v2688 = vld [vmem:[%s273 + $0xee] sm:$0xff]
      %v2689 = vld [vmem:[%s273 + $0xf6] sm:$0xff]
      %v2690 = vld [vmem:[%s273 + $0xfe] sm:$0xff]
      %v2691 = vld [vmem:[%s273 + $0x106] sm:$0xff]
      %v2692 = vld [vmem:[%s273 + $0x10e] sm:$0xff]
      %v2693 = vld [vmem:[%s273 + $0x116] sm:$0xff]
      %v2694 = vld [vmem:[%s273 + $0x11e] sm:$0xff]
      %v2695 = vld [vmem:[%s273 + $0x126] sm:$0xff]
      %v2696 = vld [vmem:[%s273 + $0x12e] sm:$0xff]
      %v2697 = vld [vmem:[%s273 + $0x136] sm:$0xff]
      %v2698 = vld [vmem:[%s273 + $0x13e] sm:$0xff]
      %s2699 = scalar_lea.vmem %s1, 64
      %v2700 = vld [vmem:[%s2699] sm:$0xff]
      %v2702 = vsel %vm354, %v2663, 0
      %v2705 = vsel %vm354, %v2664, 0
      %v2708 = vsel %vm354, %v2665, 0
      %v2711 = vsel %vm354, %v2666, 0
      %v2714 = vsel %vm354, %v2667, 0
      %v2717 = vsel %vm354, %v2668, 0
      %v2720 = vsel %vm354, %v2669, 0
      %v2723 = vsel %vm354, %v2670, 0
      %v2726 = vsel %vm354, %v2671, 0
      %v2729 = vsel %vm354, %v2672, 0
      %v2732 = vsel %vm354, %v2673, 0
      %v2735 = vsel %vm354, %v2674, 0
      %v2738 = vsel %vm354, %v2675, 0
      %v2741 = vsel %vm354, %v2676, 0
      %v2744 = vsel %vm354, %v2677, 0
      %v2747 = vsel %vm354, %v2678, 0
      %v2750 = vsel %vm354, %v2679, 0
      %v2753 = vsel %vm354, %v2680, 0
      %v2756 = vsel %vm354, %v2681, 0
      %v2759 = vsel %vm354, %v2682, 0
      %v2762 = vsel %vm354, %v2683, 0
      %v2765 = vsel %vm354, %v2684, 0
      %v2768 = vsel %vm354, %v2685, 0
      %v2771 = vsel %vm354, %v2686, 0
      %v2774 = vsel %vm354, %v2687, 0
      %v2777 = vsel %vm354, %v2688, 0
      %v2780 = vsel %vm354, %v2689, 0
      %v2783 = vsel %vm354, %v2690, 0
      %v2786 = vsel %vm354, %v2691, 0
      %v2789 = vsel %vm354, %v2692, 0
      %v2792 = vsel %vm354, %v2693, 0
      %v2795 = vsel %vm354, %v2694, 0
      %v2798 = vsel %vm354, %v2695, 0
      %v2801 = vsel %vm354, %v2696, 0
      %v2804 = vsel %vm354, %v2697, 0
      %v2807 = vsel %vm354, %v2698, 0
      %2809 = vmatpush.msra.mxu0 0.0
      %2810 = vmatpush.msra.mxu0 0.0
      %2811 = vmatpush.msra.mxu0 0.0
      %2812 = vmatpush.msra.mxu0 0.0
      %2813 = vmatpush.msra.mxu0 0.0
      %2814 = vmatpush.msra.mxu0 0.0
      %2815 = vmatpush.msra.mxu0 0.0
      %2816 = vmatpush.msra.mxu0 0.0
      %2817 = vmatpush.msra.mxu0 0.0
      %2818 = vmatpush.msra.mxu0 0.0
      %2819 = vmatpush.msra.mxu0 0.0
      %2820 = vmatpush.msra.mxu0 0.0
      %2821 = vmatpush.msra.mxu0 0.0
      %2822 = vmatpush.msra.mxu0 0.0
      %2823 = vmatpush.msra.mxu0 0.0
      %2824 = vmatpush.msra.mxu0 %v2700
      %2825 = vmatmul.f32.gmra.mxu0 %v2702
      %v2826 = vpop.f32.mrf.mxu0
      %v2827 = vadd.f32 0.0, %v2826
      %2828 = vmatmul.f32.gmra.mxu0 %v2705
      %v2829 = vpop.f32.mrf.mxu0
      %v2830 = vadd.f32 0.0, %v2829
      %2831 = vmatmul.f32.gmra.mxu0 %v2708
      %v2832 = vpop.f32.mrf.mxu0
      %v2833 = vadd.f32 0.0, %v2832
      %2834 = vmatmul.f32.gmra.mxu0 %v2711
      %v2835 = vpop.f32.mrf.mxu0
      %v2836 = vadd.f32 0.0, %v2835
      %2837 = vmatmul.f32.gmra.mxu0 %v2714
      %v2838 = vpop.f32.mrf.mxu0
      %v2839 = vadd.f32 0.0, %v2838
      %2840 = vmatmul.f32.gmra.mxu0 %v2717
      %v2841 = vpop.f32.mrf.mxu0
      %v2842 = vadd.f32 0.0, %v2841
      %2843 = vmatmul.f32.gmra.mxu0 %v2720
      %v2844 = vpop.f32.mrf.mxu0
      %v2845 = vadd.f32 0.0, %v2844
      %2846 = vmatmul.f32.gmra.mxu0 %v2723
      %v2847 = vpop.f32.mrf.mxu0
      %v2848 = vadd.f32 0.0, %v2847
      %2849 = vmatmul.f32.gmra.mxu0 %v2726
      %v2850 = vpop.f32.mrf.mxu0
      %v2851 = vadd.f32 0.0, %v2850
      %2852 = vmatmul.f32.gmra.mxu0 %v2729
      %v2853 = vpop.f32.mrf.mxu0
      %v2854 = vadd.f32 0.0, %v2853
      %2855 = vmatmul.f32.gmra.mxu0 %v2732
      %v2856 = vpop.f32.mrf.mxu0
      %v2857 = vadd.f32 0.0, %v2856
      %2858 = vmatmul.f32.gmra.mxu0 %v2735
      %v2859 = vpop.f32.mrf.mxu0
      %v2860 = vadd.f32 0.0, %v2859
      %2861 = vmatmul.f32.gmra.mxu0 %v2738
      %v2862 = vpop.f32.mrf.mxu0
      %v2863 = vadd.f32 0.0, %v2862
      %2864 = vmatmul.f32.gmra.mxu0 %v2741
      %v2865 = vpop.f32.mrf.mxu0
      %v2866 = vadd.f32 0.0, %v2865
      %2867 = vmatmul.f32.gmra.mxu0 %v2744
      %v2868 = vpop.f32.mrf.mxu0
      %v2869 = vadd.f32 0.0, %v2868
      %2870 = vmatmul.f32.gmra.mxu0 %v2747
      %v2871 = vpop.f32.mrf.mxu0
      %v2872 = vadd.f32 0.0, %v2871
      %2873 = vmatmul.f32.gmra.mxu0 %v2750
      %v2874 = vpop.f32.mrf.mxu0
      %v2875 = vadd.f32 0.0, %v2874
      %2876 = vmatmul.f32.gmra.mxu0 %v2753
      %v2877 = vpop.f32.mrf.mxu0
      %v2878 = vadd.f32 0.0, %v2877
      %2879 = vmatmul.f32.gmra.mxu0 %v2756
      %v2880 = vpop.f32.mrf.mxu0
      %v2881 = vadd.f32 0.0, %v2880
      %2882 = vmatmul.f32.gmra.mxu0 %v2759
      %v2883 = vpop.f32.mrf.mxu0
      %v2884 = vadd.f32 0.0, %v2883
      %2885 = vmatmul.f32.gmra.mxu0 %v2762
      %v2886 = vpop.f32.mrf.mxu0
      %v2887 = vadd.f32 0.0, %v2886
      %2888 = vmatmul.f32.gmra.mxu0 %v2765
      %v2889 = vpop.f32.mrf.mxu0
      %v2890 = vadd.f32 0.0, %v2889
      %2891 = vmatmul.f32.gmra.mxu0 %v2768
      %v2892 = vpop.f32.mrf.mxu0
      %v2893 = vadd.f32 0.0, %v2892
      %2894 = vmatmul.f32.gmra.mxu0 %v2771
      %v2895 = vpop.f32.mrf.mxu0
      %v2896 = vadd.f32 0.0, %v2895
      %2897 = vmatmul.f32.gmra.mxu0 %v2774
      %v2898 = vpop.f32.mrf.mxu0
      %v2899 = vadd.f32 0.0, %v2898
      %2900 = vmatmul.f32.gmra.mxu0 %v2777
      %v2901 = vpop.f32.mrf.mxu0
      %v2902 = vadd.f32 0.0, %v2901
      %2903 = vmatmul.f32.gmra.mxu0 %v2780
      %v2904 = vpop.f32.mrf.mxu0
      %v2905 = vadd.f32 0.0, %v2904
      %2906 = vmatmul.f32.gmra.mxu0 %v2783
      %v2907 = vpop.f32.mrf.mxu0
      %v2908 = vadd.f32 0.0, %v2907
      %2909 = vmatmul.f32.gmra.mxu0 %v2786
      %v2910 = vpop.f32.mrf.mxu0
      %v2911 = vadd.f32 0.0, %v2910
      %2912 = vmatmul.f32.gmra.mxu0 %v2789
      %v2913 = vpop.f32.mrf.mxu0
      %v2914 = vadd.f32 0.0, %v2913
      %2915 = vmatmul.f32.gmra.mxu0 %v2792
      %v2916 = vpop.f32.mrf.mxu0
      %v2917 = vadd.f32 0.0, %v2916
      %2918 = vmatmul.f32.gmra.mxu0 %v2795
      %v2919 = vpop.f32.mrf.mxu0
      %v2920 = vadd.f32 0.0, %v2919
      %2921 = vmatmul.f32.gmra.mxu0 %v2798
      %v2922 = vpop.f32.mrf.mxu0
      %v2923 = vadd.f32 0.0, %v2922
      %2924 = vmatmul.f32.gmra.mxu0 %v2801
      %v2925 = vpop.f32.mrf.mxu0
      %v2926 = vadd.f32 0.0, %v2925
      %2927 = vmatmul.f32.gmra.mxu0 %v2804
      %v2928 = vpop.f32.mrf.mxu0
      %v2929 = vadd.f32 0.0, %v2928
      %2930 = vmatmul.f32.gmra.mxu0 %v2807
      %v2931 = vpop.f32.mrf.mxu0
      %v2932 = vadd.f32 0.0, %v2931
      %2933 = vdwg.mxu0
      %v2934 = vadd.f32 %v2627, %v2827
      %v2935 = vadd.f32 %v2628, %v2830
      %v2936 = vadd.f32 %v2629, %v2833
      %v2937 = vadd.f32 %v2630, %v2836
      %v2938 = vadd.f32 %v2631, %v2839
      %v2939 = vadd.f32 %v2632, %v2842
      %v2940 = vadd.f32 %v2633, %v2845
      %v2941 = vadd.f32 %v2634, %v2848
      %v2942 = vadd.f32 %v2635, %v2851
      %v2943 = vadd.f32 %v2636, %v2854
      %v2944 = vadd.f32 %v2637, %v2857
      %v2945 = vadd.f32 %v2638, %v2860
      %v2946 = vadd.f32 %v2639, %v2863
      %v2947 = vadd.f32 %v2640, %v2866
      %v2948 = vadd.f32 %v2641, %v2869
      %v2949 = vadd.f32 %v2642, %v2872
      %v2950 = vadd.f32 %v2643, %v2875
      %v2951 = vadd.f32 %v2644, %v2878
      %v2952 = vadd.f32 %v2645, %v2881
      %v2953 = vadd.f32 %v2646, %v2884
      %v2954 = vadd.f32 %v2647, %v2887
      %v2955 = vadd.f32 %v2648, %v2890
      %v2956 = vadd.f32 %v2649, %v2893
      %v2957 = vadd.f32 %v2650, %v2896
      %v2958 = vadd.f32 %v2651, %v2899
      %v2959 = vadd.f32 %v2652, %v2902
      %v2960 = vadd.f32 %v2653, %v2905
      %v2961 = vadd.f32 %v2654, %v2908
      %v2962 = vadd.f32 %v2655, %v2911
      %v2963 = vadd.f32 %v2656, %v2914
      %v2964 = vadd.f32 %v2657, %v2917
      %v2965 = vadd.f32 %v2658, %v2920
      %v2966 = vadd.f32 %v2659, %v2923
      %v2967 = vadd.f32 %v2660, %v2926
      %v2968 = vadd.f32 %v2661, %v2929
      %v2969 = vadd.f32 %v2662, %v2932
      %v2970 = vld [vmem:[%s2] sm:$0x1]
      %v2972 = vperm.slane %v2970, 0
      %v2974 = vadd.f32 %v2934, %v2972
      %v2975 = vadd.f32 %v2935, %v2972
      %v2976 = vadd.f32 %v2936, %v2972
      %v2977 = vadd.f32 %v2937, %v2972
      %v2978 = vadd.f32 %v2938, %v2972
      %v2979 = vadd.f32 %v2939, %v2972
      %v2980 = vadd.f32 %v2940, %v2972
      %v2981 = vadd.f32 %v2941, %v2972
      %v2982 = vadd.f32 %v2942, %v2972
      %v2983 = vadd.f32 %v2943, %v2972
      %v2984 = vadd.f32 %v2944, %v2972
      %v2985 = vadd.f32 %v2945, %v2972
      %v2986 = vadd.f32 %v2946, %v2972
      %v2987 = vadd.f32 %v2947, %v2972
      %v2988 = vadd.f32 %v2948, %v2972
      %v2989 = vadd.f32 %v2949, %v2972
      %v2990 = vadd.f32 %v2950, %v2972
      %v2991 = vadd.f32 %v2951, %v2972
      %v2992 = vadd.f32 %v2952, %v2972
      %v2993 = vadd.f32 %v2953, %v2972
      %v2994 = vadd.f32 %v2954, %v2972
      %v2995 = vadd.f32 %v2955, %v2972
      %v2996 = vadd.f32 %v2956, %v2972
      %v2997 = vadd.f32 %v2957, %v2972
      %v2998 = vadd.f32 %v2958, %v2972
      %v2999 = vadd.f32 %v2959, %v2972
      %v3000 = vadd.f32 %v2960, %v2972
      %v3001 = vadd.f32 %v2961, %v2972
      %v3002 = vadd.f32 %v2962, %v2972
      %v3003 = vadd.f32 %v2963, %v2972
      %v3004 = vadd.f32 %v2964, %v2972
      %v3005 = vadd.f32 %v2965, %v2972
      %v3006 = vadd.f32 %v2966, %v2972
      %v3007 = vadd.f32 %v2967, %v2972
      %v3008 = vadd.f32 %v2968, %v2972
      %v3009 = vadd.f32 %v2969, %v2972
      %v3010 = vld [vmem:[%s6] sm:$0xff]
      %v3011 = vld [vmem:[%s6 + $0x8] sm:$0xff]
      %v3012 = vld [vmem:[%s6 + $0x10] sm:$0xff]
      %v3013 = vld [vmem:[%s6 + $0x18] sm:$0xff]
      %v3014 = vld [vmem:[%s6 + $0x20] sm:$0xff]
      %v3015 = vld [vmem:[%s6 + $0x28] sm:$0xff]
      %v3016 = vld [vmem:[%s6 + $0x30] sm:$0xff]
      %v3017 = vld [vmem:[%s6 + $0x38] sm:$0xff]
      %v3018 = vld [vmem:[%s6 + $0x40] sm:$0xff]
      %v3019 = vld [vmem:[%s6 + $0x48] sm:$0xff]
      %v3020 = vld [vmem:[%s6 + $0x50] sm:$0xff]
      %v3021 = vld [vmem:[%s6 + $0x58] sm:$0xff]
      %v3022 = vld [vmem:[%s6 + $0x60] sm:$0xff]
      %v3023 = vld [vmem:[%s6 + $0x68] sm:$0xff]
      %v3024 = vld [vmem:[%s6 + $0x70] sm:$0xff]
      %v3025 = vld [vmem:[%s6 + $0x78] sm:$0xff]
      %v3026 = vld [vmem:[%s6 + $0x80] sm:$0xff]
      %v3027 = vld [vmem:[%s6 + $0x88] sm:$0xff]
      %v3028 = vld [vmem:[%s6 + $0x90] sm:$0xff]
      %v3029 = vld [vmem:[%s6 + $0x98] sm:$0xff]
      %v3030 = vld [vmem:[%s6 + $0xa0] sm:$0xff]
      %v3031 = vld [vmem:[%s6 + $0xa8] sm:$0xff]
      %v3032 = vld [vmem:[%s6 + $0xb0] sm:$0xff]
      %v3033 = vld [vmem:[%s6 + $0xb8] sm:$0xff]
      %v3034 = vld [vmem:[%s6 + $0xc0] sm:$0xff]
      %v3035 = vld [vmem:[%s6 + $0xc8] sm:$0xff]
      %v3036 = vld [vmem:[%s6 + $0xd0] sm:$0xff]
      %v3037 = vld [vmem:[%s6 + $0xd8] sm:$0xff]
      %v3038 = vld [vmem:[%s6 + $0xe0] sm:$0xff]
      %v3039 = vld [vmem:[%s6 + $0xe8] sm:$0xff]
      %v3040 = vld [vmem:[%s6 + $0xf0] sm:$0xff]
      %v3041 = vld [vmem:[%s6 + $0xf8] sm:$0xff]
      %v3042 = vld [vmem:[%s6 + $0x100] sm:$0xff]
      %v3043 = vld [vmem:[%s6 + $0x108] sm:$0xff]
      %v3044 = vld [vmem:[%s6 + $0x110] sm:$0xff]
      %v3045 = vld [vmem:[%s6 + $0x118] sm:$0xff]
      %3047 = vset.pattern.permute.xlu0 0
      %3048 = vperm.xlu0 %3047, %v3010
      %v3049 = vpop.permute.xlu0 %3048
      %3052 = vset.pattern.permute.xlu0 0
      %3053 = vperm.xlu0 %3052, %v3011
      %v3054 = vpop.permute.xlu0 %3053
      %3057 = vset.pattern.permute.xlu0 0
      %3058 = vperm.xlu0 %3057, %v3012
      %v3059 = vpop.permute.xlu0 %3058
      %3062 = vset.pattern.permute.xlu0 0
      %3063 = vperm.xlu0 %3062, %v3013
      %v3064 = vpop.permute.xlu0 %3063
      %3067 = vset.pattern.permute.xlu0 0
      %3068 = vperm.xlu0 %3067, %v3014
      %v3069 = vpop.permute.xlu0 %3068
      %3072 = vset.pattern.permute.xlu0 0
      %3073 = vperm.xlu0 %3072, %v3015
      %v3074 = vpop.permute.xlu0 %3073
      %3077 = vset.pattern.permute.xlu0 0
      %3078 = vperm.xlu0 %3077, %v3016
      %v3079 = vpop.permute.xlu0 %3078
      %3082 = vset.pattern.permute.xlu0 0
      %3083 = vperm.xlu0 %3082, %v3017
      %v3084 = vpop.permute.xlu0 %3083
      %3087 = vset.pattern.permute.xlu0 0
      %3088 = vperm.xlu0 %3087, %v3018
      %v3089 = vpop.permute.xlu0 %3088
      %3092 = vset.pattern.permute.xlu0 0
      %3093 = vperm.xlu0 %3092, %v3019
      %v3094 = vpop.permute.xlu0 %3093
      %3097 = vset.pattern.permute.xlu0 0
      %3098 = vperm.xlu0 %3097, %v3020
      %v3099 = vpop.permute.xlu0 %3098
      %3102 = vset.pattern.permute.xlu0 0
      %3103 = vperm.xlu0 %3102, %v3021
      %v3104 = vpop.permute.xlu0 %3103
      %3107 = vset.pattern.permute.xlu0 0
      %3108 = vperm.xlu0 %3107, %v3022
      %v3109 = vpop.permute.xlu0 %3108
      %3112 = vset.pattern.permute.xlu0 0
      %3113 = vperm.xlu0 %3112, %v3023
      %v3114 = vpop.permute.xlu0 %3113
      %3117 = vset.pattern.permute.xlu0 0
      %3118 = vperm.xlu0 %3117, %v3024
      %v3119 = vpop.permute.xlu0 %3118
      %3122 = vset.pattern.permute.xlu0 0
      %3123 = vperm.xlu0 %3122, %v3025
      %v3124 = vpop.permute.xlu0 %3123
      %3127 = vset.pattern.permute.xlu0 0
      %3128 = vperm.xlu0 %3127, %v3026
      %v3129 = vpop.permute.xlu0 %3128
      %3132 = vset.pattern.permute.xlu0 0
      %3133 = vperm.xlu0 %3132, %v3027
      %v3134 = vpop.permute.xlu0 %3133
      %3137 = vset.pattern.permute.xlu0 0
      %3138 = vperm.xlu0 %3137, %v3028
      %v3139 = vpop.permute.xlu0 %3138
      %3142 = vset.pattern.permute.xlu0 0
      %3143 = vperm.xlu0 %3142, %v3029
      %v3144 = vpop.permute.xlu0 %3143
      %3147 = vset.pattern.permute.xlu0 0
      %3148 = vperm.xlu0 %3147, %v3030
      %v3149 = vpop.permute.xlu0 %3148
      %3152 = vset.pattern.permute.xlu0 0
      %3153 = vperm.xlu0 %3152, %v3031
      %v3154 = vpop.permute.xlu0 %3153
      %3157 = vset.pattern.permute.xlu0 0
      %3158 = vperm.xlu0 %3157, %v3032
      %v3159 = vpop.permute.xlu0 %3158
      %3162 = vset.pattern.permute.xlu0 0
      %3163 = vperm.xlu0 %3162, %v3033
      %v3164 = vpop.permute.xlu0 %3163
      %3167 = vset.pattern.permute.xlu0 0
      %3168 = vperm.xlu0 %3167, %v3034
      %v3169 = vpop.permute.xlu0 %3168
      %3172 = vset.pattern.permute.xlu0 0
      %3173 = vperm.xlu0 %3172, %v3035
      %v3174 = vpop.permute.xlu0 %3173
      %3177 = vset.pattern.permute.xlu0 0
      %3178 = vperm.xlu0 %3177, %v3036
      %v3179 = vpop.permute.xlu0 %3178
      %3182 = vset.pattern.permute.xlu0 0
      %3183 = vperm.xlu0 %3182, %v3037
      %v3184 = vpop.permute.xlu0 %3183
      %3187 = vset.pattern.permute.xlu0 0
      %3188 = vperm.xlu0 %3187, %v3038
      %v3189 = vpop.permute.xlu0 %3188
      %3192 = vset.pattern.permute.xlu0 0
      %3193 = vperm.xlu0 %3192, %v3039
      %v3194 = vpop.permute.xlu0 %3193
      %3197 = vset.pattern.permute.xlu0 0
      %3198 = vperm.xlu0 %3197, %v3040
      %v3199 = vpop.permute.xlu0 %3198
      %3202 = vset.pattern.permute.xlu0 0
      %3203 = vperm.xlu0 %3202, %v3041
      %v3204 = vpop.permute.xlu0 %3203
      %3207 = vset.pattern.permute.xlu0 0
      %3208 = vperm.xlu0 %3207, %v3042
      %v3209 = vpop.permute.xlu0 %3208
      %3212 = vset.pattern.permute.xlu0 0
      %3213 = vperm.xlu0 %3212, %v3043
      %v3214 = vpop.permute.xlu0 %3213
      %3217 = vset.pattern.permute.xlu0 0
      %3218 = vperm.xlu0 %3217, %v3044
      %v3219 = vpop.permute.xlu0 %3218
      %3222 = vset.pattern.permute.xlu0 0
      %3223 = vperm.xlu0 %3222, %v3045
      %v3224 = vpop.permute.xlu0 %3223
      %v3226 = vmul.f32 %v2974, %v3049
      %v3227 = vmul.f32 %v2975, %v3054
      %v3228 = vmul.f32 %v2976, %v3059
      %v3229 = vmul.f32 %v2977, %v3064
      %v3230 = vmul.f32 %v2978, %v3069
      %v3231 = vmul.f32 %v2979, %v3074
      %v3232 = vmul.f32 %v2980, %v3079
      %v3233 = vmul.f32 %v2981, %v3084
      %v3234 = vmul.f32 %v2982, %v3089
      %v3235 = vmul.f32 %v2983, %v3094
      %v3236 = vmul.f32 %v2984, %v3099
      %v3237 = vmul.f32 %v2985, %v3104
      %v3238 = vmul.f32 %v2986, %v3109
      %v3239 = vmul.f32 %v2987, %v3114
      %v3240 = vmul.f32 %v2988, %v3119
      %v3241 = vmul.f32 %v2989, %v3124
      %v3242 = vmul.f32 %v2990, %v3129
      %v3243 = vmul.f32 %v2991, %v3134
      %v3244 = vmul.f32 %v2992, %v3139
      %v3245 = vmul.f32 %v2993, %v3144
      %v3246 = vmul.f32 %v2994, %v3149
      %v3247 = vmul.f32 %v2995, %v3154
      %v3248 = vmul.f32 %v2996, %v3159
      %v3249 = vmul.f32 %v2997, %v3164
      %v3250 = vmul.f32 %v2998, %v3169
      %v3251 = vmul.f32 %v2999, %v3174
      %v3252 = vmul.f32 %v3000, %v3179
      %v3253 = vmul.f32 %v3001, %v3184
      %v3254 = vmul.f32 %v3002, %v3189
      %v3255 = vmul.f32 %v3003, %v3194
      %v3256 = vmul.f32 %v3004, %v3199
      %v3257 = vmul.f32 %v3005, %v3204
      %v3258 = vmul.f32 %v3006, %v3209
      %v3259 = vmul.f32 %v3007, %v3214
      %v3260 = vmul.f32 %v3008, %v3219
      %v3261 = vmul.f32 %v3009, %v3224
      %vm3262 = vcmask 195584
      %v3263 = vsel %vm3262, %v3226, 0.0
      %v3264 = vsel %vm3262, %v3227, 0.0
      %v3265 = vadd.f32 %v3263, %v3264
      %v3266 = vsel %vm3262, %v3228, 0.0
      %v3267 = vadd.f32 %v3265, %v3266
      %v3268 = vsel %vm3262, %v3229, 0.0
      %v3269 = vadd.f32 %v3267, %v3268
      %v3270 = vsel %vm3262, %v3230, 0.0
      %v3271 = vadd.f32 %v3269, %v3270
      %v3272 = vsel %vm3262, %v3231, 0.0
      %v3273 = vadd.f32 %v3271, %v3272
      %v3274 = vsel %vm3262, %v3232, 0.0
      %v3275 = vadd.f32 %v3273, %v3274
      %v3276 = vsel %vm3262, %v3233, 0.0
      %v3277 = vadd.f32 %v3275, %v3276
      %v3278 = vsel %vm3262, %v3234, 0.0
      %v3279 = vadd.f32 %v3277, %v3278
      %v3280 = vsel %vm3262, %v3235, 0.0
      %v3281 = vadd.f32 %v3279, %v3280
      %v3282 = vsel %vm3262, %v3236, 0.0
      %v3283 = vadd.f32 %v3281, %v3282
      %v3284 = vsel %vm3262, %v3237, 0.0
      %v3285 = vadd.f32 %v3283, %v3284
      %v3286 = vsel %vm3262, %v3238, 0.0
      %v3287 = vadd.f32 %v3285, %v3286
      %v3288 = vsel %vm3262, %v3239, 0.0
      %v3289 = vadd.f32 %v3287, %v3288
      %v3290 = vsel %vm3262, %v3240, 0.0
      %v3291 = vadd.f32 %v3289, %v3290
      %v3292 = vsel %vm3262, %v3241, 0.0
      %v3293 = vadd.f32 %v3291, %v3292
      %v3294 = vsel %vm3262, %v3242, 0.0
      %v3295 = vadd.f32 %v3293, %v3294
      %v3296 = vsel %vm3262, %v3243, 0.0
      %v3297 = vadd.f32 %v3295, %v3296
      %v3298 = vsel %vm3262, %v3244, 0.0
      %v3299 = vadd.f32 %v3297, %v3298
      %v3300 = vsel %vm3262, %v3245, 0.0
      %v3301 = vadd.f32 %v3299, %v3300
      %v3302 = vsel %vm3262, %v3246, 0.0
      %v3303 = vadd.f32 %v3301, %v3302
      %v3304 = vsel %vm3262, %v3247, 0.0
      %v3305 = vadd.f32 %v3303, %v3304
      %v3306 = vsel %vm3262, %v3248, 0.0
      %v3307 = vadd.f32 %v3305, %v3306
      %v3308 = vsel %vm3262, %v3249, 0.0
      %v3309 = vadd.f32 %v3307, %v3308
      %v3310 = vsel %vm3262, %v3250, 0.0
      %v3311 = vadd.f32 %v3309, %v3310
      %v3312 = vsel %vm3262, %v3251, 0.0
      %v3313 = vadd.f32 %v3311, %v3312
      %v3314 = vsel %vm3262, %v3252, 0.0
      %v3315 = vadd.f32 %v3313, %v3314
      %v3316 = vsel %vm3262, %v3253, 0.0
      %v3317 = vadd.f32 %v3315, %v3316
      %v3318 = vsel %vm3262, %v3254, 0.0
      %v3319 = vadd.f32 %v3317, %v3318
      %v3320 = vsel %vm3262, %v3255, 0.0
      %v3321 = vadd.f32 %v3319, %v3320
      %v3322 = vsel %vm3262, %v3256, 0.0
      %v3323 = vadd.f32 %v3321, %v3322
      %v3324 = vsel %vm3262, %v3257, 0.0
      %v3325 = vadd.f32 %v3323, %v3324
      %v3326 = vsel %vm3262, %v3258, 0.0
      %v3327 = vadd.f32 %v3325, %v3326
      %v3328 = vsel %vm3262, %v3259, 0.0
      %v3329 = vadd.f32 %v3327, %v3328
      %v3330 = vsel %vm3262, %v3260, 0.0
      %v3331 = vadd.f32 %v3329, %v3330
      %v3332 = vsel %vm3262, %v3261, 0.0
      %v3333 = vadd.f32 %v3331, %v3332
      %v3334 = vrot.slane %v3333, 4
      %v3335 = vadd.f32 %v3333, %v3334
      %v3336 = vrot.slane %v3335, 2
      %v3337 = vadd.f32 %v3335, %v3336
      %v3338 = vrot.slane %v3337, 1
      %v3339 = vadd.f32 %v3337, %v3338
      %v3340 = vmul.f32 %v3226, %v3226
      %v3341 = vmul.f32 %v3227, %v3227
      %v3342 = vmul.f32 %v3228, %v3228
      %v3343 = vmul.f32 %v3229, %v3229
      %v3344 = vmul.f32 %v3230, %v3230
      %v3345 = vmul.f32 %v3231, %v3231
      %v3346 = vmul.f32 %v3232, %v3232
      %v3347 = vmul.f32 %v3233, %v3233
      %v3348 = vmul.f32 %v3234, %v3234
      %v3349 = vmul.f32 %v3235, %v3235
      %v3350 = vmul.f32 %v3236, %v3236
      %v3351 = vmul.f32 %v3237, %v3237
      %v3352 = vmul.f32 %v3238, %v3238
      %v3353 = vmul.f32 %v3239, %v3239
      %v3354 = vmul.f32 %v3240, %v3240
      %v3355 = vmul.f32 %v3241, %v3241
      %v3356 = vmul.f32 %v3242, %v3242
      %v3357 = vmul.f32 %v3243, %v3243
      %v3358 = vmul.f32 %v3244, %v3244
      %v3359 = vmul.f32 %v3245, %v3245
      %v3360 = vmul.f32 %v3246, %v3246
      %v3361 = vmul.f32 %v3247, %v3247
      %v3362 = vmul.f32 %v3248, %v3248
      %v3363 = vmul.f32 %v3249, %v3249
      %v3364 = vmul.f32 %v3250, %v3250
      %v3365 = vmul.f32 %v3251, %v3251
      %v3366 = vmul.f32 %v3252, %v3252
      %v3367 = vmul.f32 %v3253, %v3253
      %v3368 = vmul.f32 %v3254, %v3254
      %v3369 = vmul.f32 %v3255, %v3255
      %v3370 = vmul.f32 %v3256, %v3256
      %v3371 = vmul.f32 %v3257, %v3257
      %v3372 = vmul.f32 %v3258, %v3258
      %v3373 = vmul.f32 %v3259, %v3259
      %v3374 = vmul.f32 %v3260, %v3260
      %v3375 = vmul.f32 %v3261, %v3261
      %v3376 = vsel %vm3262, %v3340, 0.0
      %v3377 = vsel %vm3262, %v3341, 0.0
      %v3378 = vadd.f32 %v3376, %v3377
      %v3379 = vsel %vm3262, %v3342, 0.0
      %v3380 = vadd.f32 %v3378, %v3379
      %v3381 = vsel %vm3262, %v3343, 0.0
      %v3382 = vadd.f32 %v3380, %v3381
      %v3383 = vsel %vm3262, %v3344, 0.0
      %v3384 = vadd.f32 %v3382, %v3383
      %v3385 = vsel %vm3262, %v3345, 0.0
      %v3386 = vadd.f32 %v3384, %v3385
      %v3387 = vsel %vm3262, %v3346, 0.0
      %v3388 = vadd.f32 %v3386, %v3387
      %v3389 = vsel %vm3262, %v3347, 0.0
      %v3390 = vadd.f32 %v3388, %v3389
      %v3391 = vsel %vm3262, %v3348, 0.0
      %v3392 = vadd.f32 %v3390, %v3391
      %v3393 = vsel %vm3262, %v3349, 0.0
      %v3394 = vadd.f32 %v3392, %v3393
      %v3395 = vsel %vm3262, %v3350, 0.0
      %v3396 = vadd.f32 %v3394, %v3395
      %v3397 = vsel %vm3262, %v3351, 0.0
      %v3398 = vadd.f32 %v3396, %v3397
      %v3399 = vsel %vm3262, %v3352, 0.0
      %v3400 = vadd.f32 %v3398, %v3399
      %v3401 = vsel %vm3262, %v3353, 0.0
      %v3402 = vadd.f32 %v3400, %v3401
      %v3403 = vsel %vm3262, %v3354, 0.0
      %v3404 = vadd.f32 %v3402, %v3403
      %v3405 = vsel %vm3262, %v3355, 0.0
      %v3406 = vadd.f32 %v3404, %v3405
      %v3407 = vsel %vm3262, %v3356, 0.0
      %v3408 = vadd.f32 %v3406, %v3407
      %v3409 = vsel %vm3262, %v3357, 0.0
      %v3410 = vadd.f32 %v3408, %v3409
      %v3411 = vsel %vm3262, %v3358, 0.0
      %v3412 = vadd.f32 %v3410, %v3411
      %v3413 = vsel %vm3262, %v3359, 0.0
      %v3414 = vadd.f32 %v3412, %v3413
      %v3415 = vsel %vm3262, %v3360, 0.0
      %v3416 = vadd.f32 %v3414, %v3415
      %v3417 = vsel %vm3262, %v3361, 0.0
      %v3418 = vadd.f32 %v3416, %v3417
      %v3419 = vsel %vm3262, %v3362, 0.0
      %v3420 = vadd.f32 %v3418, %v3419
      %v3421 = vsel %vm3262, %v3363, 0.0
      %v3422 = vadd.f32 %v3420, %v3421
      %v3423 = vsel %vm3262, %v3364, 0.0
      %v3424 = vadd.f32 %v3422, %v3423
      %v3425 = vsel %vm3262, %v3365, 0.0
      %v3426 = vadd.f32 %v3424, %v3425
      %v3427 = vsel %vm3262, %v3366, 0.0
      %v3428 = vadd.f32 %v3426, %v3427
      %v3429 = vsel %vm3262, %v3367, 0.0
      %v3430 = vadd.f32 %v3428, %v3429
      %v3431 = vsel %vm3262, %v3368, 0.0
      %v3432 = vadd.f32 %v3430, %v3431
      %v3433 = vsel %vm3262, %v3369, 0.0
      %v3434 = vadd.f32 %v3432, %v3433
      %v3435 = vsel %vm3262, %v3370, 0.0
      %v3436 = vadd.f32 %v3434, %v3435
      %v3437 = vsel %vm3262, %v3371, 0.0
      %v3438 = vadd.f32 %v3436, %v3437
      %v3439 = vsel %vm3262, %v3372, 0.0
      %v3440 = vadd.f32 %v3438, %v3439
      %v3441 = vsel %vm3262, %v3373, 0.0
      %v3442 = vadd.f32 %v3440, %v3441
      %v3443 = vsel %vm3262, %v3374, 0.0
      %v3444 = vadd.f32 %v3442, %v3443
      %v3445 = vsel %vm3262, %v3375, 0.0
      %v3446 = vadd.f32 %v3444, %v3445
      %v3447 = vrot.slane %v3446, 4
      %v3448 = vadd.f32 %v3446, %v3447
      %v3449 = vrot.slane %v3448, 2
      %v3450 = vadd.f32 %v3448, %v3449
      %v3451 = vrot.slane %v3450, 1
      %v3452 = vadd.f32 %v3450, %v3451
      %v3453 = vld [vmem:[%s5] sm:$0xff]
      %v3454 = vld [vmem:[%s5 + $0x8] sm:$0xff]
      %v3455 = vld [vmem:[%s5 + $0x10] sm:$0xff]
      %v3457 = vsel %vm3262, %v3339, 0
      %3459 = vmatpush.msra.mxu0 0.0
      %3460 = vmatpush.msra.mxu0 0.0
      %3461 = vmatpush.msra.mxu0 0.0
      %3462 = vmatpush.msra.mxu0 0.0
      %3463 = vmatpush.msra.mxu0 0.0
      %3464 = vmatpush.msra.mxu0 0.0
      %3465 = vmatpush.msra.mxu0 0.0
      %3466 = vmatpush.msra.mxu0 0.0
      %3467 = vmatpush.msra.mxu0 0.0
      %3468 = vmatpush.msra.mxu0 0.0
      %3469 = vmatpush.msra.mxu0 0.0
      %3470 = vmatpush.msra.mxu0 0.0
      %3471 = vmatpush.msra.mxu0 0.0
      %3472 = vmatpush.msra.mxu0 %v3455
      %3473 = vmatpush.msra.mxu0 %v3454
      %3474 = vmatpush.msra.mxu0 %v3453
      %3475 = vmatmul.f32.gmra.mxu0 %v3457
      %v3476 = vpop.f32.mrf.mxu0
      %v3477 = vadd.f32 0.0, %v3476
      %3478 = vdwg.mxu0
      %v3479 = vrcp.pop 256.0
      %v3480 = vmul.f32 256.0, %v3479
      %v3481 = vsub.f32 1.0, %v3480
      %v3482 = vmul.f32 %v3479, %v3481
      %v3483 = vadd.f32 %v3479, %v3482
      %vm3484 = vweird.f32 %v3479
      %v3485 = vsel %vm3484, %v3479, %v3483
      %v3486 = vmul.f32 %v3477, %v3485
      %v3488 = vsel %vm3262, %v3452, 0
      %3490 = vmatpush.msra.mxu0 0.0
      %3491 = vmatpush.msra.mxu0 0.0
      %3492 = vmatpush.msra.mxu0 0.0
      %3493 = vmatpush.msra.mxu0 0.0
      %3494 = vmatpush.msra.mxu0 0.0
      %3495 = vmatpush.msra.mxu0 0.0
      %3496 = vmatpush.msra.mxu0 0.0
      %3497 = vmatpush.msra.mxu0 0.0
      %3498 = vmatpush.msra.mxu0 0.0
      %3499 = vmatpush.msra.mxu0 0.0
      %3500 = vmatpush.msra.mxu0 0.0
      %3501 = vmatpush.msra.mxu0 0.0
      %3502 = vmatpush.msra.mxu0 0.0
      %3503 = vmatpush.msra.mxu0 %v3455
      %3504 = vmatpush.msra.mxu0 %v3454
      %3505 = vmatpush.msra.mxu0 %v3453
      %3506 = vmatmul.f32.gmra.mxu0 %v3488
      %v3507 = vpop.f32.mrf.mxu0
      %v3508 = vadd.f32 0.0, %v3507
      %3509 = vdwg.mxu0
      %v3510 = vmul.f32 %v3508, %v3485
      %v3511 = vmul.f32 %v3486, %v3486
      %v3512 = vsub.f32 %v3510, %v3511
      %v3513 = vmax.f32 %v3512, 0.0
      %v3514 = vadd.f32 %v3513, 1e-05
      %v3515 = vrsqrt.pop %v3514
      %v3516 = vmul.f32 %v3515, %v3514
      %v3517 = vmul.f32 %v3516, %v3515
      %v3518 = vmul.f32 0.5, %v3517
      %v3519 = vsub.f32 1.5, %v3518
      %v3520 = vmul.f32 %v3515, %v3519
      %vm3521 = vweird.f32 %v3514
      %vm3522 = vweird.f32 %v3515
      %vm3523 = vmor %vm3521, %vm3522
      %v3524 = vsel %vm3523, %v3515, %v3520
      %v3525 = vperm.slane %v3486, 0
      %v3526 = vsub.f32 %v2974, %v3525
      %v3527 = vsub.f32 %v2975, %v3525
      %v3528 = vsub.f32 %v2976, %v3525
      %v3529 = vsub.f32 %v2977, %v3525
      %v3530 = vsub.f32 %v2978, %v3525
      %v3531 = vsub.f32 %v2979, %v3525
      %v3532 = vsub.f32 %v2980, %v3525
      %v3533 = vsub.f32 %v2981, %v3525
      %v3534 = vsub.f32 %v2982, %v3525
      %v3535 = vsub.f32 %v2983, %v3525
      %v3536 = vsub.f32 %v2984, %v3525
      %v3537 = vsub.f32 %v2985, %v3525
      %v3538 = vsub.f32 %v2986, %v3525
      %v3539 = vsub.f32 %v2987, %v3525
      %v3540 = vsub.f32 %v2988, %v3525
      %v3541 = vsub.f32 %v2989, %v3525
      %v3542 = vsub.f32 %v2990, %v3525
      %v3543 = vsub.f32 %v2991, %v3525
      %v3544 = vsub.f32 %v2992, %v3525
      %v3545 = vsub.f32 %v2993, %v3525
      %v3546 = vsub.f32 %v2994, %v3525
      %v3547 = vsub.f32 %v2995, %v3525
      %v3548 = vsub.f32 %v2996, %v3525
      %v3549 = vsub.f32 %v2997, %v3525
      %v3550 = vsub.f32 %v2998, %v3525
      %v3551 = vsub.f32 %v2999, %v3525
      %v3552 = vsub.f32 %v3000, %v3525
      %v3553 = vsub.f32 %v3001, %v3525
      %v3554 = vsub.f32 %v3002, %v3525
      %v3555 = vsub.f32 %v3003, %v3525
      %v3556 = vsub.f32 %v3004, %v3525
      %v3557 = vsub.f32 %v3005, %v3525
      %v3558 = vsub.f32 %v3006, %v3525
      %v3559 = vsub.f32 %v3007, %v3525
      %v3560 = vsub.f32 %v3008, %v3525
      %v3561 = vsub.f32 %v3009, %v3525
      %v3562 = vperm.slane %v3524, 0
      %v3563 = vmul.f32 %v3526, %v3562
      %v3564 = vmul.f32 %v3527, %v3562
      %v3565 = vmul.f32 %v3528, %v3562
      %v3566 = vmul.f32 %v3529, %v3562
      %v3567 = vmul.f32 %v3530, %v3562
      %v3568 = vmul.f32 %v3531, %v3562
      %v3569 = vmul.f32 %v3532, %v3562
      %v3570 = vmul.f32 %v3533, %v3562
      %v3571 = vmul.f32 %v3534, %v3562
      %v3572 = vmul.f32 %v3535, %v3562
      %v3573 = vmul.f32 %v3536, %v3562
      %v3574 = vmul.f32 %v3537, %v3562
      %v3575 = vmul.f32 %v3538, %v3562
      %v3576 = vmul.f32 %v3539, %v3562
      %v3577 = vmul.f32 %v3540, %v3562
      %v3578 = vmul.f32 %v3541, %v3562
      %v3579 = vmul.f32 %v3542, %v3562
      %v3580 = vmul.f32 %v3543, %v3562
      %v3581 = vmul.f32 %v3544, %v3562
      %v3582 = vmul.f32 %v3545, %v3562
      %v3583 = vmul.f32 %v3546, %v3562
      %v3584 = vmul.f32 %v3547, %v3562
      %v3585 = vmul.f32 %v3548, %v3562
      %v3586 = vmul.f32 %v3549, %v3562
      %v3587 = vmul.f32 %v3550, %v3562
      %v3588 = vmul.f32 %v3551, %v3562
      %v3589 = vmul.f32 %v3552, %v3562
      %v3590 = vmul.f32 %v3553, %v3562
      %v3591 = vmul.f32 %v3554, %v3562
      %v3592 = vmul.f32 %v3555, %v3562
      %v3593 = vmul.f32 %v3556, %v3562
      %v3594 = vmul.f32 %v3557, %v3562
      %v3595 = vmul.f32 %v3558, %v3562
      %v3596 = vmul.f32 %v3559, %v3562
      %v3597 = vmul.f32 %v3560, %v3562
      %v3598 = vmul.f32 %v3561, %v3562
      %v3599 = vld [vmem:[%s3] sm:$0x1]
      %v3601 = vperm.slane %v3599, 0
      %v3603 = vmul.f32 %v3563, %v3601
      %v3604 = vmul.f32 %v3564, %v3601
      %v3605 = vmul.f32 %v3565, %v3601
      %v3606 = vmul.f32 %v3566, %v3601
      %v3607 = vmul.f32 %v3567, %v3601
      %v3608 = vmul.f32 %v3568, %v3601
      %v3609 = vmul.f32 %v3569, %v3601
      %v3610 = vmul.f32 %v3570, %v3601
      %v3611 = vmul.f32 %v3571, %v3601
      %v3612 = vmul.f32 %v3572, %v3601
      %v3613 = vmul.f32 %v3573, %v3601
      %v3614 = vmul.f32 %v3574, %v3601
      %v3615 = vmul.f32 %v3575, %v3601
      %v3616 = vmul.f32 %v3576, %v3601
      %v3617 = vmul.f32 %v3577, %v3601
      %v3618 = vmul.f32 %v3578, %v3601
      %v3619 = vmul.f32 %v3579, %v3601
      %v3620 = vmul.f32 %v3580, %v3601
      %v3621 = vmul.f32 %v3581, %v3601
      %v3622 = vmul.f32 %v3582, %v3601
      %v3623 = vmul.f32 %v3583, %v3601
      %v3624 = vmul.f32 %v3584, %v3601
      %v3625 = vmul.f32 %v3585, %v3601
      %v3626 = vmul.f32 %v3586, %v3601
      %v3627 = vmul.f32 %v3587, %v3601
      %v3628 = vmul.f32 %v3588, %v3601
      %v3629 = vmul.f32 %v3589, %v3601
      %v3630 = vmul.f32 %v3590, %v3601
      %v3631 = vmul.f32 %v3591, %v3601
      %v3632 = vmul.f32 %v3592, %v3601
      %v3633 = vmul.f32 %v3593, %v3601
      %v3634 = vmul.f32 %v3594, %v3601
      %v3635 = vmul.f32 %v3595, %v3601
      %v3636 = vmul.f32 %v3596, %v3601
      %v3637 = vmul.f32 %v3597, %v3601
      %v3638 = vmul.f32 %v3598, %v3601
      %v3639 = vld [vmem:[%s4] sm:$0x1]
      %v3641 = vperm.slane %v3639, 0
      %v3643 = vadd.f32 %v3603, %v3641
      %v3644 = vadd.f32 %v3604, %v3641
      %v3645 = vadd.f32 %v3605, %v3641
      %v3646 = vadd.f32 %v3606, %v3641
      %v3647 = vadd.f32 %v3607, %v3641
      %v3648 = vadd.f32 %v3608, %v3641
      %v3649 = vadd.f32 %v3609, %v3641
      %v3650 = vadd.f32 %v3610, %v3641
      %v3651 = vadd.f32 %v3611, %v3641
      %v3652 = vadd.f32 %v3612, %v3641
      %v3653 = vadd.f32 %v3613, %v3641
      %v3654 = vadd.f32 %v3614, %v3641
      %v3655 = vadd.f32 %v3615, %v3641
      %v3656 = vadd.f32 %v3616, %v3641
      %v3657 = vadd.f32 %v3617, %v3641
      %v3658 = vadd.f32 %v3618, %v3641
      %v3659 = vadd.f32 %v3619, %v3641
      %v3660 = vadd.f32 %v3620, %v3641
      %v3661 = vadd.f32 %v3621, %v3641
      %v3662 = vadd.f32 %v3622, %v3641
      %v3663 = vadd.f32 %v3623, %v3641
      %v3664 = vadd.f32 %v3624, %v3641
      %v3665 = vadd.f32 %v3625, %v3641
      %v3666 = vadd.f32 %v3626, %v3641
      %v3667 = vadd.f32 %v3627, %v3641
      %v3668 = vadd.f32 %v3628, %v3641
      %v3669 = vadd.f32 %v3629, %v3641
      %v3670 = vadd.f32 %v3630, %v3641
      %v3671 = vadd.f32 %v3631, %v3641
      %v3672 = vadd.f32 %v3632, %v3641
      %v3673 = vadd.f32 %v3633, %v3641
      %v3674 = vadd.f32 %v3634, %v3641
      %v3675 = vadd.f32 %v3635, %v3641
      %v3676 = vadd.f32 %v3636, %v3641
      %v3677 = vadd.f32 %v3637, %v3641
      %v3678 = vadd.f32 %v3638, %v3641
      %v3679 = vmax.f32 %v3643, 0.0
      %v3680 = vmax.f32 %v3644, 0.0
      %v3681 = vmax.f32 %v3645, 0.0
      %v3682 = vmax.f32 %v3646, 0.0
      %v3683 = vmax.f32 %v3647, 0.0
      %v3684 = vmax.f32 %v3648, 0.0
      %v3685 = vmax.f32 %v3649, 0.0
      %v3686 = vmax.f32 %v3650, 0.0
      %v3687 = vmax.f32 %v3651, 0.0
      %v3688 = vmax.f32 %v3652, 0.0
      %v3689 = vmax.f32 %v3653, 0.0
      %v3690 = vmax.f32 %v3654, 0.0
      %v3691 = vmax.f32 %v3655, 0.0
      %v3692 = vmax.f32 %v3656, 0.0
      %v3693 = vmax.f32 %v3657, 0.0
      %v3694 = vmax.f32 %v3658, 0.0
      %v3695 = vmax.f32 %v3659, 0.0
      %v3696 = vmax.f32 %v3660, 0.0
      %v3697 = vmax.f32 %v3661, 0.0
      %v3698 = vmax.f32 %v3662, 0.0
      %v3699 = vmax.f32 %v3663, 0.0
      %v3700 = vmax.f32 %v3664, 0.0
      %v3701 = vmax.f32 %v3665, 0.0
      %v3702 = vmax.f32 %v3666, 0.0
      %v3703 = vmax.f32 %v3667, 0.0
      %v3704 = vmax.f32 %v3668, 0.0
      %v3705 = vmax.f32 %v3669, 0.0
      %v3706 = vmax.f32 %v3670, 0.0
      %v3707 = vmax.f32 %v3671, 0.0
      %v3708 = vmax.f32 %v3672, 0.0
      %v3709 = vmax.f32 %v3673, 0.0
      %v3710 = vmax.f32 %v3674, 0.0
      %v3711 = vmax.f32 %v3675, 0.0
      %v3712 = vmax.f32 %v3676, 0.0
      %v3713 = vmax.f32 %v3677, 0.0
      %v3714 = vmax.f32 %v3678, 0.0
      %v3715 = vmul.f32 %v3679, %v3049
      %v3716 = vmul.f32 %v3680, %v3054
      %v3717 = vmul.f32 %v3681, %v3059
      %v3718 = vmul.f32 %v3682, %v3064
      %v3719 = vmul.f32 %v3683, %v3069
      %v3720 = vmul.f32 %v3684, %v3074
      %v3721 = vmul.f32 %v3685, %v3079
      %v3722 = vmul.f32 %v3686, %v3084
      %v3723 = vmul.f32 %v3687, %v3089
      %v3724 = vmul.f32 %v3688, %v3094
      %v3725 = vmul.f32 %v3689, %v3099
      %v3726 = vmul.f32 %v3690, %v3104
      %v3727 = vmul.f32 %v3691, %v3109
      %v3728 = vmul.f32 %v3692, %v3114
      %v3729 = vmul.f32 %v3693, %v3119
      %v3730 = vmul.f32 %v3694, %v3124
      %v3731 = vmul.f32 %v3695, %v3129
      %v3732 = vmul.f32 %v3696, %v3134
      %v3733 = vmul.f32 %v3697, %v3139
      %v3734 = vmul.f32 %v3698, %v3144
      %v3735 = vmul.f32 %v3699, %v3149
      %v3736 = vmul.f32 %v3700, %v3154
      %v3737 = vmul.f32 %v3701, %v3159
      %v3738 = vmul.f32 %v3702, %v3164
      %v3739 = vmul.f32 %v3703, %v3169
      %v3740 = vmul.f32 %v3704, %v3174
      %v3741 = vmul.f32 %v3705, %v3179
      %v3742 = vmul.f32 %v3706, %v3184
      %v3743 = vmul.f32 %v3707, %v3189
      %v3744 = vmul.f32 %v3708, %v3194
      %v3745 = vmul.f32 %v3709, %v3199
      %v3746 = vmul.f32 %v3710, %v3204
      %v3747 = vmul.f32 %v3711, %v3209
      %v3748 = vmul.f32 %v3712, %v3214
      %v3749 = vmul.f32 %v3713, %v3219
      %v3750 = vmul.f32 %v3714, %v3224
      %3751 = vst.msk [vmem:[%s278] sm:$0xff] %vm3262, 0.0
      %3752 = vst.msk [vmem:[%s278 + $0x8] sm:$0xff] %vm3262, 0.0
      %vm3753 = vcmask 190464
      %3754 = vst.msk [vmem:[%s278 + $0x10] sm:$0x7] %vm3753, 0.0
      %3755 = vst.msk [vmem:[%s278 + $0x133] sm:$0xff] %vm3262, 0.0
      %3756 = vst.msk [vmem:[%s278 + $0x13b] sm:$0xff] %vm3262, 0.0
      %3757 = vst.msk [vmem:[%s278 + $0x143] sm:$0x7] %vm3753, 0.0
      %3758 = vst.msk [vmem:[%s278 + $0x13] sm:$0xff] %vm3262, %v3715
      %3759 = vst.msk [vmem:[%s278 + $0x1b] sm:$0xff] %vm3262, %v3716
      %3760 = vst.msk [vmem:[%s278 + $0x23] sm:$0xff] %vm3262, %v3717
      %3761 = vst.msk [vmem:[%s278 + $0x2b] sm:$0xff] %vm3262, %v3718
      %3762 = vst.msk [vmem:[%s278 + $0x33] sm:$0xff] %vm3262, %v3719
      %3763 = vst.msk [vmem:[%s278 + $0x3b] sm:$0xff] %vm3262, %v3720
      %3764 = vst.msk [vmem:[%s278 + $0x43] sm:$0xff] %vm3262, %v3721
      %3765 = vst.msk [vmem:[%s278 + $0x4b] sm:$0xff] %vm3262, %v3722
      %3766 = vst.msk [vmem:[%s278 + $0x53] sm:$0xff] %vm3262, %v3723
      %3767 = vst.msk [vmem:[%s278 + $0x5b] sm:$0xff] %vm3262, %v3724
      %3768 = vst.msk [vmem:[%s278 + $0x63] sm:$0xff] %vm3262, %v3725
      %3769 = vst.msk [vmem:[%s278 + $0x6b] sm:$0xff] %vm3262, %v3726
      %3770 = vst.msk [vmem:[%s278 + $0x73] sm:$0xff] %vm3262, %v3727
      %3771 = vst.msk [vmem:[%s278 + $0x7b] sm:$0xff] %vm3262, %v3728
      %3772 = vst.msk [vmem:[%s278 + $0x83] sm:$0xff] %vm3262, %v3729
      %3773 = vst.msk [vmem:[%s278 + $0x8b] sm:$0xff] %vm3262, %v3730
      %3774 = vst.msk [vmem:[%s278 + $0x93] sm:$0xff] %vm3262, %v3731
      %3775 = vst.msk [vmem:[%s278 + $0x9b] sm:$0xff] %vm3262, %v3732
      %3776 = vst.msk [vmem:[%s278 + $0xa3] sm:$0xff] %vm3262, %v3733
      %3777 = vst.msk [vmem:[%s278 + $0xab] sm:$0xff] %vm3262, %v3734
      %3778 = vst.msk [vmem:[%s278 + $0xb3] sm:$0xff] %vm3262, %v3735
      %3779 = vst.msk [vmem:[%s278 + $0xbb] sm:$0xff] %vm3262, %v3736
      %3780 = vst.msk [vmem:[%s278 + $0xc3] sm:$0xff] %vm3262, %v3737
      %3781 = vst.msk [vmem:[%s278 + $0xcb] sm:$0xff] %vm3262, %v3738
      %3782 = vst.msk [vmem:[%s278 + $0xd3] sm:$0xff] %vm3262, %v3739
      %3783 = vst.msk [vmem:[%s278 + $0xdb] sm:$0xff] %vm3262, %v3740
      %3784 = vst.msk [vmem:[%s278 + $0xe3] sm:$0xff] %vm3262, %v3741
      %3785 = vst.msk [vmem:[%s278 + $0xeb] sm:$0xff] %vm3262, %v3742
      %3786 = vst.msk [vmem:[%s278 + $0xf3] sm:$0xff] %vm3262, %v3743
      %3787 = vst.msk [vmem:[%s278 + $0xfb] sm:$0xff] %vm3262, %v3744
      %3788 = vst.msk [vmem:[%s278 + $0x103] sm:$0xff] %vm3262, %v3745
      %3789 = vst.msk [vmem:[%s278 + $0x10b] sm:$0xff] %vm3262, %v3746
      %3790 = vst.msk [vmem:[%s278 + $0x113] sm:$0xff] %vm3262, %v3747
      %3791 = vst.msk [vmem:[%s278 + $0x11b] sm:$0xff] %vm3262, %v3748
      %3792 = vst.msk [vmem:[%s278 + $0x123] sm:$0xff] %vm3262, %v3749
      %3793 = vst.msk [vmem:[%s278 + $0x12b] sm:$0xff] %vm3262, %v3750
      %p3794 = scmp.lt.s32.totalorder %s18, 1
      %s3795 = scalar_select %p3794, %s18, 1
      %s3796 = smul.addr %s3795, 41
      %s3797 = smul.addr %s3796, 8
      %s3798 = scalar_lea.vmem %s7, %s3797
      // Predicated region
      $region49: #{tpu_custom_call.1} parent=47 // pred_check
        %p3799 = pneg %p188
      $region50: #{tpu_custom_call.1} parent=47 // pred_check_branch
        %3801 = sbr.rel (%p3799) target = $region52
      $region51: #{tpu_custom_call.1} parent=47 // pred_region
        _
      $region52: #{tpu_custom_call.1} parent=47 // pred_fallthru
        _
    $region48: #{tpu_custom_call.1} parent=5 // pred_fallthru
      _
    %p3802 = scmp.le.s32.totalorder 2, %s13
    // Predicated region
    $region53: #{tpu_custom_call.1} parent=5 // pred_check
      %p3803 = pneg %p3802
    $region54: #{tpu_custom_call.1} parent=5 // pred_check_branch
      %3805 = sbr.rel (%p3803) target = $region56
    $region55: #{tpu_custom_call.1} parent=5 // pred_region
      %s3806 = ssub.s32 %s13, 2
      // Predicated region
      $region57: #{tpu_custom_call.1} parent=55 // pred_check
        %p3807 = pneg %p194
      $region58: #{tpu_custom_call.1} parent=55 // pred_check_branch
        %3809 = sbr.rel (%p3807) target = $region60
      $region59: #{tpu_custom_call.1} parent=55 // pred_region
        %p3810 = scmp.lt.s32.totalorder %s19, 1
        %s3811 = scalar_select %p3810, %s19, 1
        %s3812 = smul.addr %s3811, 41
        %s3813 = smul.addr %s3812, 8
        %s3814 = scalar_lea.vmem %s7, %s3813
      $region60: #{tpu_custom_call.1} parent=55 // pred_fallthru
        _
    $region56: #{tpu_custom_call.1} parent=5 // pred_fallthru
      _
  $region6: #{tpu_custom_call.1} parent=0 // loop_footer
    %s17 = sadd.s32 1, %s13
  $region7: #{tpu_custom_call.1} parent=0 // loop_footer_branch
    %12 = sbr.rel target = $region3
  $region8: #{tpu_custom_call.1} parent=0 // loop_exit
    _

</llo_original>
